<compile_context>
chip_gen: v7x
topology: tpu7x:2x2x1
jax: 0.10.0
libtpu: 0.0.40
codegen_flags: <defaults>
</compile_context>

<pallas_src>
import functools

import jax
import jax.numpy as jnp
from jax import lax
from jax.experimental import pallas as pl
from jax.experimental.pallas import tpu as pltpu


# --------------------------- generation-aware VMEM budget -------------------------- #

def _pick_vmem_limit():
    # v5e/v6e: 128 MiB VMEM per TensorCore; v7x: 64 MiB.  Budget ~3/4 of physical (the
    # blocks here are small; leave headroom for double buffering only).
    try:
        cap = pltpu.get_tpu_info().vmem_capacity_bytes
    except Exception:  # not on TPU / API unavailable -> conservative default
        cap = 64 * 1024 * 1024
    return min(int(cap * 3) // 4, 96 * 1024 * 1024)


_VMEM_LIMIT = _pick_vmem_limit()


def _round_up(a, b):
    return -(-a // b) * b


# ----------------------------------- Pallas kernels -------------------------------- #

def _conv_plane_kernel(x_ref, w_ref, b_ref, mask_ref, o_ref, acc_ref, *rhs,
                       kh, kw, sh, sw, row_pitch, L, cin_p, cout,
                       neg_slope, apply_act):
    # x_ref:    (P, cin_p, Lflat)  flattened parity-split padded input plane, bf16
    # w_ref:    (kd, cout, K) bf16 resident filter bank   (K = kh*kw*cin_p)
    #           or (kd, kh*kw, cin_p, 1) when cout == 1 (head conv, VPU path)
    # b_ref:    (cout, 1)  f32 bias
    # mask_ref: (1, L)     f32: 1.0 on valid output columns, 0.0 on row-wrap garbage
    # o_ref:    (cout, L)       lane-dense output plane for grid point (n, od)
    # acc_ref:  (cout, L)  f32  accumulator, resident across the kd (last) grid axis
    # rhs:      ((K, L) bf16 scratch,) when cout > 1, else ()
    i = pl.program_id(2)

    @pl.when(i == 0)
    def _init():
        acc_ref[...] = jnp.zeros_like(acc_ref)

    if cout > 1:
        rhs_ref = rhs[0]
        # Build the (K, L) patch matrix for depth tap i: every in-plane tap is a plain
        # contiguous lane slice of the flattened parity-split plane (stride folded away).
        for j in range(kh):                          # static, unrolled
            hh = j // sh
            for k in range(kw):
                ww = k // sw
                p = (j % sh) * sw + (k % sw)
                start = hh * row_pitch + ww
                t = j * kw + k
                rhs_ref[t * cin_p:(t + 1) * cin_p, :] = x_ref[p, :, start:start + L]
        # One large-K MXU GEMM per depth tap, bf16 x bf16 -> f32.
        acc_ref[...] += jnp.dot(w_ref[i], rhs_ref[...],
                                preferred_element_type=jnp.float32)
    else:
        # Head conv (cout == 1): a (1, K) x (K, L) MXU matvec is ~1/256 utilization;
        # do the contraction on the VPU instead (multiply + sublane reduce per tap).
        w_taps = w_ref[i].astype(jnp.float32)        # (kh*kw, cin_p, 1)
        contrib = jnp.zeros((1, L), jnp.float32)
        for j in range(kh):
            hh = j // sh
            for k in range(kw):
                ww = k // sw
                p = (j % sh) * sw + (k % sw)
                start = hh * row_pitch + ww
                t = j * kw + k
                piece = x_ref[p, :, start:start + L].astype(jnp.float32)
                contrib = contrib + jnp.sum(piece * w_taps[t], axis=0, keepdims=True)
        acc_ref[...] += contrib

    @pl.when(i == pl.num_programs(2) - 1)
    def _fin():
        y = acc_ref[...] + b_ref[...]
        if apply_act:
            y = jnp.where(y >= 0, y, neg_slope * y)          # LeakyReLU(0.2)
        # zero the row-wrap garbage columns so downstream InstanceNorm statistics are
        # exact (everything else slices them away).
        o_ref[...] = (y * mask_ref[...]).astype(o_ref.dtype)


def _instnorm_lrelu_kernel(x_ref, g_ref, b_ref, o_ref, *, count, eps, neg_slope):
    # x_ref: (OD, C, L) one batch instance, lane-dense (spatial on lanes).  Garbage
    # lanes hold zeros, so sums over all lanes equal sums over the `count` valid voxels.
    x = x_ref[...].astype(jnp.float32)
    row_s1 = jnp.sum(x, axis=2, keepdims=True)               # (OD, C, 1)  lane reduce
    row_s2 = jnp.sum(x * x, axis=2, keepdims=True)
    s1 = jnp.sum(row_s1, axis=0, keepdims=True)              # (1, C, 1)
    s2 = jnp.sum(row_s2, axis=0, keepdims=True)
    inv = 1.0 / count
    mean = s1 * inv
    var = s2 * inv - mean * mean                             # biased var (PyTorch IN)
    scale = lax.rsqrt(var + eps) * g_ref[...]
    shift = b_ref[...] - mean * scale
    y = x * scale + shift
    o_ref[...] = jnp.where(y >= 0, y, neg_slope * y).astype(o_ref.dtype)


# ---------------------------------- layer wrappers --------------------------------- #

def _prep_conv_input(x, ksize, stride, padding):
    """x: (N, D, C, H, W).  Pad D/H/W, zero-pad C to a multiple of 8, parity-split H/W by
    the stride and flatten each split plane so that every conv tap becomes a contiguous
    lane slice.  Returns (xflat (N*Dp, P, Cp, Lflat) bf16, geometry dict)."""
    kd, kh, kw = ksize
    sd, sh, sw = stride
    pd, ph, pw = padding
    N, D, C, H, W = x.shape
    Cp = _round_up(max(C, 8), 8)
    Dp, Hp, Wp = D + 2 * pd, H + 2 * ph, W + 2 * pw
    OD = (Dp - kd) // sd + 1
    OH = (Hp - kh) // sh + 1
    OW = (Wp - kw) // sw + 1
    Hr, Wr = _round_up(Hp, sh), _round_up(Wp, sw)            # round up to the stride
    Hs, Ws = Hr // sh, Wr // sw
    tail = (kw - 1) // sw                                    # worst-case tap lane overrun
    x = x.astype(jnp.bfloat16)
    xp = jnp.pad(x, ((0, 0), (pd, pd), (0, Cp - C),
                     (ph, Hr - Hp + ph), (pw, Wr - Wp + pw)))
    xsp = xp.reshape(N, Dp, Cp, Hs, sh, Ws, sw)
    xsp = xsp.transpose(0, 1, 4, 6, 2, 3, 5)                 # (N, Dp, sh, sw, Cp, Hs, Ws)
    xflat = xsp.reshape(N * Dp, sh * sw, Cp, Hs * Ws)
    xflat = jnp.pad(xflat, ((0, 0), (0, 0), (0, 0), (0, tail)))
    geo = dict(N=N, Dp=Dp, Cp=Cp, OD=OD, OH=OH, OW=OW, Ws=Ws,
               P=sh * sw, Lflat=Hs * Ws + tail)
    return xflat, geo


def conv3d_pallas(x, weight, bias, *, stride, padding, apply_act,
                  neg_slope=0.2, out_dtype=jnp.bfloat16):
    """Conv3d over x:(N, D, C, H, W); weight in PyTorch layout (Cout, Cin, kd, kh, kw);
    bias (Cout,) f32 or None.  Returns ((N, OD, Cout, OH, Ws), OW): the lane-dense output
    keeps Ws >= OW columns per row, the valid ones are [..., :OW] (rest are zeros)."""
    cout, cin, kd, kh, kw = weight.shape
    sd, sh, sw = stride
    assert x.shape[2] == cin
    xflat, geo = _prep_conv_input(x, (kd, kh, kw), stride, padding)
    N, Dp, Cp, P = geo["N"], geo["Dp"], geo["Cp"], geo["P"]
    OD, OH, OW, Ws, Lflat = geo["OD"], geo["OH"], geo["OW"], geo["Ws"], geo["Lflat"]
    L = OH * Ws                                              # lane-dense plane length
    K = kh * kw * Cp

    wpad = jnp.pad(weight, ((0, 0), (0, Cp - cin), (0, 0), (0, 0), (0, 0)))
    if cout > 1:
        # (Cout, Cp, kd, kh, kw) -> (kd, Cout, kh, kw, Cp) -> (kd, Cout, K)
        w_pack = jnp.transpose(wpad, (2, 0, 3, 4, 1)).reshape(kd, cout, K)
        w_spec = pl.BlockSpec((kd, cout, K), lambda n, od, i: (0, 0, 0))
    else:
        # head conv: per-tap (Cp, 1) columns for the VPU contraction
        w_pack = jnp.transpose(wpad, (2, 3, 4, 1, 0)).reshape(kd, kh * kw, Cp, 1)
        w_spec = pl.BlockSpec((kd, kh * kw, Cp, 1), lambda n, od, i: (0, 0, 0, 0))
    w_pack = w_pack.astype(jnp.bfloat16)
    b_col = (bias if bias is not None else jnp.zeros((cout,), jnp.float32))
    b_col = b_col.reshape(cout, 1).astype(jnp.float32)
    # column q of the flattened plane is a real output position iff (q mod Ws) < OW
    mask = (jnp.arange(L, dtype=jnp.int32) % Ws < OW).astype(jnp.float32).reshape(1, L)

    kernel = functools.partial(
        _conv_plane_kernel, kh=kh, kw=kw, sh=sh, sw=sw, row_pitch=Ws, L=L,
        cin_p=Cp, cout=cout, neg_slope=neg_slope, apply_act=apply_act)

    scratch = [pltpu.VMEM((cout, L), jnp.float32)]           # f32 accumulator (lane-dense)
    if cout > 1:
        scratch.append(pltpu.VMEM((K, L), jnp.bfloat16))     # merged-K patch matrix

    out = pl.pallas_call(
        kernel,
        out_shape=jax.ShapeDtypeStruct((N * OD, cout, L), out_dtype),
        grid_spec=pltpu.PrefetchScalarGridSpec(
            num_scalar_prefetch=0,
            grid=(N, OD, kd),                   # kd = reduction (depth-tap) axis, last
            in_specs=[
                # one flattened parity-split input plane per (n, od, depth-tap i)
                pl.BlockSpec((None, P, Cp, Lflat),
                             lambda n, od, i: (n * Dp + od * sd + i, 0, 0, 0)),
                w_spec,                                         # resident filter bank
                pl.BlockSpec((cout, 1), lambda n, od, i: (0, 0)),   # resident bias
                pl.BlockSpec((1, L), lambda n, od, i: (0, 0)),      # resident valid mask
            ],
            # output block constant across the tap axis -> resident accumulator pattern
            out_specs=pl.BlockSpec((None, cout, L),
                                   lambda n, od, i: (n * OD + od, 0, 0)),
            scratch_shapes=scratch,
        ),
        compiler_params=pltpu.CompilerParams(
            dimension_semantics=("parallel", "parallel", "arbitrary"),
            vmem_limit_bytes=_VMEM_LIMIT,
        ),
    )(xflat, w_pack, b_col, mask)
    return out.reshape(N, OD, cout, OH, Ws), OW


def instance_norm_lrelu_pallas(x, ow_valid, gamma, beta, *, eps=1e-5, neg_slope=0.2):
    """x: (N, OD, C, OH, Ws) conv output (garbage columns already zeroed).  Per-(n, c)
    statistics over the OD*OH*OW valid voxels; returns the same lane-dense layout."""
    N, OD, C, OH, Ws = x.shape
    L = OH * Ws
    count = float(OD * OH * ow_valid)
    x3 = x.reshape(N, OD, C, L)
    g = gamma.reshape(1, C, 1).astype(jnp.float32)
    b = beta.reshape(1, C, 1).astype(jnp.float32)
    kernel = functools.partial(_instnorm_lrelu_kernel, count=count,
                               eps=eps, neg_slope=neg_slope)
    out = pl.pallas_call(
        kernel,
        out_shape=jax.ShapeDtypeStruct((N, OD, C, L), x.dtype),
        grid_spec=pltpu.PrefetchScalarGridSpec(
            num_scalar_prefetch=0,
            grid=(N,),
            in_specs=[
                pl.BlockSpec((None, OD, C, L), lambda n: (n, 0, 0, 0)),
                pl.BlockSpec((1, C, 1), lambda n: (0, 0, 0)),
                pl.BlockSpec((1, C, 1), lambda n: (0, 0, 0)),
            ],
            out_specs=pl.BlockSpec((None, OD, C, L), lambda n: (n, 0, 0, 0)),
        ),
        compiler_params=pltpu.CompilerParams(
            dimension_semantics=("parallel",),
            vmem_limit_bytes=_VMEM_LIMIT,
        ),
    )(x3, g, b)
    return out.reshape(N, OD, C, OH, Ws)


# ------------------------------ model parameters / fwd ----------------------------- #

def init_params(key, in_channels, num_downsample_layers, base_channels):
    layer_channels = [base_channels << min(i, 3) for i in range(num_downsample_layers + 1)]
    keys = jax.random.split(key, 2 * (num_downsample_layers + 2))
    ki = 0
    params = {}
    # InputConv3D(in_channels, C0, (3,4,4), stride=2)  (has bias)
    params["conv0_w"] = 0.05 * jax.random.normal(
        keys[ki], (layer_channels[0], in_channels, 3, 4, 4), jnp.float32); ki += 1
    params["conv0_b"] = 0.05 * jax.random.normal(
        keys[ki], (layer_channels[0],), jnp.float32); ki += 1
    for i in range(1, num_downsample_layers + 1):
        # Conv3d(C_{i-1}, C_i, (3,4,4), stride, padding=1, bias=False)
        params[f"conv{i}_w"] = 0.05 * jax.random.normal(
            keys[ki], (layer_channels[i], layer_channels[i - 1], 3, 4, 4), jnp.float32); ki += 1
        # InstanceNorm3d(C_i, affine=True): weight=1, bias=0 at init
        params[f"in{i}_g"] = jnp.ones((layer_channels[i],), jnp.float32)
        params[f"in{i}_b"] = jnp.zeros((layer_channels[i],), jnp.float32)
    # Conv3d(C_last, 1, (3,4,4), stride=1, padding=1) (has bias)
    params["conv_out_w"] = 0.05 * jax.random.normal(
        keys[ki], (1, layer_channels[-1], 3, 4, 4), jnp.float32); ki += 1
    params["conv_out_b"] = 0.05 * jax.random.normal(keys[ki], (1,), jnp.float32); ki += 1
    return params


def patch_discriminator_forward(params, x_ncdhw, num_downsample_layers):
    # one layout change at the boundary: NCDHW -> (N, D, C, H, W), bf16 activations
    y = jnp.transpose(x_ncdhw, (0, 2, 1, 3, 4)).astype(jnp.bfloat16)
    # InputConv3D + LeakyReLU(0.2) (activation fused into the conv epilogue)
    y, ow = conv3d_pallas(y, params["conv0_w"], params["conv0_b"],
                          stride=(2, 2, 2), padding=(1, 1, 1), apply_act=True)
    # downsample blocks: Conv3d(no bias) -> InstanceNorm3d(affine) -> LeakyReLU(0.2)
    for i in range(1, num_downsample_layers + 1):
        s = 2 if i < num_downsample_layers else 1
        y, ow_new = conv3d_pallas(y[..., :ow], params[f"conv{i}_w"], None,
                                  stride=(s, s, s), padding=(1, 1, 1), apply_act=False)
        y = instance_norm_lrelu_pallas(y, ow_new, params[f"in{i}_g"], params[f"in{i}_b"],
                                       eps=1e-5, neg_slope=0.2)
        ow = ow_new
    # final patch-logit conv (stride 1, padding 1, with bias, no activation), f32 logits
    y, ow = conv3d_pallas(y[..., :ow], params["conv_out_w"], params["conv_out_b"],
                          stride=(1, 1, 1), padding=(1, 1, 1), apply_act=False,
                          out_dtype=jnp.float32)
    y = y[..., :ow]                                   # drop row-wrap garbage columns
    return jnp.transpose(y, (0, 2, 1, 3, 4))          # (N, 1, D', H', W')


# ----------------------------- pure-JAX f32 reference ------------------------------ #

def _reference_forward(params, x, num_downsample_layers):
    def conv3d(x, w, b, stride, padding):
        out = lax.conv_general_dilated(
            x, w, window_strides=stride, padding=[(p, p) for p in padding],
            dimension_numbers=("NCDHW", "OIDHW", "NCDHW"))
        if b is not None:
            out = out + b.reshape(1, -1, 1, 1, 1)
        return out

    def lrelu(v):
        return jnp.where(v >= 0, v, 0.2 * v)

    def inorm(v, g, b, eps=1e-5):
        m = v.mean(axis=(2, 3, 4), keepdims=True)
        var = ((v - m) ** 2).mean(axis=(2, 3, 4), keepdims=True)
        return (v - m) * lax.rsqrt(var + eps) * g.reshape(1, -1, 1, 1, 1) \
            + b.reshape(1, -1, 1, 1, 1)

    y = lrelu(conv3d(x, params["conv0_w"], params["conv0_b"], (2, 2, 2), (1, 1, 1)))
    for i in range(1, num_downsample_layers + 1):
        s = 2 if i < num_downsample_layers else 1
        y = conv3d(y, params[f"conv{i}_w"], None, (s, s, s), (1, 1, 1))
        y = lrelu(inorm(y, params[f"in{i}_g"], params[f"in{i}_b"]))
    return conv3d(y, params["conv_out_w"], params["conv_out_b"], (1, 1, 1), (1, 1, 1))


if __name__ == "__main__":
    in_channels, num_downsample_layers, base_channels = 4, 2, 8
    key = jax.random.PRNGKey(0)
    kx, kp = jax.random.split(key)
    x = jax.random.normal(kx, (2, in_channels, 8, 16, 16), jnp.float32)  # NCDHW
    params = init_params(kp, in_channels, num_downsample_layers, base_channels)

    fwd = jax.jit(functools.partial(patch_discriminator_forward,
                                    num_downsample_layers=num_downsample_layers))
    out = fwd(params, x)
    jax.block_until_ready(out)
    assert out.shape == (2, 1, 2, 2, 2), out.shape
    assert bool(jnp.all(jnp.isfinite(out)))

    # loose numeric check vs a pure-JAX f32 reference (kernel activations are bf16)
    ref = _reference_forward(params, x, num_downsample_layers)
    max_err = float(jnp.max(jnp.abs(out - ref)))
    assert max_err < 0.3, max_err
    print("KERNEL_OK")
</pallas_src>

<mosaic_0001>
module attributes {stable_mosaic.version = 11 : i64} {
  func.func @_conv_plane_kernel(%arg0: i32, %arg1: i32, %arg2: i32, %arg3: memref<1x4x8x82xbf16, #tpu.memory_space<vmem>>, %arg4: memref<3x8x128xbf16, #tpu.memory_space<vmem>>, %arg5: memref<8x1xf32, #tpu.memory_space<vmem>>, %arg6: memref<1x72xf32, #tpu.memory_space<vmem>>, %arg7: memref<1x8x72xbf16, #tpu.memory_space<vmem>>, %arg8: memref<8x72xf32, #tpu.memory_space<vmem>>, %arg9: memref<128x72xbf16, #tpu.memory_space<vmem>>) attributes {dimension_semantics = [#tpu.dimension_semantics<parallel>, #tpu.dimension_semantics<parallel>, #tpu.dimension_semantics<arbitrary>], iteration_bounds = array<i64: 2, 4, 3>, scalar_prefetch = 0 : i64, scratch_operands = 2 : i64, tpu.core_type = #tpu.core_type<tc>, window_params = [{transform_indices = @transform_0, window_bounds = array<i64: 1, 4, 8, 82>}, {pipeline_mode = #tpu.pipeline_mode<synchronous>, transform_indices = @transform_1, window_bounds = array<i64: 3, 8, 128>}, {pipeline_mode = #tpu.pipeline_mode<synchronous>, transform_indices = @transform_2, window_bounds = array<i64: 8, 1>}, {pipeline_mode = #tpu.pipeline_mode<synchronous>, transform_indices = @transform_3, window_bounds = array<i64: 1, 72>}, {transform_indices = @transform_4, window_bounds = array<i64: 1, 8, 72>}]} {
    %c0_i32 = arith.constant 0 : i32
    %0 = arith.cmpi eq, %arg2, %c0_i32 : i32
    %1 = arith.extui %0 : i1 to i32
    %c0_i32_0 = arith.constant 0 : i32
    %2 = arith.cmpi ne, %1, %c0_i32_0 : i32
    scf.if %2 {
      %cst_85 = arith.constant 0.000000e+00 : f32
      %62 = vector.broadcast %cst_85 : f32 to vector<8x72xf32>
      %c0_86 = arith.constant 0 : index
      %c0_87 = arith.constant 0 : index
      %63 = vector.load %arg8[%c0_86, %c0_87] : memref<8x72xf32, #tpu.memory_space<vmem>>, vector<8x72xf32>
      tpu.vector_store %arg8[%c0_86, %c0_87], %62 {strides = array<i32>} : memref<8x72xf32, #tpu.memory_space<vmem>>, vector<8x72xf32>,
    } else {
    }
    %c0 = arith.constant 0 : index
    %c0_1 = arith.constant 0 : index
    %c0_2 = arith.constant 0 : index
    %c0_3 = arith.constant 0 : index
    %3 = vector.load %arg3[%c0, %c0_1, %c0_2, %c0_3] : memref<1x4x8x82xbf16, #tpu.memory_space<vmem>>, vector<1x1x8x72xbf16>
    %4 = vector.shape_cast %3 : vector<1x1x8x72xbf16> to vector<8x72xbf16>
    %c0_4 = arith.constant 0 : index
    %c0_5 = arith.constant 0 : index
    %5 = vector.load %arg9[%c0_4, %c0_5] : memref<128x72xbf16, #tpu.memory_space<vmem>>, vector<8x72xbf16>
    tpu.vector_store %arg9[%c0_4, %c0_5], %4 {strides = array<i32>} : memref<128x72xbf16, #tpu.memory_space<vmem>>, vector<8x72xbf16>,
    %c0_6 = arith.constant 0 : index
    %c1 = arith.constant 1 : index
    %c0_7 = arith.constant 0 : index
    %c0_8 = arith.constant 0 : index
    %6 = vector.load %arg3[%c0_6, %c1, %c0_7, %c0_8] : memref<1x4x8x82xbf16, #tpu.memory_space<vmem>>, vector<1x1x8x72xbf16>
    %7 = vector.shape_cast %6 : vector<1x1x8x72xbf16> to vector<8x72xbf16>
    %c8 = arith.constant 8 : index
    %c0_9 = arith.constant 0 : index
    %8 = vector.load %arg9[%c8, %c0_9] : memref<128x72xbf16, #tpu.memory_space<vmem>>, vector<8x72xbf16>
    tpu.vector_store %arg9[%c8, %c0_9], %7 {strides = array<i32>} : memref<128x72xbf16, #tpu.memory_space<vmem>>, vector<8x72xbf16>,
    %c0_10 = arith.constant 0 : index
    %c0_11 = arith.constant 0 : index
    %c0_12 = arith.constant 0 : index
    %c1_13 = arith.constant 1 : index
    %9 = vector.load %arg3[%c0_10, %c0_11, %c0_12, %c1_13] : memref<1x4x8x82xbf16, #tpu.memory_space<vmem>>, vector<1x1x8x72xbf16>
    %10 = vector.shape_cast %9 : vector<1x1x8x72xbf16> to vector<8x72xbf16>
    %c16 = arith.constant 16 : index
    %c0_14 = arith.constant 0 : index
    %11 = vector.load %arg9[%c16, %c0_14] : memref<128x72xbf16, #tpu.memory_space<vmem>>, vector<8x72xbf16>
    tpu.vector_store %arg9[%c16, %c0_14], %10 {strides = array<i32>} : memref<128x72xbf16, #tpu.memory_space<vmem>>, vector<8x72xbf16>,
    %c0_15 = arith.constant 0 : index
    %c1_16 = arith.constant 1 : index
    %c0_17 = arith.constant 0 : index
    %c1_18 = arith.constant 1 : index
    %12 = vector.load %arg3[%c0_15, %c1_16, %c0_17, %c1_18] : memref<1x4x8x82xbf16, #tpu.memory_space<vmem>>, vector<1x1x8x72xbf16>
    %13 = vector.shape_cast %12 : vector<1x1x8x72xbf16> to vector<8x72xbf16>
    %c24 = arith.constant 24 : index
    %c0_19 = arith.constant 0 : index
    %14 = vector.load %arg9[%c24, %c0_19] : memref<128x72xbf16, #tpu.memory_space<vmem>>, vector<8x72xbf16>
    tpu.vector_store %arg9[%c24, %c0_19], %13 {strides = array<i32>} : memref<128x72xbf16, #tpu.memory_space<vmem>>, vector<8x72xbf16>,
    %c0_20 = arith.constant 0 : index
    %c2 = arith.constant 2 : index
    %c0_21 = arith.constant 0 : index
    %c0_22 = arith.constant 0 : index
    %15 = vector.load %arg3[%c0_20, %c2, %c0_21, %c0_22] : memref<1x4x8x82xbf16, #tpu.memory_space<vmem>>, vector<1x1x8x72xbf16>
    %16 = vector.shape_cast %15 : vector<1x1x8x72xbf16> to vector<8x72xbf16>
    %c32 = arith.constant 32 : index
    %c0_23 = arith.constant 0 : index
    %17 = vector.load %arg9[%c32, %c0_23] : memref<128x72xbf16, #tpu.memory_space<vmem>>, vector<8x72xbf16>
    tpu.vector_store %arg9[%c32, %c0_23], %16 {strides = array<i32>} : memref<128x72xbf16, #tpu.memory_space<vmem>>, vector<8x72xbf16>,
    %c0_24 = arith.constant 0 : index
    %c3 = arith.constant 3 : index
    %c0_25 = arith.constant 0 : index
    %c0_26 = arith.constant 0 : index
    %18 = vector.load %arg3[%c0_24, %c3, %c0_25, %c0_26] : memref<1x4x8x82xbf16, #tpu.memory_space<vmem>>, vector<1x1x8x72xbf16>
    %19 = vector.shape_cast %18 : vector<1x1x8x72xbf16> to vector<8x72xbf16>
    %c40 = arith.constant 40 : index
    %c0_27 = arith.constant 0 : index
    %20 = vector.load %arg9[%c40, %c0_27] : memref<128x72xbf16, #tpu.memory_space<vmem>>, vector<8x72xbf16>
    tpu.vector_store %arg9[%c40, %c0_27], %19 {strides = array<i32>} : memref<128x72xbf16, #tpu.memory_space<vmem>>, vector<8x72xbf16>,
    %c0_28 = arith.constant 0 : index
    %c2_29 = arith.constant 2 : index
    %c0_30 = arith.constant 0 : index
    %c1_31 = arith.constant 1 : index
    %21 = vector.load %arg3[%c0_28, %c2_29, %c0_30, %c1_31] : memref<1x4x8x82xbf16, #tpu.memory_space<vmem>>, vector<1x1x8x72xbf16>
    %22 = vector.shape_cast %21 : vector<1x1x8x72xbf16> to vector<8x72xbf16>
    %c48 = arith.constant 48 : index
    %c0_32 = arith.constant 0 : index
    %23 = vector.load %arg9[%c48, %c0_32] : memref<128x72xbf16, #tpu.memory_space<vmem>>, vector<8x72xbf16>
    tpu.vector_store %arg9[%c48, %c0_32], %22 {strides = array<i32>} : memref<128x72xbf16, #tpu.memory_space<vmem>>, vector<8x72xbf16>,
    %c0_33 = arith.constant 0 : index
    %c3_34 = arith.constant 3 : index
    %c0_35 = arith.constant 0 : index
    %c1_36 = arith.constant 1 : index
    %24 = vector.load %arg3[%c0_33, %c3_34, %c0_35, %c1_36] : memref<1x4x8x82xbf16, #tpu.memory_space<vmem>>, vector<1x1x8x72xbf16>
    %25 = vector.shape_cast %24 : vector<1x1x8x72xbf16> to vector<8x72xbf16>
    %c56 = arith.constant 56 : index
    %c0_37 = arith.constant 0 : index
    %26 = vector.load %arg9[%c56, %c0_37] : memref<128x72xbf16, #tpu.memory_space<vmem>>, vector<8x72xbf16>
    tpu.vector_store %arg9[%c56, %c0_37], %25 {strides = array<i32>} : memref<128x72xbf16, #tpu.memory_space<vmem>>, vector<8x72xbf16>,
    %c0_38 = arith.constant 0 : index
    %c0_39 = arith.constant 0 : index
    %c0_40 = arith.constant 0 : index
    %c9 = arith.constant 9 : index
    %27 = vector.load %arg3[%c0_38, %c0_39, %c0_40, %c9] : memref<1x4x8x82xbf16, #tpu.memory_space<vmem>>, vector<1x1x8x72xbf16>
    %28 = vector.shape_cast %27 : vector<1x1x8x72xbf16> to vector<8x72xbf16>
    %c64 = arith.constant 64 : index
    %c0_41 = arith.constant 0 : index
    %29 = vector.load %arg9[%c64, %c0_41] : memref<128x72xbf16, #tpu.memory_space<vmem>>, vector<8x72xbf16>
    tpu.vector_store %arg9[%c64, %c0_41], %28 {strides = array<i32>} : memref<128x72xbf16, #tpu.memory_space<vmem>>, vector<8x72xbf16>,
    %c0_42 = arith.constant 0 : index
    %c1_43 = arith.constant 1 : index
    %c0_44 = arith.constant 0 : index
    %c9_45 = arith.constant 9 : index
    %30 = vector.load %arg3[%c0_42, %c1_43, %c0_44, %c9_45] : memref<1x4x8x82xbf16, #tpu.memory_space<vmem>>, vector<1x1x8x72xbf16>
    %31 = vector.shape_cast %30 : vector<1x1x8x72xbf16> to vector<8x72xbf16>
    %c72 = arith.constant 72 : index
    %c0_46 = arith.constant 0 : index
    %32 = vector.load %arg9[%c72, %c0_46] : memref<128x72xbf16, #tpu.memory_space<vmem>>, vector<8x72xbf16>
    tpu.vector_store %arg9[%c72, %c0_46], %31 {strides = array<i32>} : memref<128x72xbf16, #tpu.memory_space<vmem>>, vector<8x72xbf16>,
    %c0_47 = arith.constant 0 : index
    %c0_48 = arith.constant 0 : index
    %c0_49 = arith.constant 0 : index
    %c10 = arith.constant 10 : index
    %33 = vector.load %arg3[%c0_47, %c0_48, %c0_49, %c10] : memref<1x4x8x82xbf16, #tpu.memory_space<vmem>>, vector<1x1x8x72xbf16>
    %34 = vector.shape_cast %33 : vector<1x1x8x72xbf16> to vector<8x72xbf16>
    %c80 = arith.constant 80 : index
    %c0_50 = arith.constant 0 : index
    %35 = vector.load %arg9[%c80, %c0_50] : memref<128x72xbf16, #tpu.memory_space<vmem>>, vector<8x72xbf16>
    tpu.vector_store %arg9[%c80, %c0_50], %34 {strides = array<i32>} : memref<128x72xbf16, #tpu.memory_space<vmem>>, vector<8x72xbf16>,
    %c0_51 = arith.constant 0 : index
    %c1_52 = arith.constant 1 : index
    %c0_53 = arith.constant 0 : index
    %c10_54 = arith.constant 10 : index
    %36 = vector.load %arg3[%c0_51, %c1_52, %c0_53, %c10_54] : memref<1x4x8x82xbf16, #tpu.memory_space<vmem>>, vector<1x1x8x72xbf16>
    %37 = vector.shape_cast %36 : vector<1x1x8x72xbf16> to vector<8x72xbf16>
    %c88 = arith.constant 88 : index
    %c0_55 = arith.constant 0 : index
    %38 = vector.load %arg9[%c88, %c0_55] : memref<128x72xbf16, #tpu.memory_space<vmem>>, vector<8x72xbf16>
    tpu.vector_store %arg9[%c88, %c0_55], %37 {strides = array<i32>} : memref<128x72xbf16, #tpu.memory_space<vmem>>, vector<8x72xbf16>,
    %c0_56 = arith.constant 0 : index
    %c2_57 = arith.constant 2 : index
    %c0_58 = arith.constant 0 : index
    %c9_59 = arith.constant 9 : index
    %39 = vector.load %arg3[%c0_56, %c2_57, %c0_58, %c9_59] : memref<1x4x8x82xbf16, #tpu.memory_space<vmem>>, vector<1x1x8x72xbf16>
    %40 = vector.shape_cast %39 : vector<1x1x8x72xbf16> to vector<8x72xbf16>
    %c96 = arith.constant 96 : index
    %c0_60 = arith.constant 0 : index
    %41 = vector.load %arg9[%c96, %c0_60] : memref<128x72xbf16, #tpu.memory_space<vmem>>, vector<8x72xbf16>
    tpu.vector_store %arg9[%c96, %c0_60], %40 {strides = array<i32>} : memref<128x72xbf16, #tpu.memory_space<vmem>>, vector<8x72xbf16>,
    %c0_61 = arith.constant 0 : index
    %c3_62 = arith.constant 3 : index
    %c0_63 = arith.constant 0 : index
    %c9_64 = arith.constant 9 : index
    %42 = vector.load %arg3[%c0_61, %c3_62, %c0_63, %c9_64] : memref<1x4x8x82xbf16, #tpu.memory_space<vmem>>, vector<1x1x8x72xbf16>
    %43 = vector.shape_cast %42 : vector<1x1x8x72xbf16> to vector<8x72xbf16>
    %c104 = arith.constant 104 : index
    %c0_65 = arith.constant 0 : index
    %44 = vector.load %arg9[%c104, %c0_65] : memref<128x72xbf16, #tpu.memory_space<vmem>>, vector<8x72xbf16>
    tpu.vector_store %arg9[%c104, %c0_65], %43 {strides = array<i32>} : memref<128x72xbf16, #tpu.memory_space<vmem>>, vector<8x72xbf16>,
    %c0_66 = arith.constant 0 : index
    %c2_67 = arith.constant 2 : index
    %c0_68 = arith.constant 0 : index
    %c10_69 = arith.constant 10 : index
    %45 = vector.load %arg3[%c0_66, %c2_67, %c0_68, %c10_69] : memref<1x4x8x82xbf16, #tpu.memory_space<vmem>>, vector<1x1x8x72xbf16>
    %46 = vector.shape_cast %45 : vector<1x1x8x72xbf16> to vector<8x72xbf16>
    %c112 = arith.constant 112 : index
    %c0_70 = arith.constant 0 : index
    %47 = vector.load %arg9[%c112, %c0_70] : memref<128x72xbf16, #tpu.memory_space<vmem>>, vector<8x72xbf16>
    tpu.vector_store %arg9[%c112, %c0_70], %46 {strides = array<i32>} : memref<128x72xbf16, #tpu.memory_space<vmem>>, vector<8x72xbf16>,
    %c0_71 = arith.constant 0 : index
    %c3_72 = arith.constant 3 : index
    %c0_73 = arith.constant 0 : index
    %c10_74 = arith.constant 10 : index
    %48 = vector.load %arg3[%c0_71, %c3_72, %c0_73, %c10_74] : memref<1x4x8x82xbf16, #tpu.memory_space<vmem>>, vector<1x1x8x72xbf16>
    %49 = vector.shape_cast %48 : vector<1x1x8x72xbf16> to vector<8x72xbf16>
    %c120 = arith.constant 120 : index
    %c0_75 = arith.constant 0 : index
    %50 = vector.load %arg9[%c120, %c0_75] : memref<128x72xbf16, #tpu.memory_space<vmem>>, vector<8x72xbf16>
    tpu.vector_store %arg9[%c120, %c0_75], %49 {strides = array<i32>} : memref<128x72xbf16, #tpu.memory_space<vmem>>, vector<8x72xbf16>,
    %c0_76 = arith.constant 0 : index
    %c0_77 = arith.constant 0 : index
    %51 = vector.load %arg8[%c0_76, %c0_77] : memref<8x72xf32, #tpu.memory_space<vmem>>, vector<8x72xf32>
    %52 = arith.index_cast %arg2 : i32 to index
    %c0_78 = arith.constant 0 : index
    %c0_79 = arith.constant 0 : index
    %53 = vector.load %arg4[%52, %c0_78, %c0_79] : memref<3x8x128xbf16, #tpu.memory_space<vmem>>, vector<1x8x128xbf16>
    %54 = vector.shape_cast %53 : vector<1x8x128xbf16> to vector<8x128xbf16>
    %c0_80 = arith.constant 0 : index
    %c0_81 = arith.constant 0 : index
    %55 = vector.load %arg9[%c0_80, %c0_81] : memref<128x72xbf16, #tpu.memory_space<vmem>>, vector<128x72xbf16>
    %cst = arith.constant dense<0.000000e+00> : vector<8x72xf32>
    %56 = tpu.matmul %54, %55, %cst {dimension_numbers = #tpu.dot_dimension_numbers<[1], [0], [0], [1], [0, 0, 1, 1], [], []>} : vector<8x128xbf16>, vector<128x72xbf16>, vector<8x72xf32> -> vector<8x72xf32>
    %57 = arith.addf %51, %56 : vector<8x72xf32>
    %c0_82 = arith.constant 0 : index
    %c0_83 = arith.constant 0 : index
    %58 = vector.load %arg8[%c0_82, %c0_83] : memref<8x72xf32, #tpu.memory_space<vmem>>, vector<8x72xf32>
    tpu.vector_store %arg8[%c0_82, %c0_83], %57 {strides = array<i32>} : memref<8x72xf32, #tpu.memory_space<vmem>>, vector<8x72xf32>,
    %c2_i32 = arith.constant 2 : i32
    %59 = arith.cmpi eq, %arg2, %c2_i32 : i32
    %60 = arith.extui %59 : i1 to i32
    %c0_i32_84 = arith.constant 0 : i32
    %61 = arith.cmpi ne, %60, %c0_i32_84 : i32
    scf.if %61 {
      %c0_85 = arith.constant 0 : index
      %c0_86 = arith.constant 0 : index
      %62 = vector.load %arg8[%c0_85, %c0_86] : memref<8x72xf32, #tpu.memory_space<vmem>>, vector<8x72xf32>
      %c0_87 = arith.constant 0 : index
      %c0_88 = arith.constant 0 : index
      %63 = vector.load %arg5[%c0_87, %c0_88] : memref<8x1xf32, #tpu.memory_space<vmem>>, vector<8x1xf32>
      %64 = vector.broadcast %63 : vector<8x1xf32> to vector<8x72xf32>
      %65 = arith.addf %62, %64 : vector<8x72xf32>
      %cst_89 = arith.constant 0.000000e+00 : f32
      %66 = vector.broadcast %cst_89 : f32 to vector<8x72xf32>
      %67 = arith.cmpf oge, %65, %66 : vector<8x72xf32>
      %cst_90 = arith.constant 2.000000e-01 : f32
      %68 = vector.broadcast %cst_90 : f32 to vector<8x72xf32>
      %69 = arith.mulf %68, %65 : vector<8x72xf32>
      %70 = arith.select %67, %65, %69 : vector<8x72xi1>, vector<8x72xf32>
      %c0_91 = arith.constant 0 : index
      %c0_92 = arith.constant 0 : index
      %71 = vector.load %arg6[%c0_91, %c0_92] : memref<1x72xf32, #tpu.memory_space<vmem>>, vector<1x72xf32>
      %72 = vector.broadcast %71 : vector<1x72xf32> to vector<8x72xf32>
      %73 = arith.mulf %70, %72 : vector<8x72xf32>
      %74 = arith.truncf %73 : vector<8x72xf32> to vector<8x72xbf16>
      %c0_93 = arith.constant 0 : index
      %c0_94 = arith.constant 0 : index
      %c0_95 = arith.constant 0 : index
      %75 = vector.load %arg7[%c0_93, %c0_94, %c0_95] : memref<1x8x72xbf16, #tpu.memory_space<vmem>>, vector<1x8x72xbf16>
      %76 = vector.shape_cast %75 : vector<1x8x72xbf16> to vector<8x72xbf16>
      %77 = vector.shape_cast %74 : vector<8x72xbf16> to vector<1x8x72xbf16>
      tpu.vector_store %arg7[%c0_93, %c0_94, %c0_95], %77 {strides = array<i32>} : memref<1x8x72xbf16, #tpu.memory_space<vmem>>, vector<1x8x72xbf16>,
    } else {
    }
    return
  }
  func.func @transform_0(%arg0: i32, %arg1: i32, %arg2: i32) -> (i32, i32, i32, i32) {
    %c10_i32 = arith.constant 10 : i32
    %0 = arith.muli %arg0, %c10_i32 : i32
    %c2_i32 = arith.constant 2 : i32
    %1 = arith.muli %arg1, %c2_i32 : i32
    %2 = arith.addi %0, %1 : i32
    %3 = arith.addi %2, %arg2 : i32
    %c0_i32 = arith.constant 0 : i32
    %c0_i32_0 = arith.constant 0 : i32
    %c0_i32_1 = arith.constant 0 : i32
    %c0_i32_2 = arith.constant 0 : i32
    return %3, %c0_i32, %c0_i32_0, %c0_i32_1 : i32, i32, i32, i32
  }
  func.func @transform_1(%arg0: i32, %arg1: i32, %arg2: i32) -> (i32, i32, i32) {
    %c0_i32 = arith.constant 0 : i32
    %c0_i32_0 = arith.constant 0 : i32
    %c0_i32_1 = arith.constant 0 : i32
    %c0_i32_2 = arith.constant 0 : i32
    return %c0_i32, %c0_i32_0, %c0_i32_1 : i32, i32, i32
  }
  func.func @transform_2(%arg0: i32, %arg1: i32, %arg2: i32) -> (i32, i32) {
    %c0_i32 = arith.constant 0 : i32
    %c0_i32_0 = arith.constant 0 : i32
    %c0_i32_1 = arith.constant 0 : i32
    return %c0_i32, %c0_i32_0 : i32, i32
  }
  func.func @transform_3(%arg0: i32, %arg1: i32, %arg2: i32) -> (i32, i32) {
    %c0_i32 = arith.constant 0 : i32
    %c0_i32_0 = arith.constant 0 : i32
    %c0_i32_1 = arith.constant 0 : i32
    return %c0_i32, %c0_i32_0 : i32, i32
  }
  func.func @transform_4(%arg0: i32, %arg1: i32, %arg2: i32) -> (i32, i32, i32) {
    %c4_i32 = arith.constant 4 : i32
    %0 = arith.muli %arg0, %c4_i32 : i32
    %1 = arith.addi %0, %arg1 : i32
    %c0_i32 = arith.constant 0 : i32
    %c0_i32_0 = arith.constant 0 : i32
    %c0_i32_1 = arith.constant 0 : i32
    return %1, %c0_i32, %c0_i32_0 : i32, i32, i32
  }
}

module attributes {stable_mosaic.version = 11 : i64} {
  func.func @_conv_plane_kernel(%arg0: i32, %arg1: i32, %arg2: i32, %arg3: memref<1x4x8x26xbf16, #tpu.memory_space<vmem>>, %arg4: memref<3x16x128xbf16, #tpu.memory_space<vmem>>, %arg5: memref<16x1xf32, #tpu.memory_space<vmem>>, %arg6: memref<1x20xf32, #tpu.memory_space<vmem>>, %arg7: memref<1x16x20xbf16, #tpu.memory_space<vmem>>, %arg8: memref<16x20xf32, #tpu.memory_space<vmem>>, %arg9: memref<128x20xbf16, #tpu.memory_space<vmem>>) attributes {dimension_semantics = [#tpu.dimension_semantics<parallel>, #tpu.dimension_semantics<parallel>, #tpu.dimension_semantics<arbitrary>], iteration_bounds = array<i64: 2, 2, 3>, scalar_prefetch = 0 : i64, scratch_operands = 2 : i64, tpu.core_type = #tpu.core_type<tc>, window_params = [{transform_indices = @transform_0, window_bounds = array<i64: 1, 4, 8, 26>}, {pipeline_mode = #tpu.pipeline_mode<synchronous>, transform_indices = @transform_1, window_bounds = array<i64: 3, 16, 128>}, {pipeline_mode = #tpu.pipeline_mode<synchronous>, transform_indices = @transform_2, window_bounds = array<i64: 16, 1>}, {pipeline_mode = #tpu.pipeline_mode<synchronous>, transform_indices = @transform_3, window_bounds = array<i64: 1, 20>}, {transform_indices = @transform_4, window_bounds = array<i64: 1, 16, 20>}]} {
    %c0_i32 = arith.constant 0 : i32
    %0 = arith.cmpi eq, %arg2, %c0_i32 : i32
    %1 = arith.extui %0 : i1 to i32
    %c0_i32_0 = arith.constant 0 : i32
    %2 = arith.cmpi ne, %1, %c0_i32_0 : i32
    scf.if %2 {
      %cst_85 = arith.constant 0.000000e+00 : f32
      %62 = vector.broadcast %cst_85 : f32 to vector<16x20xf32>
      %c0_86 = arith.constant 0 : index
      %c0_87 = arith.constant 0 : index
      %63 = vector.load %arg8[%c0_86, %c0_87] : memref<16x20xf32, #tpu.memory_space<vmem>>, vector<16x20xf32>
      tpu.vector_store %arg8[%c0_86, %c0_87], %62 {strides = array<i32>} : memref<16x20xf32, #tpu.memory_space<vmem>>, vector<16x20xf32>,
    } else {
    }
    %c0 = arith.constant 0 : index
    %c0_1 = arith.constant 0 : index
    %c0_2 = arith.constant 0 : index
    %c0_3 = arith.constant 0 : index
    %3 = vector.load %arg3[%c0, %c0_1, %c0_2, %c0_3] : memref<1x4x8x26xbf16, #tpu.memory_space<vmem>>, vector<1x1x8x20xbf16>
    %4 = vector.shape_cast %3 : vector<1x1x8x20xbf16> to vector<8x20xbf16>
    %c0_4 = arith.constant 0 : index
    %c0_5 = arith.constant 0 : index
    %5 = vector.load %arg9[%c0_4, %c0_5] : memref<128x20xbf16, #tpu.memory_space<vmem>>, vector<8x20xbf16>
    tpu.vector_store %arg9[%c0_4, %c0_5], %4 {strides = array<i32>} : memref<128x20xbf16, #tpu.memory_space<vmem>>, vector<8x20xbf16>,
    %c0_6 = arith.constant 0 : index
    %c1 = arith.constant 1 : index
    %c0_7 = arith.constant 0 : index
    %c0_8 = arith.constant 0 : index
    %6 = vector.load %arg3[%c0_6, %c1, %c0_7, %c0_8] : memref<1x4x8x26xbf16, #tpu.memory_space<vmem>>, vector<1x1x8x20xbf16>
    %7 = vector.shape_cast %6 : vector<1x1x8x20xbf16> to vector<8x20xbf16>
    %c8 = arith.constant 8 : index
    %c0_9 = arith.constant 0 : index
    %8 = vector.load %arg9[%c8, %c0_9] : memref<128x20xbf16, #tpu.memory_space<vmem>>, vector<8x20xbf16>
    tpu.vector_store %arg9[%c8, %c0_9], %7 {strides = array<i32>} : memref<128x20xbf16, #tpu.memory_space<vmem>>, vector<8x20xbf16>,
    %c0_10 = arith.constant 0 : index
    %c0_11 = arith.constant 0 : index
    %c0_12 = arith.constant 0 : index
    %c1_13 = arith.constant 1 : index
    %9 = vector.load %arg3[%c0_10, %c0_11, %c0_12, %c1_13] : memref<1x4x8x26xbf16, #tpu.memory_space<vmem>>, vector<1x1x8x20xbf16>
    %10 = vector.shape_cast %9 : vector<1x1x8x20xbf16> to vector<8x20xbf16>
    %c16 = arith.constant 16 : index
    %c0_14 = arith.constant 0 : index
    %11 = vector.load %arg9[%c16, %c0_14] : memref<128x20xbf16, #tpu.memory_space<vmem>>, vector<8x20xbf16>
    tpu.vector_store %arg9[%c16, %c0_14], %10 {strides = array<i32>} : memref<128x20xbf16, #tpu.memory_space<vmem>>, vector<8x20xbf16>,
    %c0_15 = arith.constant 0 : index
    %c1_16 = arith.constant 1 : index
    %c0_17 = arith.constant 0 : index
    %c1_18 = arith.constant 1 : index
    %12 = vector.load %arg3[%c0_15, %c1_16, %c0_17, %c1_18] : memref<1x4x8x26xbf16, #tpu.memory_space<vmem>>, vector<1x1x8x20xbf16>
    %13 = vector.shape_cast %12 : vector<1x1x8x20xbf16> to vector<8x20xbf16>
    %c24 = arith.constant 24 : index
    %c0_19 = arith.constant 0 : index
    %14 = vector.load %arg9[%c24, %c0_19] : memref<128x20xbf16, #tpu.memory_space<vmem>>, vector<8x20xbf16>
    tpu.vector_store %arg9[%c24, %c0_19], %13 {strides = array<i32>} : memref<128x20xbf16, #tpu.memory_space<vmem>>, vector<8x20xbf16>,
    %c0_20 = arith.constant 0 : index
    %c2 = arith.constant 2 : index
    %c0_21 = arith.constant 0 : index
    %c0_22 = arith.constant 0 : index
    %15 = vector.load %arg3[%c0_20, %c2, %c0_21, %c0_22] : memref<1x4x8x26xbf16, #tpu.memory_space<vmem>>, vector<1x1x8x20xbf16>
    %16 = vector.shape_cast %15 : vector<1x1x8x20xbf16> to vector<8x20xbf16>
    %c32 = arith.constant 32 : index
    %c0_23 = arith.constant 0 : index
    %17 = vector.load %arg9[%c32, %c0_23] : memref<128x20xbf16, #tpu.memory_space<vmem>>, vector<8x20xbf16>
    tpu.vector_store %arg9[%c32, %c0_23], %16 {strides = array<i32>} : memref<128x20xbf16, #tpu.memory_space<vmem>>, vector<8x20xbf16>,
    %c0_24 = arith.constant 0 : index
    %c3 = arith.constant 3 : index
    %c0_25 = arith.constant 0 : index
    %c0_26 = arith.constant 0 : index
    %18 = vector.load %arg3[%c0_24, %c3, %c0_25, %c0_26] : memref<1x4x8x26xbf16, #tpu.memory_space<vmem>>, vector<1x1x8x20xbf16>
    %19 = vector.shape_cast %18 : vector<1x1x8x20xbf16> to vector<8x20xbf16>
    %c40 = arith.constant 40 : index
    %c0_27 = arith.constant 0 : index
    %20 = vector.load %arg9[%c40, %c0_27] : memref<128x20xbf16, #tpu.memory_space<vmem>>, vector<8x20xbf16>
    tpu.vector_store %arg9[%c40, %c0_27], %19 {strides = array<i32>} : memref<128x20xbf16, #tpu.memory_space<vmem>>, vector<8x20xbf16>,
    %c0_28 = arith.constant 0 : index
    %c2_29 = arith.constant 2 : index
    %c0_30 = arith.constant 0 : index
    %c1_31 = arith.constant 1 : index
    %21 = vector.load %arg3[%c0_28, %c2_29, %c0_30, %c1_31] : memref<1x4x8x26xbf16, #tpu.memory_space<vmem>>, vector<1x1x8x20xbf16>
    %22 = vector.shape_cast %21 : vector<1x1x8x20xbf16> to vector<8x20xbf16>
    %c48 = arith.constant 48 : index
    %c0_32 = arith.constant 0 : index
    %23 = vector.load %arg9[%c48, %c0_32] : memref<128x20xbf16, #tpu.memory_space<vmem>>, vector<8x20xbf16>
    tpu.vector_store %arg9[%c48, %c0_32], %22 {strides = array<i32>} : memref<128x20xbf16, #tpu.memory_space<vmem>>, vector<8x20xbf16>,
    %c0_33 = arith.constant 0 : index
    %c3_34 = arith.constant 3 : index
    %c0_35 = arith.constant 0 : index
    %c1_36 = arith.constant 1 : index
    %24 = vector.load %arg3[%c0_33, %c3_34, %c0_35, %c1_36] : memref<1x4x8x26xbf16, #tpu.memory_space<vmem>>, vector<1x1x8x20xbf16>
    %25 = vector.shape_cast %24 : vector<1x1x8x20xbf16> to vector<8x20xbf16>
    %c56 = arith.constant 56 : index
    %c0_37 = arith.constant 0 : index
    %26 = vector.load %arg9[%c56, %c0_37] : memref<128x20xbf16, #tpu.memory_space<vmem>>, vector<8x20xbf16>
    tpu.vector_store %arg9[%c56, %c0_37], %25 {strides = array<i32>} : memref<128x20xbf16, #tpu.memory_space<vmem>>, vector<8x20xbf16>,
    %c0_38 = arith.constant 0 : index
    %c0_39 = arith.constant 0 : index
    %c0_40 = arith.constant 0 : index
    %c5 = arith.constant 5 : index
    %27 = vector.load %arg3[%c0_38, %c0_39, %c0_40, %c5] : memref<1x4x8x26xbf16, #tpu.memory_space<vmem>>, vector<1x1x8x20xbf16>
    %28 = vector.shape_cast %27 : vector<1x1x8x20xbf16> to vector<8x20xbf16>
    %c64 = arith.constant 64 : index
    %c0_41 = arith.constant 0 : index
    %29 = vector.load %arg9[%c64, %c0_41] : memref<128x20xbf16, #tpu.memory_space<vmem>>, vector<8x20xbf16>
    tpu.vector_store %arg9[%c64, %c0_41], %28 {strides = array<i32>} : memref<128x20xbf16, #tpu.memory_space<vmem>>, vector<8x20xbf16>,
    %c0_42 = arith.constant 0 : index
    %c1_43 = arith.constant 1 : index
    %c0_44 = arith.constant 0 : index
    %c5_45 = arith.constant 5 : index
    %30 = vector.load %arg3[%c0_42, %c1_43, %c0_44, %c5_45] : memref<1x4x8x26xbf16, #tpu.memory_space<vmem>>, vector<1x1x8x20xbf16>
    %31 = vector.shape_cast %30 : vector<1x1x8x20xbf16> to vector<8x20xbf16>
    %c72 = arith.constant 72 : index
    %c0_46 = arith.constant 0 : index
    %32 = vector.load %arg9[%c72, %c0_46] : memref<128x20xbf16, #tpu.memory_space<vmem>>, vector<8x20xbf16>
    tpu.vector_store %arg9[%c72, %c0_46], %31 {strides = array<i32>} : memref<128x20xbf16, #tpu.memory_space<vmem>>, vector<8x20xbf16>,
    %c0_47 = arith.constant 0 : index
    %c0_48 = arith.constant 0 : index
    %c0_49 = arith.constant 0 : index
    %c6 = arith.constant 6 : index
    %33 = vector.load %arg3[%c0_47, %c0_48, %c0_49, %c6] : memref<1x4x8x26xbf16, #tpu.memory_space<vmem>>, vector<1x1x8x20xbf16>
    %34 = vector.shape_cast %33 : vector<1x1x8x20xbf16> to vector<8x20xbf16>
    %c80 = arith.constant 80 : index
    %c0_50 = arith.constant 0 : index
    %35 = vector.load %arg9[%c80, %c0_50] : memref<128x20xbf16, #tpu.memory_space<vmem>>, vector<8x20xbf16>
    tpu.vector_store %arg9[%c80, %c0_50], %34 {strides = array<i32>} : memref<128x20xbf16, #tpu.memory_space<vmem>>, vector<8x20xbf16>,
    %c0_51 = arith.constant 0 : index
    %c1_52 = arith.constant 1 : index
    %c0_53 = arith.constant 0 : index
    %c6_54 = arith.constant 6 : index
    %36 = vector.load %arg3[%c0_51, %c1_52, %c0_53, %c6_54] : memref<1x4x8x26xbf16, #tpu.memory_space<vmem>>, vector<1x1x8x20xbf16>
    %37 = vector.shape_cast %36 : vector<1x1x8x20xbf16> to vector<8x20xbf16>
    %c88 = arith.constant 88 : index
    %c0_55 = arith.constant 0 : index
    %38 = vector.load %arg9[%c88, %c0_55] : memref<128x20xbf16, #tpu.memory_space<vmem>>, vector<8x20xbf16>
    tpu.vector_store %arg9[%c88, %c0_55], %37 {strides = array<i32>} : memref<128x20xbf16, #tpu.memory_space<vmem>>, vector<8x20xbf16>,
    %c0_56 = arith.constant 0 : index
    %c2_57 = arith.constant 2 : index
    %c0_58 = arith.constant 0 : index
    %c5_59 = arith.constant 5 : index
    %39 = vector.load %arg3[%c0_56, %c2_57, %c0_58, %c5_59] : memref<1x4x8x26xbf16, #tpu.memory_space<vmem>>, vector<1x1x8x20xbf16>
    %40 = vector.shape_cast %39 : vector<1x1x8x20xbf16> to vector<8x20xbf16>
    %c96 = arith.constant 96 : index
    %c0_60 = arith.constant 0 : index
    %41 = vector.load %arg9[%c96, %c0_60] : memref<128x20xbf16, #tpu.memory_space<vmem>>, vector<8x20xbf16>
    tpu.vector_store %arg9[%c96, %c0_60], %40 {strides = array<i32>} : memref<128x20xbf16, #tpu.memory_space<vmem>>, vector<8x20xbf16>,
    %c0_61 = arith.constant 0 : index
    %c3_62 = arith.constant 3 : index
    %c0_63 = arith.constant 0 : index
    %c5_64 = arith.constant 5 : index
    %42 = vector.load %arg3[%c0_61, %c3_62, %c0_63, %c5_64] : memref<1x4x8x26xbf16, #tpu.memory_space<vmem>>, vector<1x1x8x20xbf16>
    %43 = vector.shape_cast %42 : vector<1x1x8x20xbf16> to vector<8x20xbf16>
    %c104 = arith.constant 104 : index
    %c0_65 = arith.constant 0 : index
    %44 = vector.load %arg9[%c104, %c0_65] : memref<128x20xbf16, #tpu.memory_space<vmem>>, vector<8x20xbf16>
    tpu.vector_store %arg9[%c104, %c0_65], %43 {strides = array<i32>} : memref<128x20xbf16, #tpu.memory_space<vmem>>, vector<8x20xbf16>,
    %c0_66 = arith.constant 0 : index
    %c2_67 = arith.constant 2 : index
    %c0_68 = arith.constant 0 : index
    %c6_69 = arith.constant 6 : index
    %45 = vector.load %arg3[%c0_66, %c2_67, %c0_68, %c6_69] : memref<1x4x8x26xbf16, #tpu.memory_space<vmem>>, vector<1x1x8x20xbf16>
    %46 = vector.shape_cast %45 : vector<1x1x8x20xbf16> to vector<8x20xbf16>
    %c112 = arith.constant 112 : index
    %c0_70 = arith.constant 0 : index
    %47 = vector.load %arg9[%c112, %c0_70] : memref<128x20xbf16, #tpu.memory_space<vmem>>, vector<8x20xbf16>
    tpu.vector_store %arg9[%c112, %c0_70], %46 {strides = array<i32>} : memref<128x20xbf16, #tpu.memory_space<vmem>>, vector<8x20xbf16>,
    %c0_71 = arith.constant 0 : index
    %c3_72 = arith.constant 3 : index
    %c0_73 = arith.constant 0 : index
    %c6_74 = arith.constant 6 : index
    %48 = vector.load %arg3[%c0_71, %c3_72, %c0_73, %c6_74] : memref<1x4x8x26xbf16, #tpu.memory_space<vmem>>, vector<1x1x8x20xbf16>
    %49 = vector.shape_cast %48 : vector<1x1x8x20xbf16> to vector<8x20xbf16>
    %c120 = arith.constant 120 : index
    %c0_75 = arith.constant 0 : index
    %50 = vector.load %arg9[%c120, %c0_75] : memref<128x20xbf16, #tpu.memory_space<vmem>>, vector<8x20xbf16>
    tpu.vector_store %arg9[%c120, %c0_75], %49 {strides = array<i32>} : memref<128x20xbf16, #tpu.memory_space<vmem>>, vector<8x20xbf16>,
    %c0_76 = arith.constant 0 : index
    %c0_77 = arith.constant 0 : index
    %51 = vector.load %arg8[%c0_76, %c0_77] : memref<16x20xf32, #tpu.memory_space<vmem>>, vector<16x20xf32>
    %52 = arith.index_cast %arg2 : i32 to index
    %c0_78 = arith.constant 0 : index
    %c0_79 = arith.constant 0 : index
    %53 = vector.load %arg4[%52, %c0_78, %c0_79] : memref<3x16x128xbf16, #tpu.memory_space<vmem>>, vector<1x16x128xbf16>
    %54 = vector.shape_cast %53 : vector<1x16x128xbf16> to vector<16x128xbf16>
    %c0_80 = arith.constant 0 : index
    %c0_81 = arith.constant 0 : index
    %55 = vector.load %arg9[%c0_80, %c0_81] : memref<128x20xbf16, #tpu.memory_space<vmem>>, vector<128x20xbf16>
    %cst = arith.constant dense<0.000000e+00> : vector<16x20xf32>
    %56 = tpu.matmul %54, %55, %cst {dimension_numbers = #tpu.dot_dimension_numbers<[1], [0], [0], [1], [0, 0, 1, 1], [], []>} : vector<16x128xbf16>, vector<128x20xbf16>, vector<16x20xf32> -> vector<16x20xf32>
    %57 = arith.addf %51, %56 : vector<16x20xf32>
    %c0_82 = arith.constant 0 : index
    %c0_83 = arith.constant 0 : index
    %58 = vector.load %arg8[%c0_82, %c0_83] : memref<16x20xf32, #tpu.memory_space<vmem>>, vector<16x20xf32>
    tpu.vector_store %arg8[%c0_82, %c0_83], %57 {strides = array<i32>} : memref<16x20xf32, #tpu.memory_space<vmem>>, vector<16x20xf32>,
    %c2_i32 = arith.constant 2 : i32
    %59 = arith.cmpi eq, %arg2, %c2_i32 : i32
    %60 = arith.extui %59 : i1 to i32
    %c0_i32_84 = arith.constant 0 : i32
    %61 = arith.cmpi ne, %60, %c0_i32_84 : i32
    scf.if %61 {
      %c0_85 = arith.constant 0 : index
      %c0_86 = arith.constant 0 : index
      %62 = vector.load %arg8[%c0_85, %c0_86] : memref<16x20xf32, #tpu.memory_space<vmem>>, vector<16x20xf32>
      %c0_87 = arith.constant 0 : index
      %c0_88 = arith.constant 0 : index
      %63 = vector.load %arg5[%c0_87, %c0_88] : memref<16x1xf32, #tpu.memory_space<vmem>>, vector<16x1xf32>
      %64 = vector.broadcast %63 : vector<16x1xf32> to vector<16x20xf32>
      %65 = arith.addf %62, %64 : vector<16x20xf32>
      %c0_89 = arith.constant 0 : index
      %c0_90 = arith.constant 0 : index
      %66 = vector.load %arg6[%c0_89, %c0_90] : memref<1x20xf32, #tpu.memory_space<vmem>>, vector<1x20xf32>
      %67 = vector.broadcast %66 : vector<1x20xf32> to vector<16x20xf32>
      %68 = arith.mulf %65, %67 : vector<16x20xf32>
      %69 = arith.truncf %68 : vector<16x20xf32> to vector<16x20xbf16>
      %c0_91 = arith.constant 0 : index
      %c0_92 = arith.constant 0 : index
      %c0_93 = arith.constant 0 : index
      %70 = vector.load %arg7[%c0_91, %c0_92, %c0_93] : memref<1x16x20xbf16, #tpu.memory_space<vmem>>, vector<1x16x20xbf16>
      %71 = vector.shape_cast %70 : vector<1x16x20xbf16> to vector<16x20xbf16>
      %72 = vector.shape_cast %69 : vector<16x20xbf16> to vector<1x16x20xbf16>
      tpu.vector_store %arg7[%c0_91, %c0_92, %c0_93], %72 {strides = array<i32>} : memref<1x16x20xbf16, #tpu.memory_space<vmem>>, vector<1x16x20xbf16>,
    } else {
    }
    return
  }
  func.func @transform_0(%arg0: i32, %arg1: i32, %arg2: i32) -> (i32, i32, i32, i32) {
    %c6_i32 = arith.constant 6 : i32
    %0 = arith.muli %arg0, %c6_i32 : i32
    %c2_i32 = arith.constant 2 : i32
    %1 = arith.muli %arg1, %c2_i32 : i32
    %2 = arith.addi %0, %1 : i32
    %3 = arith.addi %2, %arg2 : i32
    %c0_i32 = arith.constant 0 : i32
    %c0_i32_0 = arith.constant 0 : i32
    %c0_i32_1 = arith.constant 0 : i32
    %c0_i32_2 = arith.constant 0 : i32
    return %3, %c0_i32, %c0_i32_0, %c0_i32_1 : i32, i32, i32, i32
  }
  func.func @transform_1(%arg0: i32, %arg1: i32, %arg2: i32) -> (i32, i32, i32) {
    %c0_i32 = arith.constant 0 : i32
    %c0_i32_0 = arith.constant 0 : i32
    %c0_i32_1 = arith.constant 0 : i32
    %c0_i32_2 = arith.constant 0 : i32
    return %c0_i32, %c0_i32_0, %c0_i32_1 : i32, i32, i32
  }
  func.func @transform_2(%arg0: i32, %arg1: i32, %arg2: i32) -> (i32, i32) {
    %c0_i32 = arith.constant 0 : i32
    %c0_i32_0 = arith.constant 0 : i32
    %c0_i32_1 = arith.constant 0 : i32
    return %c0_i32, %c0_i32_0 : i32, i32
  }
  func.func @transform_3(%arg0: i32, %arg1: i32, %arg2: i32) -> (i32, i32) {
    %c0_i32 = arith.constant 0 : i32
    %c0_i32_0 = arith.constant 0 : i32
    %c0_i32_1 = arith.constant 0 : i32
    return %c0_i32, %c0_i32_0 : i32, i32
  }
  func.func @transform_4(%arg0: i32, %arg1: i32, %arg2: i32) -> (i32, i32, i32) {
    %c2_i32 = arith.constant 2 : i32
    %0 = arith.muli %arg0, %c2_i32 : i32
    %1 = arith.addi %0, %arg1 : i32
    %c0_i32 = arith.constant 0 : i32
    %c0_i32_0 = arith.constant 0 : i32
    %c0_i32_1 = arith.constant 0 : i32
    return %1, %c0_i32, %c0_i32_0 : i32, i32, i32
  }
}

module attributes {stable_mosaic.version = 11 : i64} {
  func.func @_instnorm_lrelu_kernel(%arg0: i32, %arg1: memref<1x2x16x20xbf16, #tpu.memory_space<vmem>>, %arg2: memref<1x16x1xf32, #tpu.memory_space<vmem>>, %arg3: memref<1x16x1xf32, #tpu.memory_space<vmem>>, %arg4: memref<1x2x16x20xbf16, #tpu.memory_space<vmem>>) attributes {dimension_semantics = [#tpu.dimension_semantics<parallel>], iteration_bounds = array<i64: 2>, scalar_prefetch = 0 : i64, scratch_operands = 0 : i64, tpu.core_type = #tpu.core_type<tc>, window_params = [{transform_indices = @transform_0, window_bounds = array<i64: 1, 2, 16, 20>}, {pipeline_mode = #tpu.pipeline_mode<synchronous>, transform_indices = @transform_1, window_bounds = array<i64: 1, 16, 1>}, {pipeline_mode = #tpu.pipeline_mode<synchronous>, transform_indices = @transform_2, window_bounds = array<i64: 1, 16, 1>}, {transform_indices = @transform_3, window_bounds = array<i64: 1, 2, 16, 20>}]} {
    %c0 = arith.constant 0 : index
    %c0_0 = arith.constant 0 : index
    %c0_1 = arith.constant 0 : index
    %c0_2 = arith.constant 0 : index
    %0 = vector.load %arg1[%c0, %c0_0, %c0_1, %c0_2] : memref<1x2x16x20xbf16, #tpu.memory_space<vmem>>, vector<1x2x16x20xbf16>
    %1 = vector.shape_cast %0 : vector<1x2x16x20xbf16> to vector<2x16x20xbf16>
    %2 = arith.extf %1 : vector<2x16x20xbf16> to vector<2x16x20xf32>
    %cst = arith.constant dense<0.000000e+00> : vector<2x16xf32>
    %3 = vector.multi_reduction <add>, %2, %cst [2] : vector<2x16x20xf32> to vector<2x16xf32>
    %4 = vector.shape_cast %3 : vector<2x16xf32> to vector<2x16x1xf32>
    %5 = arith.mulf %2, %2 : vector<2x16x20xf32>
    %cst_3 = arith.constant dense<0.000000e+00> : vector<2x16xf32>
    %6 = vector.multi_reduction <add>, %5, %cst_3 [2] : vector<2x16x20xf32> to vector<2x16xf32>
    %7 = vector.shape_cast %6 : vector<2x16xf32> to vector<2x16x1xf32>
    %cst_4 = arith.constant dense<0.000000e+00> : vector<16x1xf32>
    %8 = vector.multi_reduction <add>, %4, %cst_4 [0] : vector<2x16x1xf32> to vector<16x1xf32>
    %9 = vector.shape_cast %8 : vector<16x1xf32> to vector<1x16x1xf32>
    %cst_5 = arith.constant dense<0.000000e+00> : vector<16x1xf32>
    %10 = vector.multi_reduction <add>, %7, %cst_5 [0] : vector<2x16x1xf32> to vector<16x1xf32>
    %11 = vector.shape_cast %10 : vector<16x1xf32> to vector<1x16x1xf32>
    %cst_6 = arith.constant 3.125000e-02 : f32
    %12 = vector.broadcast %cst_6 : f32 to vector<1x16x1xf32>
    %13 = arith.mulf %9, %12 : vector<1x16x1xf32>
    %cst_7 = arith.constant 3.125000e-02 : f32
    %14 = vector.broadcast %cst_7 : f32 to vector<1x16x1xf32>
    %15 = arith.mulf %11, %14 : vector<1x16x1xf32>
    %16 = arith.mulf %13, %13 : vector<1x16x1xf32>
    %17 = arith.subf %15, %16 : vector<1x16x1xf32>
    %cst_8 = arith.constant 9.99999974E-6 : f32
    %18 = vector.broadcast %cst_8 : f32 to vector<1x16x1xf32>
    %19 = arith.addf %17, %18 : vector<1x16x1xf32>
    %20 = math.rsqrt %19 : vector<1x16x1xf32>
    %c0_9 = arith.constant 0 : index
    %c0_10 = arith.constant 0 : index
    %c0_11 = arith.constant 0 : index
    %21 = vector.load %arg2[%c0_9, %c0_10, %c0_11] : memref<1x16x1xf32, #tpu.memory_space<vmem>>, vector<1x16x1xf32>
    %22 = arith.mulf %20, %21 : vector<1x16x1xf32>
    %c0_12 = arith.constant 0 : index
    %c0_13 = arith.constant 0 : index
    %c0_14 = arith.constant 0 : index
    %23 = vector.load %arg3[%c0_12, %c0_13, %c0_14] : memref<1x16x1xf32, #tpu.memory_space<vmem>>, vector<1x16x1xf32>
    %24 = arith.mulf %13, %22 : vector<1x16x1xf32>
    %25 = arith.subf %23, %24 : vector<1x16x1xf32>
    %26 = vector.broadcast %22 : vector<1x16x1xf32> to vector<2x16x20xf32>
    %27 = arith.mulf %2, %26 : vector<2x16x20xf32>
    %28 = vector.broadcast %25 : vector<1x16x1xf32> to vector<2x16x20xf32>
    %29 = arith.addf %27, %28 : vector<2x16x20xf32>
    %cst_15 = arith.constant 0.000000e+00 : f32
    %30 = vector.broadcast %cst_15 : f32 to vector<2x16x20xf32>
    %31 = arith.cmpf oge, %29, %30 : vector<2x16x20xf32>
    %cst_16 = arith.constant 2.000000e-01 : f32
    %32 = vector.broadcast %cst_16 : f32 to vector<2x16x20xf32>
    %33 = arith.mulf %32, %29 : vector<2x16x20xf32>
    %34 = arith.select %31, %29, %33 : vector<2x16x20xi1>, vector<2x16x20xf32>
    %35 = arith.truncf %34 : vector<2x16x20xf32> to vector<2x16x20xbf16>
    %c0_17 = arith.constant 0 : index
    %c0_18 = arith.constant 0 : index
    %c0_19 = arith.constant 0 : index
    %c0_20 = arith.constant 0 : index
    %36 = vector.load %arg4[%c0_17, %c0_18, %c0_19, %c0_20] : memref<1x2x16x20xbf16, #tpu.memory_space<vmem>>, vector<1x2x16x20xbf16>
    %37 = vector.shape_cast %36 : vector<1x2x16x20xbf16> to vector<2x16x20xbf16>
    %38 = vector.shape_cast %35 : vector<2x16x20xbf16> to vector<1x2x16x20xbf16>
    tpu.vector_store %arg4[%c0_17, %c0_18, %c0_19, %c0_20], %38 {strides = array<i32>} : memref<1x2x16x20xbf16, #tpu.memory_space<vmem>>, vector<1x2x16x20xbf16>,
    return
  }
  func.func @transform_0(%arg0: i32) -> (i32, i32, i32, i32) {
    %c0_i32 = arith.constant 0 : i32
    %c0_i32_0 = arith.constant 0 : i32
    %c0_i32_1 = arith.constant 0 : i32
    %c0_i32_2 = arith.constant 0 : i32
    return %arg0, %c0_i32, %c0_i32_0, %c0_i32_1 : i32, i32, i32, i32
  }
  func.func @transform_1(%arg0: i32) -> (i32, i32, i32) {
    %c0_i32 = arith.constant 0 : i32
    %c0_i32_0 = arith.constant 0 : i32
    %c0_i32_1 = arith.constant 0 : i32
    %c0_i32_2 = arith.constant 0 : i32
    return %c0_i32, %c0_i32_0, %c0_i32_1 : i32, i32, i32
  }
  func.func @transform_2(%arg0: i32) -> (i32, i32, i32) {
    %c0_i32 = arith.constant 0 : i32
    %c0_i32_0 = arith.constant 0 : i32
    %c0_i32_1 = arith.constant 0 : i32
    %c0_i32_2 = arith.constant 0 : i32
    return %c0_i32, %c0_i32_0, %c0_i32_1 : i32, i32, i32
  }
  func.func @transform_3(%arg0: i32) -> (i32, i32, i32, i32) {
    %c0_i32 = arith.constant 0 : i32
    %c0_i32_0 = arith.constant 0 : i32
    %c0_i32_1 = arith.constant 0 : i32
    %c0_i32_2 = arith.constant 0 : i32
    return %arg0, %c0_i32, %c0_i32_0, %c0_i32_1 : i32, i32, i32, i32
  }
}

module attributes {stable_mosaic.version = 11 : i64} {
  func.func @_conv_plane_kernel(%arg0: i32, %arg1: i32, %arg2: i32, %arg3: memref<1x1x16x39xbf16, #tpu.memory_space<vmem>>, %arg4: memref<3x32x256xbf16, #tpu.memory_space<vmem>>, %arg5: memref<32x1xf32, #tpu.memory_space<vmem>>, %arg6: memref<1x18xf32, #tpu.memory_space<vmem>>, %arg7: memref<1x32x18xbf16, #tpu.memory_space<vmem>>, %arg8: memref<32x18xf32, #tpu.memory_space<vmem>>, %arg9: memref<256x18xbf16, #tpu.memory_space<vmem>>) attributes {dimension_semantics = [#tpu.dimension_semantics<parallel>, #tpu.dimension_semantics<parallel>, #tpu.dimension_semantics<arbitrary>], iteration_bounds = array<i64: 2, 2, 3>, scalar_prefetch = 0 : i64, scratch_operands = 2 : i64, tpu.core_type = #tpu.core_type<tc>, window_params = [{transform_indices = @transform_0, window_bounds = array<i64: 1, 1, 16, 39>}, {pipeline_mode = #tpu.pipeline_mode<synchronous>, transform_indices = @transform_1, window_bounds = array<i64: 3, 32, 256>}, {pipeline_mode = #tpu.pipeline_mode<synchronous>, transform_indices = @transform_2, window_bounds = array<i64: 32, 1>}, {pipeline_mode = #tpu.pipeline_mode<synchronous>, transform_indices = @transform_3, window_bounds = array<i64: 1, 18>}, {transform_indices = @transform_4, window_bounds = array<i64: 1, 32, 18>}]} {
    %c0_i32 = arith.constant 0 : i32
    %0 = arith.cmpi eq, %arg2, %c0_i32 : i32
    %1 = arith.extui %0 : i1 to i32
    %c0_i32_0 = arith.constant 0 : i32
    %2 = arith.cmpi ne, %1, %c0_i32_0 : i32
    scf.if %2 {
      %cst_75 = arith.constant 0.000000e+00 : f32
      %62 = vector.broadcast %cst_75 : f32 to vector<32x18xf32>
      %c0_76 = arith.constant 0 : index
      %c0_77 = arith.constant 0 : index
      %63 = vector.load %arg8[%c0_76, %c0_77] : memref<32x18xf32, #tpu.memory_space<vmem>>, vector<32x18xf32>
      tpu.vector_store %arg8[%c0_76, %c0_77], %62 {strides = array<i32>} : memref<32x18xf32, #tpu.memory_space<vmem>>, vector<32x18xf32>,
    } else {
    }
    %c0 = arith.constant 0 : index
    %c0_1 = arith.constant 0 : index
    %c0_2 = arith.constant 0 : index
    %c0_3 = arith.constant 0 : index
    %3 = vector.load %arg3[%c0, %c0_1, %c0_2, %c0_3] : memref<1x1x16x39xbf16, #tpu.memory_space<vmem>>, vector<1x1x16x18xbf16>
    %4 = vector.shape_cast %3 : vector<1x1x16x18xbf16> to vector<16x18xbf16>
    %c0_4 = arith.constant 0 : index
    %c0_5 = arith.constant 0 : index
    %5 = vector.load %arg9[%c0_4, %c0_5] : memref<256x18xbf16, #tpu.memory_space<vmem>>, vector<16x18xbf16>
    tpu.vector_store %arg9[%c0_4, %c0_5], %4 {strides = array<i32>} : memref<256x18xbf16, #tpu.memory_space<vmem>>, vector<16x18xbf16>,
    %c0_6 = arith.constant 0 : index
    %c0_7 = arith.constant 0 : index
    %c0_8 = arith.constant 0 : index
    %c1 = arith.constant 1 : index
    %6 = vector.load %arg3[%c0_6, %c0_7, %c0_8, %c1] : memref<1x1x16x39xbf16, #tpu.memory_space<vmem>>, vector<1x1x16x18xbf16>
    %7 = vector.shape_cast %6 : vector<1x1x16x18xbf16> to vector<16x18xbf16>
    %c16 = arith.constant 16 : index
    %c0_9 = arith.constant 0 : index
    %8 = vector.load %arg9[%c16, %c0_9] : memref<256x18xbf16, #tpu.memory_space<vmem>>, vector<16x18xbf16>
    tpu.vector_store %arg9[%c16, %c0_9], %7 {strides = array<i32>} : memref<256x18xbf16, #tpu.memory_space<vmem>>, vector<16x18xbf16>,
    %c0_10 = arith.constant 0 : index
    %c0_11 = arith.constant 0 : index
    %c0_12 = arith.constant 0 : index
    %c2 = arith.constant 2 : index
    %9 = vector.load %arg3[%c0_10, %c0_11, %c0_12, %c2] : memref<1x1x16x39xbf16, #tpu.memory_space<vmem>>, vector<1x1x16x18xbf16>
    %10 = vector.shape_cast %9 : vector<1x1x16x18xbf16> to vector<16x18xbf16>
    %c32 = arith.constant 32 : index
    %c0_13 = arith.constant 0 : index
    %11 = vector.load %arg9[%c32, %c0_13] : memref<256x18xbf16, #tpu.memory_space<vmem>>, vector<16x18xbf16>
    tpu.vector_store %arg9[%c32, %c0_13], %10 {strides = array<i32>} : memref<256x18xbf16, #tpu.memory_space<vmem>>, vector<16x18xbf16>,
    %c0_14 = arith.constant 0 : index
    %c0_15 = arith.constant 0 : index
    %c0_16 = arith.constant 0 : index
    %c3 = arith.constant 3 : index
    %12 = vector.load %arg3[%c0_14, %c0_15, %c0_16, %c3] : memref<1x1x16x39xbf16, #tpu.memory_space<vmem>>, vector<1x1x16x18xbf16>
    %13 = vector.shape_cast %12 : vector<1x1x16x18xbf16> to vector<16x18xbf16>
    %c48 = arith.constant 48 : index
    %c0_17 = arith.constant 0 : index
    %14 = vector.load %arg9[%c48, %c0_17] : memref<256x18xbf16, #tpu.memory_space<vmem>>, vector<16x18xbf16>
    tpu.vector_store %arg9[%c48, %c0_17], %13 {strides = array<i32>} : memref<256x18xbf16, #tpu.memory_space<vmem>>, vector<16x18xbf16>,
    %c0_18 = arith.constant 0 : index
    %c0_19 = arith.constant 0 : index
    %c0_20 = arith.constant 0 : index
    %c6 = arith.constant 6 : index
    %15 = vector.load %arg3[%c0_18, %c0_19, %c0_20, %c6] : memref<1x1x16x39xbf16, #tpu.memory_space<vmem>>, vector<1x1x16x18xbf16>
    %16 = vector.shape_cast %15 : vector<1x1x16x18xbf16> to vector<16x18xbf16>
    %c64 = arith.constant 64 : index
    %c0_21 = arith.constant 0 : index
    %17 = vector.load %arg9[%c64, %c0_21] : memref<256x18xbf16, #tpu.memory_space<vmem>>, vector<16x18xbf16>
    tpu.vector_store %arg9[%c64, %c0_21], %16 {strides = array<i32>} : memref<256x18xbf16, #tpu.memory_space<vmem>>, vector<16x18xbf16>,
    %c0_22 = arith.constant 0 : index
    %c0_23 = arith.constant 0 : index
    %c0_24 = arith.constant 0 : index
    %c7 = arith.constant 7 : index
    %18 = vector.load %arg3[%c0_22, %c0_23, %c0_24, %c7] : memref<1x1x16x39xbf16, #tpu.memory_space<vmem>>, vector<1x1x16x18xbf16>
    %19 = vector.shape_cast %18 : vector<1x1x16x18xbf16> to vector<16x18xbf16>
    %c80 = arith.constant 80 : index
    %c0_25 = arith.constant 0 : index
    %20 = vector.load %arg9[%c80, %c0_25] : memref<256x18xbf16, #tpu.memory_space<vmem>>, vector<16x18xbf16>
    tpu.vector_store %arg9[%c80, %c0_25], %19 {strides = array<i32>} : memref<256x18xbf16, #tpu.memory_space<vmem>>, vector<16x18xbf16>,
    %c0_26 = arith.constant 0 : index
    %c0_27 = arith.constant 0 : index
    %c0_28 = arith.constant 0 : index
    %c8 = arith.constant 8 : index
    %21 = vector.load %arg3[%c0_26, %c0_27, %c0_28, %c8] : memref<1x1x16x39xbf16, #tpu.memory_space<vmem>>, vector<1x1x16x18xbf16>
    %22 = vector.shape_cast %21 : vector<1x1x16x18xbf16> to vector<16x18xbf16>
    %c96 = arith.constant 96 : index
    %c0_29 = arith.constant 0 : index
    %23 = vector.load %arg9[%c96, %c0_29] : memref<256x18xbf16, #tpu.memory_space<vmem>>, vector<16x18xbf16>
    tpu.vector_store %arg9[%c96, %c0_29], %22 {strides = array<i32>} : memref<256x18xbf16, #tpu.memory_space<vmem>>, vector<16x18xbf16>,
    %c0_30 = arith.constant 0 : index
    %c0_31 = arith.constant 0 : index
    %c0_32 = arith.constant 0 : index
    %c9 = arith.constant 9 : index
    %24 = vector.load %arg3[%c0_30, %c0_31, %c0_32, %c9] : memref<1x1x16x39xbf16, #tpu.memory_space<vmem>>, vector<1x1x16x18xbf16>
    %25 = vector.shape_cast %24 : vector<1x1x16x18xbf16> to vector<16x18xbf16>
    %c112 = arith.constant 112 : index
    %c0_33 = arith.constant 0 : index
    %26 = vector.load %arg9[%c112, %c0_33] : memref<256x18xbf16, #tpu.memory_space<vmem>>, vector<16x18xbf16>
    tpu.vector_store %arg9[%c112, %c0_33], %25 {strides = array<i32>} : memref<256x18xbf16, #tpu.memory_space<vmem>>, vector<16x18xbf16>,
    %c0_34 = arith.constant 0 : index
    %c0_35 = arith.constant 0 : index
    %c0_36 = arith.constant 0 : index
    %c12 = arith.constant 12 : index
    %27 = vector.load %arg3[%c0_34, %c0_35, %c0_36, %c12] : memref<1x1x16x39xbf16, #tpu.memory_space<vmem>>, vector<1x1x16x18xbf16>
    %28 = vector.shape_cast %27 : vector<1x1x16x18xbf16> to vector<16x18xbf16>
    %c128 = arith.constant 128 : index
    %c0_37 = arith.constant 0 : index
    %29 = vector.load %arg9[%c128, %c0_37] : memref<256x18xbf16, #tpu.memory_space<vmem>>, vector<16x18xbf16>
    tpu.vector_store %arg9[%c128, %c0_37], %28 {strides = array<i32>} : memref<256x18xbf16, #tpu.memory_space<vmem>>, vector<16x18xbf16>,
    %c0_38 = arith.constant 0 : index
    %c0_39 = arith.constant 0 : index
    %c0_40 = arith.constant 0 : index
    %c13 = arith.constant 13 : index
    %30 = vector.load %arg3[%c0_38, %c0_39, %c0_40, %c13] : memref<1x1x16x39xbf16, #tpu.memory_space<vmem>>, vector<1x1x16x18xbf16>
    %31 = vector.shape_cast %30 : vector<1x1x16x18xbf16> to vector<16x18xbf16>
    %c144 = arith.constant 144 : index
    %c0_41 = arith.constant 0 : index
    %32 = vector.load %arg9[%c144, %c0_41] : memref<256x18xbf16, #tpu.memory_space<vmem>>, vector<16x18xbf16>
    tpu.vector_store %arg9[%c144, %c0_41], %31 {strides = array<i32>} : memref<256x18xbf16, #tpu.memory_space<vmem>>, vector<16x18xbf16>,
    %c0_42 = arith.constant 0 : index
    %c0_43 = arith.constant 0 : index
    %c0_44 = arith.constant 0 : index
    %c14 = arith.constant 14 : index
    %33 = vector.load %arg3[%c0_42, %c0_43, %c0_44, %c14] : memref<1x1x16x39xbf16, #tpu.memory_space<vmem>>, vector<1x1x16x18xbf16>
    %34 = vector.shape_cast %33 : vector<1x1x16x18xbf16> to vector<16x18xbf16>
    %c160 = arith.constant 160 : index
    %c0_45 = arith.constant 0 : index
    %35 = vector.load %arg9[%c160, %c0_45] : memref<256x18xbf16, #tpu.memory_space<vmem>>, vector<16x18xbf16>
    tpu.vector_store %arg9[%c160, %c0_45], %34 {strides = array<i32>} : memref<256x18xbf16, #tpu.memory_space<vmem>>, vector<16x18xbf16>,
    %c0_46 = arith.constant 0 : index
    %c0_47 = arith.constant 0 : index
    %c0_48 = arith.constant 0 : index
    %c15 = arith.constant 15 : index
    %36 = vector.load %arg3[%c0_46, %c0_47, %c0_48, %c15] : memref<1x1x16x39xbf16, #tpu.memory_space<vmem>>, vector<1x1x16x18xbf16>
    %37 = vector.shape_cast %36 : vector<1x1x16x18xbf16> to vector<16x18xbf16>
    %c176 = arith.constant 176 : index
    %c0_49 = arith.constant 0 : index
    %38 = vector.load %arg9[%c176, %c0_49] : memref<256x18xbf16, #tpu.memory_space<vmem>>, vector<16x18xbf16>
    tpu.vector_store %arg9[%c176, %c0_49], %37 {strides = array<i32>} : memref<256x18xbf16, #tpu.memory_space<vmem>>, vector<16x18xbf16>,
    %c0_50 = arith.constant 0 : index
    %c0_51 = arith.constant 0 : index
    %c0_52 = arith.constant 0 : index
    %c18 = arith.constant 18 : index
    %39 = vector.load %arg3[%c0_50, %c0_51, %c0_52, %c18] : memref<1x1x16x39xbf16, #tpu.memory_space<vmem>>, vector<1x1x16x18xbf16>
    %40 = vector.shape_cast %39 : vector<1x1x16x18xbf16> to vector<16x18xbf16>
    %c192 = arith.constant 192 : index
    %c0_53 = arith.constant 0 : index
    %41 = vector.load %arg9[%c192, %c0_53] : memref<256x18xbf16, #tpu.memory_space<vmem>>, vector<16x18xbf16>
    tpu.vector_store %arg9[%c192, %c0_53], %40 {strides = array<i32>} : memref<256x18xbf16, #tpu.memory_space<vmem>>, vector<16x18xbf16>,
    %c0_54 = arith.constant 0 : index
    %c0_55 = arith.constant 0 : index
    %c0_56 = arith.constant 0 : index
    %c19 = arith.constant 19 : index
    %42 = vector.load %arg3[%c0_54, %c0_55, %c0_56, %c19] : memref<1x1x16x39xbf16, #tpu.memory_space<vmem>>, vector<1x1x16x18xbf16>
    %43 = vector.shape_cast %42 : vector<1x1x16x18xbf16> to vector<16x18xbf16>
    %c208 = arith.constant 208 : index
    %c0_57 = arith.constant 0 : index
    %44 = vector.load %arg9[%c208, %c0_57] : memref<256x18xbf16, #tpu.memory_space<vmem>>, vector<16x18xbf16>
    tpu.vector_store %arg9[%c208, %c0_57], %43 {strides = array<i32>} : memref<256x18xbf16, #tpu.memory_space<vmem>>, vector<16x18xbf16>,
    %c0_58 = arith.constant 0 : index
    %c0_59 = arith.constant 0 : index
    %c0_60 = arith.constant 0 : index
    %c20 = arith.constant 20 : index
    %45 = vector.load %arg3[%c0_58, %c0_59, %c0_60, %c20] : memref<1x1x16x39xbf16, #tpu.memory_space<vmem>>, vector<1x1x16x18xbf16>
    %46 = vector.shape_cast %45 : vector<1x1x16x18xbf16> to vector<16x18xbf16>
    %c224 = arith.constant 224 : index
    %c0_61 = arith.constant 0 : index
    %47 = vector.load %arg9[%c224, %c0_61] : memref<256x18xbf16, #tpu.memory_space<vmem>>, vector<16x18xbf16>
    tpu.vector_store %arg9[%c224, %c0_61], %46 {strides = array<i32>} : memref<256x18xbf16, #tpu.memory_space<vmem>>, vector<16x18xbf16>,
    %c0_62 = arith.constant 0 : index
    %c0_63 = arith.constant 0 : index
    %c0_64 = arith.constant 0 : index
    %c21 = arith.constant 21 : index
    %48 = vector.load %arg3[%c0_62, %c0_63, %c0_64, %c21] : memref<1x1x16x39xbf16, #tpu.memory_space<vmem>>, vector<1x1x16x18xbf16>
    %49 = vector.shape_cast %48 : vector<1x1x16x18xbf16> to vector<16x18xbf16>
    %c240 = arith.constant 240 : index
    %c0_65 = arith.constant 0 : index
    %50 = vector.load %arg9[%c240, %c0_65] : memref<256x18xbf16, #tpu.memory_space<vmem>>, vector<16x18xbf16>
    tpu.vector_store %arg9[%c240, %c0_65], %49 {strides = array<i32>} : memref<256x18xbf16, #tpu.memory_space<vmem>>, vector<16x18xbf16>,
    %c0_66 = arith.constant 0 : index
    %c0_67 = arith.constant 0 : index
    %51 = vector.load %arg8[%c0_66, %c0_67] : memref<32x18xf32, #tpu.memory_space<vmem>>, vector<32x18xf32>
    %52 = arith.index_cast %arg2 : i32 to index
    %c0_68 = arith.constant 0 : index
    %c0_69 = arith.constant 0 : index
    %53 = vector.load %arg4[%52, %c0_68, %c0_69] : memref<3x32x256xbf16, #tpu.memory_space<vmem>>, vector<1x32x256xbf16>
    %54 = vector.shape_cast %53 : vector<1x32x256xbf16> to vector<32x256xbf16>
    %c0_70 = arith.constant 0 : index
    %c0_71 = arith.constant 0 : index
    %55 = vector.load %arg9[%c0_70, %c0_71] : memref<256x18xbf16, #tpu.memory_space<vmem>>, vector<256x18xbf16>
    %cst = arith.constant dense<0.000000e+00> : vector<32x18xf32>
    %56 = tpu.matmul %54, %55, %cst {dimension_numbers = #tpu.dot_dimension_numbers<[1], [0], [0], [1], [0, 0, 1, 1], [], []>} : vector<32x256xbf16>, vector<256x18xbf16>, vector<32x18xf32> -> vector<32x18xf32>
    %57 = arith.addf %51, %56 : vector<32x18xf32>
    %c0_72 = arith.constant 0 : index
    %c0_73 = arith.constant 0 : index
    %58 = vector.load %arg8[%c0_72, %c0_73] : memref<32x18xf32, #tpu.memory_space<vmem>>, vector<32x18xf32>
    tpu.vector_store %arg8[%c0_72, %c0_73], %57 {strides = array<i32>} : memref<32x18xf32, #tpu.memory_space<vmem>>, vector<32x18xf32>,
    %c2_i32 = arith.constant 2 : i32
    %59 = arith.cmpi eq, %arg2, %c2_i32 : i32
    %60 = arith.extui %59 : i1 to i32
    %c0_i32_74 = arith.constant 0 : i32
    %61 = arith.cmpi ne, %60, %c0_i32_74 : i32
    scf.if %61 {
      %c0_75 = arith.constant 0 : index
      %c0_76 = arith.constant 0 : index
      %62 = vector.load %arg8[%c0_75, %c0_76] : memref<32x18xf32, #tpu.memory_space<vmem>>, vector<32x18xf32>
      %c0_77 = arith.constant 0 : index
      %c0_78 = arith.constant 0 : index
      %63 = vector.load %arg5[%c0_77, %c0_78] : memref<32x1xf32, #tpu.memory_space<vmem>>, vector<32x1xf32>
      %64 = vector.broadcast %63 : vector<32x1xf32> to vector<32x18xf32>
      %65 = arith.addf %62, %64 : vector<32x18xf32>
      %c0_79 = arith.constant 0 : index
      %c0_80 = arith.constant 0 : index
      %66 = vector.load %arg6[%c0_79, %c0_80] : memref<1x18xf32, #tpu.memory_space<vmem>>, vector<1x18xf32>
      %67 = vector.broadcast %66 : vector<1x18xf32> to vector<32x18xf32>
      %68 = arith.mulf %65, %67 : vector<32x18xf32>
      %69 = arith.truncf %68 : vector<32x18xf32> to vector<32x18xbf16>
      %c0_81 = arith.constant 0 : index
      %c0_82 = arith.constant 0 : index
      %c0_83 = arith.constant 0 : index
      %70 = vector.load %arg7[%c0_81, %c0_82, %c0_83] : memref<1x32x18xbf16, #tpu.memory_space<vmem>>, vector<1x32x18xbf16>
      %71 = vector.shape_cast %70 : vector<1x32x18xbf16> to vector<32x18xbf16>
      %72 = vector.shape_cast %69 : vector<32x18xbf16> to vector<1x32x18xbf16>
      tpu.vector_store %arg7[%c0_81, %c0_82, %c0_83], %72 {strides = array<i32>} : memref<1x32x18xbf16, #tpu.memory_space<vmem>>, vector<1x32x18xbf16>,
    } else {
    }
    return
  }
  func.func @transform_0(%arg0: i32, %arg1: i32, %arg2: i32) -> (i32, i32, i32, i32) {
    %c4_i32 = arith.constant 4 : i32
    %0 = arith.muli %arg0, %c4_i32 : i32
    %c1_i32 = arith.constant 1 : i32
    %1 = arith.muli %arg1, %c1_i32 : i32
    %2 = arith.addi %0, %1 : i32
    %3 = arith.addi %2, %arg2 : i32
    %c0_i32 = arith.constant 0 : i32
    %c0_i32_0 = arith.constant 0 : i32
    %c0_i32_1 = arith.constant 0 : i32
    %c0_i32_2 = arith.constant 0 : i32
    return %3, %c0_i32, %c0_i32_0, %c0_i32_1 : i32, i32, i32, i32
  }
  func.func @transform_1(%arg0: i32, %arg1: i32, %arg2: i32) -> (i32, i32, i32) {
    %c0_i32 = arith.constant 0 : i32
    %c0_i32_0 = arith.constant 0 : i32
    %c0_i32_1 = arith.constant 0 : i32
    %c0_i32_2 = arith.constant 0 : i32
    return %c0_i32, %c0_i32_0, %c0_i32_1 : i32, i32, i32
  }
  func.func @transform_2(%arg0: i32, %arg1: i32, %arg2: i32) -> (i32, i32) {
    %c0_i32 = arith.constant 0 : i32
    %c0_i32_0 = arith.constant 0 : i32
    %c0_i32_1 = arith.constant 0 : i32
    return %c0_i32, %c0_i32_0 : i32, i32
  }
  func.func @transform_3(%arg0: i32, %arg1: i32, %arg2: i32) -> (i32, i32) {
    %c0_i32 = arith.constant 0 : i32
    %c0_i32_0 = arith.constant 0 : i32
    %c0_i32_1 = arith.constant 0 : i32
    return %c0_i32, %c0_i32_0 : i32, i32
  }
  func.func @transform_4(%arg0: i32, %arg1: i32, %arg2: i32) -> (i32, i32, i32) {
    %c2_i32 = arith.constant 2 : i32
    %0 = arith.muli %arg0, %c2_i32 : i32
    %1 = arith.addi %0, %arg1 : i32
    %c0_i32 = arith.constant 0 : i32
    %c0_i32_0 = arith.constant 0 : i32
    %c0_i32_1 = arith.constant 0 : i32
    return %1, %c0_i32, %c0_i32_0 : i32, i32, i32
  }
}

module attributes {stable_mosaic.version = 11 : i64} {
  func.func @_instnorm_lrelu_kernel(%arg0: i32, %arg1: memref<1x2x32x18xbf16, #tpu.memory_space<vmem>>, %arg2: memref<1x32x1xf32, #tpu.memory_space<vmem>>, %arg3: memref<1x32x1xf32, #tpu.memory_space<vmem>>, %arg4: memref<1x2x32x18xbf16, #tpu.memory_space<vmem>>) attributes {dimension_semantics = [#tpu.dimension_semantics<parallel>], iteration_bounds = array<i64: 2>, scalar_prefetch = 0 : i64, scratch_operands = 0 : i64, tpu.core_type = #tpu.core_type<tc>, window_params = [{transform_indices = @transform_0, window_bounds = array<i64: 1, 2, 32, 18>}, {pipeline_mode = #tpu.pipeline_mode<synchronous>, transform_indices = @transform_1, window_bounds = array<i64: 1, 32, 1>}, {pipeline_mode = #tpu.pipeline_mode<synchronous>, transform_indices = @transform_2, window_bounds = array<i64: 1, 32, 1>}, {transform_indices = @transform_3, window_bounds = array<i64: 1, 2, 32, 18>}]} {
    %c0 = arith.constant 0 : index
    %c0_0 = arith.constant 0 : index
    %c0_1 = arith.constant 0 : index
    %c0_2 = arith.constant 0 : index
    %0 = vector.load %arg1[%c0, %c0_0, %c0_1, %c0_2] : memref<1x2x32x18xbf16, #tpu.memory_space<vmem>>, vector<1x2x32x18xbf16>
    %1 = vector.shape_cast %0 : vector<1x2x32x18xbf16> to vector<2x32x18xbf16>
    %2 = arith.extf %1 : vector<2x32x18xbf16> to vector<2x32x18xf32>
    %cst = arith.constant dense<0.000000e+00> : vector<2x32xf32>
    %3 = vector.multi_reduction <add>, %2, %cst [2] : vector<2x32x18xf32> to vector<2x32xf32>
    %4 = vector.shape_cast %3 : vector<2x32xf32> to vector<2x32x1xf32>
    %5 = arith.mulf %2, %2 : vector<2x32x18xf32>
    %cst_3 = arith.constant dense<0.000000e+00> : vector<2x32xf32>
    %6 = vector.multi_reduction <add>, %5, %cst_3 [2] : vector<2x32x18xf32> to vector<2x32xf32>
    %7 = vector.shape_cast %6 : vector<2x32xf32> to vector<2x32x1xf32>
    %cst_4 = arith.constant dense<0.000000e+00> : vector<32x1xf32>
    %8 = vector.multi_reduction <add>, %4, %cst_4 [0] : vector<2x32x1xf32> to vector<32x1xf32>
    %9 = vector.shape_cast %8 : vector<32x1xf32> to vector<1x32x1xf32>
    %cst_5 = arith.constant dense<0.000000e+00> : vector<32x1xf32>
    %10 = vector.multi_reduction <add>, %7, %cst_5 [0] : vector<2x32x1xf32> to vector<32x1xf32>
    %11 = vector.shape_cast %10 : vector<32x1xf32> to vector<1x32x1xf32>
    %cst_6 = arith.constant 0.055555556 : f32
    %12 = vector.broadcast %cst_6 : f32 to vector<1x32x1xf32>
    %13 = arith.mulf %9, %12 : vector<1x32x1xf32>
    %cst_7 = arith.constant 0.055555556 : f32
    %14 = vector.broadcast %cst_7 : f32 to vector<1x32x1xf32>
    %15 = arith.mulf %11, %14 : vector<1x32x1xf32>
    %16 = arith.mulf %13, %13 : vector<1x32x1xf32>
    %17 = arith.subf %15, %16 : vector<1x32x1xf32>
    %cst_8 = arith.constant 9.99999974E-6 : f32
    %18 = vector.broadcast %cst_8 : f32 to vector<1x32x1xf32>
    %19 = arith.addf %17, %18 : vector<1x32x1xf32>
    %20 = math.rsqrt %19 : vector<1x32x1xf32>
    %c0_9 = arith.constant 0 : index
    %c0_10 = arith.constant 0 : index
    %c0_11 = arith.constant 0 : index
    %21 = vector.load %arg2[%c0_9, %c0_10, %c0_11] : memref<1x32x1xf32, #tpu.memory_space<vmem>>, vector<1x32x1xf32>
    %22 = arith.mulf %20, %21 : vector<1x32x1xf32>
    %c0_12 = arith.constant 0 : index
    %c0_13 = arith.constant 0 : index
    %c0_14 = arith.constant 0 : index
    %23 = vector.load %arg3[%c0_12, %c0_13, %c0_14] : memref<1x32x1xf32, #tpu.memory_space<vmem>>, vector<1x32x1xf32>
    %24 = arith.mulf %13, %22 : vector<1x32x1xf32>
    %25 = arith.subf %23, %24 : vector<1x32x1xf32>
    %26 = vector.broadcast %22 : vector<1x32x1xf32> to vector<2x32x18xf32>
    %27 = arith.mulf %2, %26 : vector<2x32x18xf32>
    %28 = vector.broadcast %25 : vector<1x32x1xf32> to vector<2x32x18xf32>
    %29 = arith.addf %27, %28 : vector<2x32x18xf32>
    %cst_15 = arith.constant 0.000000e+00 : f32
    %30 = vector.broadcast %cst_15 : f32 to vector<2x32x18xf32>
    %31 = arith.cmpf oge, %29, %30 : vector<2x32x18xf32>
    %cst_16 = arith.constant 2.000000e-01 : f32
    %32 = vector.broadcast %cst_16 : f32 to vector<2x32x18xf32>
    %33 = arith.mulf %32, %29 : vector<2x32x18xf32>
    %34 = arith.select %31, %29, %33 : vector<2x32x18xi1>, vector<2x32x18xf32>
    %35 = arith.truncf %34 : vector<2x32x18xf32> to vector<2x32x18xbf16>
    %c0_17 = arith.constant 0 : index
    %c0_18 = arith.constant 0 : index
    %c0_19 = arith.constant 0 : index
    %c0_20 = arith.constant 0 : index
    %36 = vector.load %arg4[%c0_17, %c0_18, %c0_19, %c0_20] : memref<1x2x32x18xbf16, #tpu.memory_space<vmem>>, vector<1x2x32x18xbf16>
    %37 = vector.shape_cast %36 : vector<1x2x32x18xbf16> to vector<2x32x18xbf16>
    %38 = vector.shape_cast %35 : vector<2x32x18xbf16> to vector<1x2x32x18xbf16>
    tpu.vector_store %arg4[%c0_17, %c0_18, %c0_19, %c0_20], %38 {strides = array<i32>} : memref<1x2x32x18xbf16, #tpu.memory_space<vmem>>, vector<1x2x32x18xbf16>,
    return
  }
  func.func @transform_0(%arg0: i32) -> (i32, i32, i32, i32) {
    %c0_i32 = arith.constant 0 : i32
    %c0_i32_0 = arith.constant 0 : i32
    %c0_i32_1 = arith.constant 0 : i32
    %c0_i32_2 = arith.constant 0 : i32
    return %arg0, %c0_i32, %c0_i32_0, %c0_i32_1 : i32, i32, i32, i32
  }
  func.func @transform_1(%arg0: i32) -> (i32, i32, i32) {
    %c0_i32 = arith.constant 0 : i32
    %c0_i32_0 = arith.constant 0 : i32
    %c0_i32_1 = arith.constant 0 : i32
    %c0_i32_2 = arith.constant 0 : i32
    return %c0_i32, %c0_i32_0, %c0_i32_1 : i32, i32, i32
  }
  func.func @transform_2(%arg0: i32) -> (i32, i32, i32) {
    %c0_i32 = arith.constant 0 : i32
    %c0_i32_0 = arith.constant 0 : i32
    %c0_i32_1 = arith.constant 0 : i32
    %c0_i32_2 = arith.constant 0 : i32
    return %c0_i32, %c0_i32_0, %c0_i32_1 : i32, i32, i32
  }
  func.func @transform_3(%arg0: i32) -> (i32, i32, i32, i32) {
    %c0_i32 = arith.constant 0 : i32
    %c0_i32_0 = arith.constant 0 : i32
    %c0_i32_1 = arith.constant 0 : i32
    %c0_i32_2 = arith.constant 0 : i32
    return %arg0, %c0_i32, %c0_i32_0, %c0_i32_1 : i32, i32, i32, i32
  }
}

module attributes {stable_mosaic.version = 11 : i64} {
  func.func @_conv_plane_kernel(%arg0: i32, %arg1: i32, %arg2: i32, %arg3: memref<1x1x32x28xbf16, #tpu.memory_space<vmem>>, %arg4: memref<3x16x32x1xbf16, #tpu.memory_space<vmem>>, %arg5: memref<1x1xf32, #tpu.memory_space<vmem>>, %arg6: memref<1x10xf32, #tpu.memory_space<vmem>>, %arg7: memref<1x1x10xf32, #tpu.memory_space<vmem>>, %arg8: memref<1x10xf32, #tpu.memory_space<vmem>>) attributes {dimension_semantics = [#tpu.dimension_semantics<parallel>, #tpu.dimension_semantics<parallel>, #tpu.dimension_semantics<arbitrary>], iteration_bounds = array<i64: 2, 2, 3>, scalar_prefetch = 0 : i64, scratch_operands = 1 : i64, tpu.core_type = #tpu.core_type<tc>, window_params = [{transform_indices = @transform_0, window_bounds = array<i64: 1, 1, 32, 28>}, {pipeline_mode = #tpu.pipeline_mode<synchronous>, transform_indices = @transform_1, window_bounds = array<i64: 3, 16, 32, 1>}, {pipeline_mode = #tpu.pipeline_mode<synchronous>, transform_indices = @transform_2, window_bounds = array<i64: 1, 1>}, {pipeline_mode = #tpu.pipeline_mode<synchronous>, transform_indices = @transform_3, window_bounds = array<i64: 1, 10>}, {transform_indices = @transform_4, window_bounds = array<i64: 1, 1, 10>}]} {
    %c0_i32 = arith.constant 0 : i32
    %0 = arith.cmpi eq, %arg2, %c0_i32 : i32
    %1 = arith.extui %0 : i1 to i32
    %c0_i32_0 = arith.constant 0 : i32
    %2 = arith.cmpi ne, %1, %c0_i32_0 : i32
    scf.if %2 {
      %cst_73 = arith.constant 0.000000e+00 : f32
      %174 = vector.broadcast %cst_73 : f32 to vector<1x10xf32>
      %c0_74 = arith.constant 0 : index
      %c0_75 = arith.constant 0 : index
      %175 = vector.load %arg8[%c0_74, %c0_75] : memref<1x10xf32, #tpu.memory_space<vmem>>, vector<1x10xf32>
      tpu.vector_store %arg8[%c0_74, %c0_75], %174 {strides = array<i32>} : memref<1x10xf32, #tpu.memory_space<vmem>>, vector<1x10xf32>,
    } else {
    }
    %3 = arith.index_cast %arg2 : i32 to index
    %c0 = arith.constant 0 : index
    %c0_1 = arith.constant 0 : index
    %c0_2 = arith.constant 0 : index
    %4 = vector.load %arg4[%3, %c0, %c0_1, %c0_2] : memref<3x16x32x1xbf16, #tpu.memory_space<vmem>>, vector<1x16x32x1xbf16>
    %5 = vector.shape_cast %4 : vector<1x16x32x1xbf16> to vector<16x32x1xbf16>
    %6 = arith.extf %5 : vector<16x32x1xbf16> to vector<16x32x1xf32>
    %cst = arith.constant 0.000000e+00 : f32
    %7 = vector.broadcast %cst : f32 to vector<1x10xf32>
    %c0_3 = arith.constant 0 : index
    %c0_4 = arith.constant 0 : index
    %c0_5 = arith.constant 0 : index
    %c0_6 = arith.constant 0 : index
    %8 = vector.load %arg3[%c0_3, %c0_4, %c0_5, %c0_6] : memref<1x1x32x28xbf16, #tpu.memory_space<vmem>>, vector<1x1x32x10xbf16>
    %9 = vector.shape_cast %8 : vector<1x1x32x10xbf16> to vector<32x10xbf16>
    %10 = arith.extf %9 : vector<32x10xbf16> to vector<32x10xf32>
    %11 = vector.extract_strided_slice %6 {offsets = [0, 0, 0], sizes = [1, 32, 1], strides = [1, 1, 1]} : vector<16x32x1xf32> to vector<1x32x1xf32>
    %12 = vector.shape_cast %11 : vector<1x32x1xf32> to vector<32x1xf32>
    %13 = vector.broadcast %12 : vector<32x1xf32> to vector<32x10xf32>
    %14 = arith.mulf %10, %13 : vector<32x10xf32>
    %cst_7 = arith.constant dense<0.000000e+00> : vector<10xf32>
    %15 = vector.multi_reduction <add>, %14, %cst_7 [0] : vector<32x10xf32> to vector<10xf32>
    %16 = vector.shape_cast %15 : vector<10xf32> to vector<1x10xf32>
    %17 = arith.addf %7, %16 : vector<1x10xf32>
    %c0_8 = arith.constant 0 : index
    %c0_9 = arith.constant 0 : index
    %c0_10 = arith.constant 0 : index
    %c1 = arith.constant 1 : index
    %18 = vector.load %arg3[%c0_8, %c0_9, %c0_10, %c1] : memref<1x1x32x28xbf16, #tpu.memory_space<vmem>>, vector<1x1x32x10xbf16>
    %19 = vector.shape_cast %18 : vector<1x1x32x10xbf16> to vector<32x10xbf16>
    %20 = arith.extf %19 : vector<32x10xbf16> to vector<32x10xf32>
    %21 = vector.extract_strided_slice %6 {offsets = [1, 0, 0], sizes = [1, 32, 1], strides = [1, 1, 1]} : vector<16x32x1xf32> to vector<1x32x1xf32>
    %22 = vector.shape_cast %21 : vector<1x32x1xf32> to vector<32x1xf32>
    %23 = vector.broadcast %22 : vector<32x1xf32> to vector<32x10xf32>
    %24 = arith.mulf %20, %23 : vector<32x10xf32>
    %cst_11 = arith.constant dense<0.000000e+00> : vector<10xf32>
    %25 = vector.multi_reduction <add>, %24, %cst_11 [0] : vector<32x10xf32> to vector<10xf32>
    %26 = vector.shape_cast %25 : vector<10xf32> to vector<1x10xf32>
    %27 = arith.addf %17, %26 : vector<1x10xf32>
    %c0_12 = arith.constant 0 : index
    %c0_13 = arith.constant 0 : index
    %c0_14 = arith.constant 0 : index
    %c2 = arith.constant 2 : index
    %28 = vector.load %arg3[%c0_12, %c0_13, %c0_14, %c2] : memref<1x1x32x28xbf16, #tpu.memory_space<vmem>>, vector<1x1x32x10xbf16>
    %29 = vector.shape_cast %28 : vector<1x1x32x10xbf16> to vector<32x10xbf16>
    %30 = arith.extf %29 : vector<32x10xbf16> to vector<32x10xf32>
    %31 = vector.extract_strided_slice %6 {offsets = [2, 0, 0], sizes = [1, 32, 1], strides = [1, 1, 1]} : vector<16x32x1xf32> to vector<1x32x1xf32>
    %32 = vector.shape_cast %31 : vector<1x32x1xf32> to vector<32x1xf32>
    %33 = vector.broadcast %32 : vector<32x1xf32> to vector<32x10xf32>
    %34 = arith.mulf %30, %33 : vector<32x10xf32>
    %cst_15 = arith.constant dense<0.000000e+00> : vector<10xf32>
    %35 = vector.multi_reduction <add>, %34, %cst_15 [0] : vector<32x10xf32> to vector<10xf32>
    %36 = vector.shape_cast %35 : vector<10xf32> to vector<1x10xf32>
    %37 = arith.addf %27, %36 : vector<1x10xf32>
    %c0_16 = arith.constant 0 : index
    %c0_17 = arith.constant 0 : index
    %c0_18 = arith.constant 0 : index
    %c3 = arith.constant 3 : index
    %38 = vector.load %arg3[%c0_16, %c0_17, %c0_18, %c3] : memref<1x1x32x28xbf16, #tpu.memory_space<vmem>>, vector<1x1x32x10xbf16>
    %39 = vector.shape_cast %38 : vector<1x1x32x10xbf16> to vector<32x10xbf16>
    %40 = arith.extf %39 : vector<32x10xbf16> to vector<32x10xf32>
    %41 = vector.extract_strided_slice %6 {offsets = [3, 0, 0], sizes = [1, 32, 1], strides = [1, 1, 1]} : vector<16x32x1xf32> to vector<1x32x1xf32>
    %42 = vector.shape_cast %41 : vector<1x32x1xf32> to vector<32x1xf32>
    %43 = vector.broadcast %42 : vector<32x1xf32> to vector<32x10xf32>
    %44 = arith.mulf %40, %43 : vector<32x10xf32>
    %cst_19 = arith.constant dense<0.000000e+00> : vector<10xf32>
    %45 = vector.multi_reduction <add>, %44, %cst_19 [0] : vector<32x10xf32> to vector<10xf32>
    %46 = vector.shape_cast %45 : vector<10xf32> to vector<1x10xf32>
    %47 = arith.addf %37, %46 : vector<1x10xf32>
    %c0_20 = arith.constant 0 : index
    %c0_21 = arith.constant 0 : index
    %c0_22 = arith.constant 0 : index
    %c5 = arith.constant 5 : index
    %48 = vector.load %arg3[%c0_20, %c0_21, %c0_22, %c5] : memref<1x1x32x28xbf16, #tpu.memory_space<vmem>>, vector<1x1x32x10xbf16>
    %49 = vector.shape_cast %48 : vector<1x1x32x10xbf16> to vector<32x10xbf16>
    %50 = arith.extf %49 : vector<32x10xbf16> to vector<32x10xf32>
    %51 = vector.extract_strided_slice %6 {offsets = [4, 0, 0], sizes = [1, 32, 1], strides = [1, 1, 1]} : vector<16x32x1xf32> to vector<1x32x1xf32>
    %52 = vector.shape_cast %51 : vector<1x32x1xf32> to vector<32x1xf32>
    %53 = vector.broadcast %52 : vector<32x1xf32> to vector<32x10xf32>
    %54 = arith.mulf %50, %53 : vector<32x10xf32>
    %cst_23 = arith.constant dense<0.000000e+00> : vector<10xf32>
    %55 = vector.multi_reduction <add>, %54, %cst_23 [0] : vector<32x10xf32> to vector<10xf32>
    %56 = vector.shape_cast %55 : vector<10xf32> to vector<1x10xf32>
    %57 = arith.addf %47, %56 : vector<1x10xf32>
    %c0_24 = arith.constant 0 : index
    %c0_25 = arith.constant 0 : index
    %c0_26 = arith.constant 0 : index
    %c6 = arith.constant 6 : index
    %58 = vector.load %arg3[%c0_24, %c0_25, %c0_26, %c6] : memref<1x1x32x28xbf16, #tpu.memory_space<vmem>>, vector<1x1x32x10xbf16>
    %59 = vector.shape_cast %58 : vector<1x1x32x10xbf16> to vector<32x10xbf16>
    %60 = arith.extf %59 : vector<32x10xbf16> to vector<32x10xf32>
    %61 = vector.extract_strided_slice %6 {offsets = [5, 0, 0], sizes = [1, 32, 1], strides = [1, 1, 1]} : vector<16x32x1xf32> to vector<1x32x1xf32>
    %62 = vector.shape_cast %61 : vector<1x32x1xf32> to vector<32x1xf32>
    %63 = vector.broadcast %62 : vector<32x1xf32> to vector<32x10xf32>
    %64 = arith.mulf %60, %63 : vector<32x10xf32>
    %cst_27 = arith.constant dense<0.000000e+00> : vector<10xf32>
    %65 = vector.multi_reduction <add>, %64, %cst_27 [0] : vector<32x10xf32> to vector<10xf32>
    %66 = vector.shape_cast %65 : vector<10xf32> to vector<1x10xf32>
    %67 = arith.addf %57, %66 : vector<1x10xf32>
    %c0_28 = arith.constant 0 : index
    %c0_29 = arith.constant 0 : index
    %c0_30 = arith.constant 0 : index
    %c7 = arith.constant 7 : index
    %68 = vector.load %arg3[%c0_28, %c0_29, %c0_30, %c7] : memref<1x1x32x28xbf16, #tpu.memory_space<vmem>>, vector<1x1x32x10xbf16>
    %69 = vector.shape_cast %68 : vector<1x1x32x10xbf16> to vector<32x10xbf16>
    %70 = arith.extf %69 : vector<32x10xbf16> to vector<32x10xf32>
    %71 = vector.extract_strided_slice %6 {offsets = [6, 0, 0], sizes = [1, 32, 1], strides = [1, 1, 1]} : vector<16x32x1xf32> to vector<1x32x1xf32>
    %72 = vector.shape_cast %71 : vector<1x32x1xf32> to vector<32x1xf32>
    %73 = vector.broadcast %72 : vector<32x1xf32> to vector<32x10xf32>
    %74 = arith.mulf %70, %73 : vector<32x10xf32>
    %cst_31 = arith.constant dense<0.000000e+00> : vector<10xf32>
    %75 = vector.multi_reduction <add>, %74, %cst_31 [0] : vector<32x10xf32> to vector<10xf32>
    %76 = vector.shape_cast %75 : vector<10xf32> to vector<1x10xf32>
    %77 = arith.addf %67, %76 : vector<1x10xf32>
    %c0_32 = arith.constant 0 : index
    %c0_33 = arith.constant 0 : index
    %c0_34 = arith.constant 0 : index
    %c8 = arith.constant 8 : index
    %78 = vector.load %arg3[%c0_32, %c0_33, %c0_34, %c8] : memref<1x1x32x28xbf16, #tpu.memory_space<vmem>>, vector<1x1x32x10xbf16>
    %79 = vector.shape_cast %78 : vector<1x1x32x10xbf16> to vector<32x10xbf16>
    %80 = arith.extf %79 : vector<32x10xbf16> to vector<32x10xf32>
    %81 = vector.extract_strided_slice %6 {offsets = [7, 0, 0], sizes = [1, 32, 1], strides = [1, 1, 1]} : vector<16x32x1xf32> to vector<1x32x1xf32>
    %82 = vector.shape_cast %81 : vector<1x32x1xf32> to vector<32x1xf32>
    %83 = vector.broadcast %82 : vector<32x1xf32> to vector<32x10xf32>
    %84 = arith.mulf %80, %83 : vector<32x10xf32>
    %cst_35 = arith.constant dense<0.000000e+00> : vector<10xf32>
    %85 = vector.multi_reduction <add>, %84, %cst_35 [0] : vector<32x10xf32> to vector<10xf32>
    %86 = vector.shape_cast %85 : vector<10xf32> to vector<1x10xf32>
    %87 = arith.addf %77, %86 : vector<1x10xf32>
    %c0_36 = arith.constant 0 : index
    %c0_37 = arith.constant 0 : index
    %c0_38 = arith.constant 0 : index
    %c10 = arith.constant 10 : index
    %88 = vector.load %arg3[%c0_36, %c0_37, %c0_38, %c10] : memref<1x1x32x28xbf16, #tpu.memory_space<vmem>>, vector<1x1x32x10xbf16>
    %89 = vector.shape_cast %88 : vector<1x1x32x10xbf16> to vector<32x10xbf16>
    %90 = arith.extf %89 : vector<32x10xbf16> to vector<32x10xf32>
    %91 = vector.extract_strided_slice %6 {offsets = [8, 0, 0], sizes = [1, 32, 1], strides = [1, 1, 1]} : vector<16x32x1xf32> to vector<1x32x1xf32>
    %92 = vector.shape_cast %91 : vector<1x32x1xf32> to vector<32x1xf32>
    %93 = vector.broadcast %92 : vector<32x1xf32> to vector<32x10xf32>
    %94 = arith.mulf %90, %93 : vector<32x10xf32>
    %cst_39 = arith.constant dense<0.000000e+00> : vector<10xf32>
    %95 = vector.multi_reduction <add>, %94, %cst_39 [0] : vector<32x10xf32> to vector<10xf32>
    %96 = vector.shape_cast %95 : vector<10xf32> to vector<1x10xf32>
    %97 = arith.addf %87, %96 : vector<1x10xf32>
    %c0_40 = arith.constant 0 : index
    %c0_41 = arith.constant 0 : index
    %c0_42 = arith.constant 0 : index
    %c11 = arith.constant 11 : index
    %98 = vector.load %arg3[%c0_40, %c0_41, %c0_42, %c11] : memref<1x1x32x28xbf16, #tpu.memory_space<vmem>>, vector<1x1x32x10xbf16>
    %99 = vector.shape_cast %98 : vector<1x1x32x10xbf16> to vector<32x10xbf16>
    %100 = arith.extf %99 : vector<32x10xbf16> to vector<32x10xf32>
    %101 = vector.extract_strided_slice %6 {offsets = [9, 0, 0], sizes = [1, 32, 1], strides = [1, 1, 1]} : vector<16x32x1xf32> to vector<1x32x1xf32>
    %102 = vector.shape_cast %101 : vector<1x32x1xf32> to vector<32x1xf32>
    %103 = vector.broadcast %102 : vector<32x1xf32> to vector<32x10xf32>
    %104 = arith.mulf %100, %103 : vector<32x10xf32>
    %cst_43 = arith.constant dense<0.000000e+00> : vector<10xf32>
    %105 = vector.multi_reduction <add>, %104, %cst_43 [0] : vector<32x10xf32> to vector<10xf32>
    %106 = vector.shape_cast %105 : vector<10xf32> to vector<1x10xf32>
    %107 = arith.addf %97, %106 : vector<1x10xf32>
    %c0_44 = arith.constant 0 : index
    %c0_45 = arith.constant 0 : index
    %c0_46 = arith.constant 0 : index
    %c12 = arith.constant 12 : index
    %108 = vector.load %arg3[%c0_44, %c0_45, %c0_46, %c12] : memref<1x1x32x28xbf16, #tpu.memory_space<vmem>>, vector<1x1x32x10xbf16>
    %109 = vector.shape_cast %108 : vector<1x1x32x10xbf16> to vector<32x10xbf16>
    %110 = arith.extf %109 : vector<32x10xbf16> to vector<32x10xf32>
    %111 = vector.extract_strided_slice %6 {offsets = [10, 0, 0], sizes = [1, 32, 1], strides = [1, 1, 1]} : vector<16x32x1xf32> to vector<1x32x1xf32>
    %112 = vector.shape_cast %111 : vector<1x32x1xf32> to vector<32x1xf32>
    %113 = vector.broadcast %112 : vector<32x1xf32> to vector<32x10xf32>
    %114 = arith.mulf %110, %113 : vector<32x10xf32>
    %cst_47 = arith.constant dense<0.000000e+00> : vector<10xf32>
    %115 = vector.multi_reduction <add>, %114, %cst_47 [0] : vector<32x10xf32> to vector<10xf32>
    %116 = vector.shape_cast %115 : vector<10xf32> to vector<1x10xf32>
    %117 = arith.addf %107, %116 : vector<1x10xf32>
    %c0_48 = arith.constant 0 : index
    %c0_49 = arith.constant 0 : index
    %c0_50 = arith.constant 0 : index
    %c13 = arith.constant 13 : index
    %118 = vector.load %arg3[%c0_48, %c0_49, %c0_50, %c13] : memref<1x1x32x28xbf16, #tpu.memory_space<vmem>>, vector<1x1x32x10xbf16>
    %119 = vector.shape_cast %118 : vector<1x1x32x10xbf16> to vector<32x10xbf16>
    %120 = arith.extf %119 : vector<32x10xbf16> to vector<32x10xf32>
    %121 = vector.extract_strided_slice %6 {offsets = [11, 0, 0], sizes = [1, 32, 1], strides = [1, 1, 1]} : vector<16x32x1xf32> to vector<1x32x1xf32>
    %122 = vector.shape_cast %121 : vector<1x32x1xf32> to vector<32x1xf32>
    %123 = vector.broadcast %122 : vector<32x1xf32> to vector<32x10xf32>
    %124 = arith.mulf %120, %123 : vector<32x10xf32>
    %cst_51 = arith.constant dense<0.000000e+00> : vector<10xf32>
    %125 = vector.multi_reduction <add>, %124, %cst_51 [0] : vector<32x10xf32> to vector<10xf32>
    %126 = vector.shape_cast %125 : vector<10xf32> to vector<1x10xf32>
    %127 = arith.addf %117, %126 : vector<1x10xf32>
    %c0_52 = arith.constant 0 : index
    %c0_53 = arith.constant 0 : index
    %c0_54 = arith.constant 0 : index
    %c15 = arith.constant 15 : index
    %128 = vector.load %arg3[%c0_52, %c0_53, %c0_54, %c15] : memref<1x1x32x28xbf16, #tpu.memory_space<vmem>>, vector<1x1x32x10xbf16>
    %129 = vector.shape_cast %128 : vector<1x1x32x10xbf16> to vector<32x10xbf16>
    %130 = arith.extf %129 : vector<32x10xbf16> to vector<32x10xf32>
    %131 = vector.extract_strided_slice %6 {offsets = [12, 0, 0], sizes = [1, 32, 1], strides = [1, 1, 1]} : vector<16x32x1xf32> to vector<1x32x1xf32>
    %132 = vector.shape_cast %131 : vector<1x32x1xf32> to vector<32x1xf32>
    %133 = vector.broadcast %132 : vector<32x1xf32> to vector<32x10xf32>
    %134 = arith.mulf %130, %133 : vector<32x10xf32>
    %cst_55 = arith.constant dense<0.000000e+00> : vector<10xf32>
    %135 = vector.multi_reduction <add>, %134, %cst_55 [0] : vector<32x10xf32> to vector<10xf32>
    %136 = vector.shape_cast %135 : vector<10xf32> to vector<1x10xf32>
    %137 = arith.addf %127, %136 : vector<1x10xf32>
    %c0_56 = arith.constant 0 : index
    %c0_57 = arith.constant 0 : index
    %c0_58 = arith.constant 0 : index
    %c16 = arith.constant 16 : index
    %138 = vector.load %arg3[%c0_56, %c0_57, %c0_58, %c16] : memref<1x1x32x28xbf16, #tpu.memory_space<vmem>>, vector<1x1x32x10xbf16>
    %139 = vector.shape_cast %138 : vector<1x1x32x10xbf16> to vector<32x10xbf16>
    %140 = arith.extf %139 : vector<32x10xbf16> to vector<32x10xf32>
    %141 = vector.extract_strided_slice %6 {offsets = [13, 0, 0], sizes = [1, 32, 1], strides = [1, 1, 1]} : vector<16x32x1xf32> to vector<1x32x1xf32>
    %142 = vector.shape_cast %141 : vector<1x32x1xf32> to vector<32x1xf32>
    %143 = vector.broadcast %142 : vector<32x1xf32> to vector<32x10xf32>
    %144 = arith.mulf %140, %143 : vector<32x10xf32>
    %cst_59 = arith.constant dense<0.000000e+00> : vector<10xf32>
    %145 = vector.multi_reduction <add>, %144, %cst_59 [0] : vector<32x10xf32> to vector<10xf32>
    %146 = vector.shape_cast %145 : vector<10xf32> to vector<1x10xf32>
    %147 = arith.addf %137, %146 : vector<1x10xf32>
    %c0_60 = arith.constant 0 : index
    %c0_61 = arith.constant 0 : index
    %c0_62 = arith.constant 0 : index
    %c17 = arith.constant 17 : index
    %148 = vector.load %arg3[%c0_60, %c0_61, %c0_62, %c17] : memref<1x1x32x28xbf16, #tpu.memory_space<vmem>>, vector<1x1x32x10xbf16>
    %149 = vector.shape_cast %148 : vector<1x1x32x10xbf16> to vector<32x10xbf16>
    %150 = arith.extf %149 : vector<32x10xbf16> to vector<32x10xf32>
    %151 = vector.extract_strided_slice %6 {offsets = [14, 0, 0], sizes = [1, 32, 1], strides = [1, 1, 1]} : vector<16x32x1xf32> to vector<1x32x1xf32>
    %152 = vector.shape_cast %151 : vector<1x32x1xf32> to vector<32x1xf32>
    %153 = vector.broadcast %152 : vector<32x1xf32> to vector<32x10xf32>
    %154 = arith.mulf %150, %153 : vector<32x10xf32>
    %cst_63 = arith.constant dense<0.000000e+00> : vector<10xf32>
    %155 = vector.multi_reduction <add>, %154, %cst_63 [0] : vector<32x10xf32> to vector<10xf32>
    %156 = vector.shape_cast %155 : vector<10xf32> to vector<1x10xf32>
    %157 = arith.addf %147, %156 : vector<1x10xf32>
    %c0_64 = arith.constant 0 : index
    %c0_65 = arith.constant 0 : index
    %c0_66 = arith.constant 0 : index
    %c18 = arith.constant 18 : index
    %158 = vector.load %arg3[%c0_64, %c0_65, %c0_66, %c18] : memref<1x1x32x28xbf16, #tpu.memory_space<vmem>>, vector<1x1x32x10xbf16>
    %159 = vector.shape_cast %158 : vector<1x1x32x10xbf16> to vector<32x10xbf16>
    %160 = arith.extf %159 : vector<32x10xbf16> to vector<32x10xf32>
    %161 = vector.extract_strided_slice %6 {offsets = [15, 0, 0], sizes = [1, 32, 1], strides = [1, 1, 1]} : vector<16x32x1xf32> to vector<1x32x1xf32>
    %162 = vector.shape_cast %161 : vector<1x32x1xf32> to vector<32x1xf32>
    %163 = vector.broadcast %162 : vector<32x1xf32> to vector<32x10xf32>
    %164 = arith.mulf %160, %163 : vector<32x10xf32>
    %cst_67 = arith.constant dense<0.000000e+00> : vector<10xf32>
    %165 = vector.multi_reduction <add>, %164, %cst_67 [0] : vector<32x10xf32> to vector<10xf32>
    %166 = vector.shape_cast %165 : vector<10xf32> to vector<1x10xf32>
    %167 = arith.addf %157, %166 : vector<1x10xf32>
    %c0_68 = arith.constant 0 : index
    %c0_69 = arith.constant 0 : index
    %168 = vector.load %arg8[%c0_68, %c0_69] : memref<1x10xf32, #tpu.memory_space<vmem>>, vector<1x10xf32>
    %169 = arith.addf %168, %167 : vector<1x10xf32>
    %c0_70 = arith.constant 0 : index
    %c0_71 = arith.constant 0 : index
    %170 = vector.load %arg8[%c0_70, %c0_71] : memref<1x10xf32, #tpu.memory_space<vmem>>, vector<1x10xf32>
    tpu.vector_store %arg8[%c0_70, %c0_71], %169 {strides = array<i32>} : memref<1x10xf32, #tpu.memory_space<vmem>>, vector<1x10xf32>,
    %c2_i32 = arith.constant 2 : i32
    %171 = arith.cmpi eq, %arg2, %c2_i32 : i32
    %172 = arith.extui %171 : i1 to i32
    %c0_i32_72 = arith.constant 0 : i32
    %173 = arith.cmpi ne, %172, %c0_i32_72 : i32
    scf.if %173 {
      %c0_73 = arith.constant 0 : index
      %c0_74 = arith.constant 0 : index
      %174 = vector.load %arg8[%c0_73, %c0_74] : memref<1x10xf32, #tpu.memory_space<vmem>>, vector<1x10xf32>
      %c0_75 = arith.constant 0 : index
      %c0_76 = arith.constant 0 : index
      %175 = vector.load %arg5[%c0_75, %c0_76] : memref<1x1xf32, #tpu.memory_space<vmem>>, vector<1x1xf32>
      %176 = vector.broadcast %175 : vector<1x1xf32> to vector<1x10xf32>
      %177 = arith.addf %174, %176 : vector<1x10xf32>
      %c0_77 = arith.constant 0 : index
      %c0_78 = arith.constant 0 : index
      %178 = vector.load %arg6[%c0_77, %c0_78] : memref<1x10xf32, #tpu.memory_space<vmem>>, vector<1x10xf32>
      %179 = arith.mulf %177, %178 : vector<1x10xf32>
      %c0_79 = arith.constant 0 : index
      %c0_80 = arith.constant 0 : index
      %c0_81 = arith.constant 0 : index
      %180 = vector.load %arg7[%c0_79, %c0_80, %c0_81] : memref<1x1x10xf32, #tpu.memory_space<vmem>>, vector<1x1x10xf32>
      %181 = vector.shape_cast %180 : vector<1x1x10xf32> to vector<1x10xf32>
      %182 = vector.shape_cast %179 : vector<1x10xf32> to vector<1x1x10xf32>
      tpu.vector_store %arg7[%c0_79, %c0_80, %c0_81], %182 {strides = array<i32>} : memref<1x1x10xf32, #tpu.memory_space<vmem>>, vector<1x1x10xf32>,
    } else {
    }
    return
  }
  func.func @transform_0(%arg0: i32, %arg1: i32, %arg2: i32) -> (i32, i32, i32, i32) {
    %c4_i32 = arith.constant 4 : i32
    %0 = arith.muli %arg0, %c4_i32 : i32
    %c1_i32 = arith.constant 1 : i32
    %1 = arith.muli %arg1, %c1_i32 : i32
    %2 = arith.addi %0, %1 : i32
    %3 = arith.addi %2, %arg2 : i32
    %c0_i32 = arith.constant 0 : i32
    %c0_i32_0 = arith.constant 0 : i32
    %c0_i32_1 = arith.constant 0 : i32
    %c0_i32_2 = arith.constant 0 : i32
    return %3, %c0_i32, %c0_i32_0, %c0_i32_1 : i32, i32, i32, i32
  }
  func.func @transform_1(%arg0: i32, %arg1: i32, %arg2: i32) -> (i32, i32, i32, i32) {
    %c0_i32 = arith.constant 0 : i32
    %c0_i32_0 = arith.constant 0 : i32
    %c0_i32_1 = arith.constant 0 : i32
    %c0_i32_2 = arith.constant 0 : i32
    %c0_i32_3 = arith.constant 0 : i32
    return %c0_i32, %c0_i32_0, %c0_i32_1, %c0_i32_2 : i32, i32, i32, i32
  }
  func.func @transform_2(%arg0: i32, %arg1: i32, %arg2: i32) -> (i32, i32) {
    %c0_i32 = arith.constant 0 : i32
    %c0_i32_0 = arith.constant 0 : i32
    %c0_i32_1 = arith.constant 0 : i32
    return %c0_i32, %c0_i32_0 : i32, i32
  }
  func.func @transform_3(%arg0: i32, %arg1: i32, %arg2: i32) -> (i32, i32) {
    %c0_i32 = arith.constant 0 : i32
    %c0_i32_0 = arith.constant 0 : i32
    %c0_i32_1 = arith.constant 0 : i32
    return %c0_i32, %c0_i32_0 : i32, i32
  }
  func.func @transform_4(%arg0: i32, %arg1: i32, %arg2: i32) -> (i32, i32, i32) {
    %c2_i32 = arith.constant 2 : i32
    %0 = arith.muli %arg0, %c2_i32 : i32
    %1 = arith.addi %0, %arg1 : i32
    %c0_i32 = arith.constant 0 : i32
    %c0_i32_0 = arith.constant 0 : i32
    %c0_i32_1 = arith.constant 0 : i32
    return %1, %c0_i32, %c0_i32_0 : i32, i32, i32
  }
}

</mosaic_0001>

<llo_original>
// kernel: patch_discriminator_forward.6
$region0: #{patch_discriminator_forward.6}
  #allocation0 [shape = 'u32[]', space=smem, size = 0x4, offset = 0x4, fixed_abs, tag = 'smem constant byte address 0x4 - core index']
  #allocation1 [shape = 'u32[144,128]{1,0:T(1,128)}', space=vmem, size = 0x12000, scoped, tag = 'internal scratch']
  #allocation2 [shape = 'f32[8,72]{1,0:T(8,128)}', space=vmem, size = 0x1000, scoped, tag = 'scratch operand']
  #allocation3 [shape = 'bf16[128,72]{1,0:T(16,128)(2,1)}', space=vmem, size = 0x8000, scoped, tag = 'scratch operand']
  %s0 = inlined_call_operand.vmem [shape: bf16[20,4,8,82], index: 0, kind: input, shape index: {}]
  %s1 = inlined_call_operand.vmem [shape: bf16[3,8,128], index: 1, kind: input, shape index: {}]
  %s2 = inlined_call_operand.vmem [shape: f32[8,1], index: 2, kind: input, shape index: {}]
  %s3 = inlined_call_operand.vmem [shape: f32[1,72], index: 3, kind: input, shape index: {}]
  %s4 = inlined_call_operand.vmem [shape: bf16[8,8,72], index: 4, kind: output, shape index: {}]
  %s5 = sld [smem:[#allocation0]]
  $region57: #{patch_discriminator_forward.6} parent=0
    _
  %s7 = ssub.s32 1, %s5
  %s8 = scalar_select 0, %s7, %s5
  loop: start=0, step=1, limit=26
  $region2: #{patch_discriminator_forward.6} parent=0 // loop_pre_header
    _
  $region3: #{patch_discriminator_forward.6} parent=0 // loop_header
    %s10 = sphi 0, %s14
    %p11 = scmp.ge.s32.totalorder %s10, 26
    %s17 = sphi 0, %s36
    %s18 = sphi 0, %s32
    %s19 = sphi 0, %s28
    %s20 = sphi 0, %s17
    %s21 = sphi 0, %s18
    %s22 = sphi 0, %s19
    %s23 = sphi 0, %s20
    %s24 = sphi 0, %s21
    %s25 = sphi 0, %s22
    %s47 = sphi 0, %s49
    %s50 = sphi 0, %s47
    %s51 = sphi 0, %s50
    %s67 = sphi 0, %s51
    %s71 = sphi 0, %s71
    %s73 = sphi 0, %s71
    %s74 = sphi 0, %s73
    %s88 = sphi 0, %s74
    %s92 = sphi 0, %s92
    %s94 = sphi 0, %s92
    %s95 = sphi 0, %s94
    %s109 = sphi 0, %s95
    %s113 = sphi 0, %s113
    %s115 = sphi 0, %s113
    %s116 = sphi 0, %s115
    %s130 = sphi 0, %s116
    %s140 = sphi 0, %s142
    %s143 = sphi 0, %s140
    %s144 = sphi 0, %s143
    %s160 = sphi 0, %s144
  $region4: #{patch_discriminator_forward.6} parent=0 // loop_header_branch
    %13 = sbr.rel (%p11) target = $region8
  $region5: #{patch_discriminator_forward.6} parent=0 // loop_body
    %s15 = ssub.s32 %s10, 1
    %s16 = ssub.s32 %s10, 2
    %s26 = sadd.s32 1, %s19
    %p27 = scmp.ge.s32.totalorder %s26, 3
    %s28 = scalar_select %p27, 0, %s26
    %s29 = sadd.s32 1, %s18
    %s30 = scalar_select %p27, %s29, %s18
    %p31 = scmp.ge.s32.totalorder %s30, 4
    %s32 = scalar_select %p31, 0, %s30
    %s33 = sadd.s32 1, %s17
    %s34 = scalar_select %p31, %s33, %s17
    %p35 = scmp.ge.s32.totalorder %s34, 2
    %s36 = scalar_select %p35, 0, %s34
    %s37 = smul.u32 %s17, 10
    %s38 = smul.u32 %s18, 2
    %s39 = sadd.s32 %s37, %s38
    %s40 = sadd.s32 %s39, %s19
    %s41 = smul.u32 %s36, 10
    %s42 = smul.u32 %s32, 2
    %s43 = sadd.s32 %s41, %s42
    %s44 = sadd.s32 %s43, %s28
    %s45 = ssub.s32 %s40, %s44
    %p46 = scmp.eq.s32.totalorder %s45, 0
    %s48 = sadd.s32 %s47, 1
    %s49 = scalar_select %p46, %s47, %s48
    %p52 = pneg %p46
    %p53 = scmp.eq.s32.totalorder %s10, 23
    %p54 = por %p52, %p53
    %p55 = scmp.ne.s32.totalorder %s47, %s50
    %p56 = scmp.eq.s32.totalorder %s10, 0
    %p57 = por %p55, %p56
    %p58 = scmp.ne.s32.totalorder %s47, %s50
    %p59 = scmp.eq.s32.totalorder %s15, 23
    %p60 = por %p58, %p59
    %p61 = scmp.ne.s32.totalorder %s50, %s51
    %p62 = scmp.eq.s32.totalorder %s15, 0
    %p63 = por %p61, %p62
    %p64 = scmp.ne.s32.totalorder %s50, %s51
    %p65 = scmp.eq.s32.totalorder %s16, 23
    %p66 = por %p64, %p65
    %p68 = scmp.ne.s32.totalorder %s51, %s67
    %p69 = scmp.eq.s32.totalorder %s16, 0
    %p70 = por %p68, %p69
    %s72 = sadd.s32 %s71, 1
    %p75 = scmp.eq.s32.totalorder %s10, 23
    %p76 = scmp.ne.s32.totalorder %s71, %s73
    %p77 = scmp.eq.s32.totalorder %s10, 0
    %p78 = por %p76, %p77
    %p79 = scmp.ne.s32.totalorder %s71, %s73
    %p80 = scmp.eq.s32.totalorder %s15, 23
    %p81 = por %p79, %p80
    %p82 = scmp.ne.s32.totalorder %s73, %s74
    %p83 = scmp.eq.s32.totalorder %s15, 0
    %p84 = por %p82, %p83
    %p85 = scmp.ne.s32.totalorder %s73, %s74
    %p86 = scmp.eq.s32.totalorder %s16, 23
    %p87 = por %p85, %p86
    %p89 = scmp.ne.s32.totalorder %s74, %s88
    %p90 = scmp.eq.s32.totalorder %s16, 0
    %p91 = por %p89, %p90
    %s93 = sadd.s32 %s92, 1
    %p96 = scmp.eq.s32.totalorder %s10, 23
    %p97 = scmp.ne.s32.totalorder %s92, %s94
    %p98 = scmp.eq.s32.totalorder %s10, 0
    %p99 = por %p97, %p98
    %p100 = scmp.ne.s32.totalorder %s92, %s94
    %p101 = scmp.eq.s32.totalorder %s15, 23
    %p102 = por %p100, %p101
    %p103 = scmp.ne.s32.totalorder %s94, %s95
    %p104 = scmp.eq.s32.totalorder %s15, 0
    %p105 = por %p103, %p104
    %p106 = scmp.ne.s32.totalorder %s94, %s95
    %p107 = scmp.eq.s32.totalorder %s16, 23
    %p108 = por %p106, %p107
    %p110 = scmp.ne.s32.totalorder %s95, %s109
    %p111 = scmp.eq.s32.totalorder %s16, 0
    %p112 = por %p110, %p111
    %s114 = sadd.s32 %s113, 1
    %p117 = scmp.eq.s32.totalorder %s10, 23
    %p118 = scmp.ne.s32.totalorder %s113, %s115
    %p119 = scmp.eq.s32.totalorder %s10, 0
    %p120 = por %p118, %p119
    %p121 = scmp.ne.s32.totalorder %s113, %s115
    %p122 = scmp.eq.s32.totalorder %s15, 23
    %p123 = por %p121, %p122
    %p124 = scmp.ne.s32.totalorder %s115, %s116
    %p125 = scmp.eq.s32.totalorder %s15, 0
    %p126 = por %p124, %p125
    %p127 = scmp.ne.s32.totalorder %s115, %s116
    %p128 = scmp.eq.s32.totalorder %s16, 23
    %p129 = por %p127, %p128
    %p131 = scmp.ne.s32.totalorder %s116, %s130
    %p132 = scmp.eq.s32.totalorder %s16, 0
    %p133 = por %p131, %p132
    %s134 = smul.u32 %s17, 4
    %s135 = sadd.s32 %s134, %s18
    %s136 = smul.u32 %s36, 4
    %s137 = sadd.s32 %s136, %s32
    %s138 = ssub.s32 %s135, %s137
    %p139 = scmp.eq.s32.totalorder %s138, 0
    %s141 = sadd.s32 %s140, 1
    %s142 = scalar_select %p139, %s140, %s141
    %p145 = pneg %p139
    %p146 = scmp.eq.s32.totalorder %s10, 23
    %p147 = por %p145, %p146
    %p148 = scmp.ne.s32.totalorder %s140, %s143
    %p149 = scmp.eq.s32.totalorder %s10, 0
    %p150 = por %p148, %p149
    %p151 = scmp.ne.s32.totalorder %s140, %s143
    %p152 = scmp.eq.s32.totalorder %s15, 23
    %p153 = por %p151, %p152
    %p154 = scmp.ne.s32.totalorder %s143, %s144
    %p155 = scmp.eq.s32.totalorder %s15, 0
    %p156 = por %p154, %p155
    %p157 = scmp.ne.s32.totalorder %s143, %s144
    %p158 = scmp.eq.s32.totalorder %s16, 23
    %p159 = por %p157, %p158
    %p161 = scmp.ne.s32.totalorder %s144, %s160
    %p162 = scmp.eq.s32.totalorder %s16, 0
    %p163 = por %p161, %p162
    %p164 = scmp.le.s32.totalorder 1, %s10
    %p165 = scmp.lt.s32.totalorder %s10, 25
    %p166 = pnand %p164, %p165
    %p167 = pneg %p166
    // Predicated region
    $region9: #{patch_discriminator_forward.6} parent=5 // pred_check
      _
    $region10: #{patch_discriminator_forward.6} parent=5 // pred_check_branch
      %169 = sbr.rel (%p166) target = $region12
    $region11: #{patch_discriminator_forward.6} parent=5 // pred_region
      %s170 = ssub.s32 %s10, 1
      // Predicated region
      $region13: #{patch_discriminator_forward.6} parent=11 // pred_check
        %p171 = pneg %p84
      $region14: #{patch_discriminator_forward.6} parent=11 // pred_check_branch
        %173 = sbr.rel (%p171) target = $region16
      $region15: #{patch_discriminator_forward.6} parent=11 // pred_region
        _
      $region16: #{patch_discriminator_forward.6} parent=11 // pred_fallthru
        _
      // Predicated region
      $region17: #{patch_discriminator_forward.6} parent=11 // pred_check
        %p174 = pneg %p105
      $region18: #{patch_discriminator_forward.6} parent=11 // pred_check_branch
        %176 = sbr.rel (%p174) target = $region20
      $region19: #{patch_discriminator_forward.6} parent=11 // pred_region
        _
      $region20: #{patch_discriminator_forward.6} parent=11 // pred_fallthru
        _
      // Predicated region
      $region21: #{patch_discriminator_forward.6} parent=11 // pred_check
        %p177 = pneg %p126
      $region22: #{patch_discriminator_forward.6} parent=11 // pred_check_branch
        %179 = sbr.rel (%p177) target = $region24
      $region23: #{patch_discriminator_forward.6} parent=11 // pred_region
        _
      $region24: #{patch_discriminator_forward.6} parent=11 // pred_fallthru
        _
    $region12: #{patch_discriminator_forward.6} parent=5 // pred_fallthru
      _
    %p180 = scmp.lt.s32.totalorder %s10, 24
    // Predicated region
    $region25: #{patch_discriminator_forward.6} parent=5 // pred_check
      %p181 = pneg %p180
    $region26: #{patch_discriminator_forward.6} parent=5 // pred_check_branch
      %183 = sbr.rel (%p181) target = $region28
    $region27: #{patch_discriminator_forward.6} parent=5 // pred_region
      // Predicated region
      $region29: #{patch_discriminator_forward.6} parent=27 // pred_check
        %p184 = pneg %p57
      $region30: #{patch_discriminator_forward.6} parent=27 // pred_check_branch
        %186 = sbr.rel (%p184) target = $region32
      $region31: #{patch_discriminator_forward.6} parent=27 // pred_region
        %s187 = smul.u32 %s17, 10
        %s188 = smul.u32 %s18, 2
        %s189 = sadd.s32 %s187, %s188
        %s190 = sadd.s32 %s189, %s19
        %p191 = scmp.lt.s32.totalorder %s190, 19
        %s192 = scalar_select %p191, %s190, 19
        %s193 = smul.addr %s192, 4
        %s194 = smul.addr %s193, 4
        %s195 = scalar_lea.vmem %s0, %s194
        %s196 = smul.u32 %s17, 10
        %s197 = smul.u32 %s18, 2
        %s198 = sadd.s32 %s196, %s197
        %s199 = sadd.s32 %s198, %s19
      $region32: #{patch_discriminator_forward.6} parent=27 // pred_fallthru
        _
    $region28: #{patch_discriminator_forward.6} parent=5 // pred_fallthru
      _
    %p200 = scmp.le.s32.totalorder 1, %s10
    %p201 = scmp.lt.s32.totalorder %s10, 25
    %p202 = pnand %p200, %p201
    %p203 = pneg %p202
    // Predicated region
    $region33: #{patch_discriminator_forward.6} parent=5 // pred_check
      _
    $region34: #{patch_discriminator_forward.6} parent=5 // pred_check_branch
      %205 = sbr.rel (%p202) target = $region36
    $region35: #{patch_discriminator_forward.6} parent=5 // pred_region
      %s206 = ssub.s32 %s10, 1
      %s207 = smul.u32 %s20, 10
      %s208 = smul.u32 %s21, 2
      %s209 = sadd.s32 %s207, %s208
      %s210 = sadd.s32 %s209, %s22
      %p211 = scmp.lt.s32.totalorder %s210, 19
      %s212 = scalar_select %p211, %s210, 19
      %s213 = smul.addr %s212, 4
      %s214 = smul.addr %s213, 4
      %s215 = scalar_lea.vmem %s0, %s214
      %p216 = pneg %p63
      %p217 = pneg %p60
      %p218 = pneg %p84
      %p219 = pneg %p81
      %p220 = pneg %p105
      %p221 = pneg %p102
      %p222 = pneg %p126
      %p223 = pneg %p123
      %p224 = pneg %p156
      %p225 = pneg %p153
      %s226 = smul.u32 %s20, 4
      %s227 = sadd.s32 %s226, %s21
      %p228 = scmp.lt.s32.totalorder %s227, 7
      %s229 = scalar_select %p228, %s227, 7
      %s230 = smul.addr %s229, 4
      %s231 = scalar_lea.vmem %s4, %s230
      %s232 = smul.u32 %s20, 10
      %s233 = smul.u32 %s21, 2
      %s234 = sadd.s32 %s232, %s233
      %s235 = sadd.s32 %s234, %s22
      %p236 = scmp.lt.s32.totalorder %s235, 19
      %s237 = scalar_select %p236, %s235, 19
      %s238 = smul.addr %s237, 4
      %s239 = smul.addr %s238, 4
      %s240 = scalar_lea.vmem %s0, %s239
      %s241 = smul.u32 %s20, 10
      %s242 = smul.u32 %s21, 2
      %s243 = sadd.s32 %s241, %s242
      %s244 = sadd.s32 %s243, %s22
      %s245 = smul.u32 %s20, 4
      %s246 = sadd.s32 %s245, %s21
      %p247 = scmp.lt.s32.totalorder %s246, 7
      %s248 = scalar_select %p247, %s246, 7
      %s249 = smul.addr %s248, 4
      %s250 = scalar_lea.vmem %s4, %s249
      %s251 = smul.u32 %s20, 4
      %s252 = sadd.s32 %s251, %s21
      %p254 = scmp.eq.s32.totalorder %s22, 0
      // Predicated region
      $region37: #{patch_discriminator_forward.6} parent=35 // pred_check
        %p255 = pneg %p254
      $region38: #{patch_discriminator_forward.6} parent=35 // pred_check_branch
        %257 = sbr.rel (%p255) target = $region40
      $region39: #{patch_discriminator_forward.6} parent=35 // pred_region
        %vm258 = vcmask 588800
        %259 = vst.msk [vmem:[#allocation2] sm:$0xff] %vm258, 0.0
      $region40: #{patch_discriminator_forward.6} parent=35 // pred_fallthru
        _
      %v260 = vld [vmem:[%s240] sm:$0xf]
      %vm261 = vcmask 584704
      %262 = vst.msk [vmem:[#allocation3] sm:$0xf] %vm261, %v260
      %s263 = scalar_lea.vmem %s240, 4
      %v264 = vld [vmem:[%s263] sm:$0xf]
      %v266 = vunpack.c.l.b16 %v264
      %v267 = vpack.c.b16 %v266, %v266
      %vm269 = vcmask 588804
      %270 = vst.msk [vmem:[#allocation3] sm:$0xf0] %vm269, %v267
      %v271 = vld [vmem:[%s240] sm:$0xf]
      %v273 = vunpack.c.l.b16 %v271
      %v274 = vpack.c.b16 %v273, %v273
      %275 = vrot.lane.b32.xlu0 %v274, 127
      %v276 = vpop.permute.xlu0 %275
      %278 = vst.msk [vmem:[#allocation3 + $0x8] sm:$0xf] %vm261, %v276
      %v279 = vld [vmem:[%s263] sm:$0xf]
      %v281 = vunpack.c.l.b16 %v279
      %v282 = vpack.c.b16 %v281, %v281
      %283 = vrot.lane.b32.xlu0 %v282, 127
      %v284 = vpop.permute.xlu0 %283
      %286 = vst.msk [vmem:[#allocation3 + $0x8] sm:$0xf0] %vm269, %v284
      %s287 = scalar_lea.vmem %s240, 8
      %v288 = vld [vmem:[%s287] sm:$0xf]
      %289 = vst.msk [vmem:[#allocation3 + $0x10] sm:$0xf] %vm261, %v288
      %s290 = scalar_lea.vmem %s240, 12
      %v291 = vld [vmem:[%s290] sm:$0xf]
      %v293 = vunpack.c.l.b16 %v291
      %v294 = vpack.c.b16 %v293, %v293
      %296 = vst.msk [vmem:[#allocation3 + $0x10] sm:$0xf0] %vm269, %v294
      %v297 = vld [vmem:[%s287] sm:$0xf]
      %v299 = vunpack.c.l.b16 %v297
      %v300 = vpack.c.b16 %v299, %v299
      %301 = vrot.lane.b32.xlu0 %v300, 127
      %v302 = vpop.permute.xlu0 %301
      %304 = vst.msk [vmem:[#allocation3 + $0x18] sm:$0xf] %vm261, %v302
      %v305 = vld [vmem:[%s290] sm:$0xf]
      %v307 = vunpack.c.l.b16 %v305
      %v308 = vpack.c.b16 %v307, %v307
      %309 = vrot.lane.b32.xlu0 %v308, 127
      %v310 = vpop.permute.xlu0 %309
      %312 = vst.msk [vmem:[#allocation3 + $0x18] sm:$0xf0] %vm269, %v310
      %v313 = vld [vmem:[%s240] sm:$0xf]
      %v315 = vunpack.c.l.b16 %v313
      %v316 = vpack.c.b16 %v315, %v315
      %317 = vrot.lane.b32.xlu0 %v316, 119
      %v318 = vpop.permute.xlu0 %317
      %320 = vst.msk [vmem:[#allocation3 + $0x20] sm:$0xf] %vm261, %v318
      %v321 = vld [vmem:[%s263] sm:$0xf]
      %v323 = vunpack.c.l.b16 %v321
      %v324 = vpack.c.b16 %v323, %v323
      %325 = vrot.lane.b32.xlu0 %v324, 119
      %v326 = vpop.permute.xlu0 %325
      %328 = vst.msk [vmem:[#allocation3 + $0x20] sm:$0xf0] %vm269, %v326
      %v329 = vld [vmem:[%s240] sm:$0xf]
      %v331 = vunpack.c.l.b16 %v329
      %v332 = vpack.c.b16 %v331, %v331
      %333 = vrot.lane.b32.xlu0 %v332, 118
      %v334 = vpop.permute.xlu0 %333
      %336 = vst.msk [vmem:[#allocation3 + $0x28] sm:$0xf] %vm261, %v334
      %v337 = vld [vmem:[%s263] sm:$0xf]
      %v339 = vunpack.c.l.b16 %v337
      %v340 = vpack.c.b16 %v339, %v339
      %341 = vrot.lane.b32.xlu0 %v340, 118
      %v342 = vpop.permute.xlu0 %341
      %344 = vst.msk [vmem:[#allocation3 + $0x28] sm:$0xf0] %vm269, %v342
      %v345 = vld [vmem:[%s287] sm:$0xf]
      %v347 = vunpack.c.l.b16 %v345
      %v348 = vpack.c.b16 %v347, %v347
      %349 = vrot.lane.b32.xlu0 %v348, 119
      %v350 = vpop.permute.xlu0 %349
      %352 = vst.msk [vmem:[#allocation3 + $0x30] sm:$0xf] %vm261, %v350
      %v353 = vld [vmem:[%s290] sm:$0xf]
      %v355 = vunpack.c.l.b16 %v353
      %v356 = vpack.c.b16 %v355, %v355
      %357 = vrot.lane.b32.xlu0 %v356, 119
      %v358 = vpop.permute.xlu0 %357
      %360 = vst.msk [vmem:[#allocation3 + $0x30] sm:$0xf0] %vm269, %v358
      %v361 = vld [vmem:[%s287] sm:$0xf]
      %v363 = vunpack.c.l.b16 %v361
      %v364 = vpack.c.b16 %v363, %v363
      %365 = vrot.lane.b32.xlu0 %v364, 118
      %v366 = vpop.permute.xlu0 %365
      %368 = vst.msk [vmem:[#allocation3 + $0x38] sm:$0xf] %vm261, %v366
      %v369 = vld [vmem:[%s290] sm:$0xf]
      %v371 = vunpack.c.l.b16 %v369
      %v372 = vpack.c.b16 %v371, %v371
      %373 = vrot.lane.b32.xlu0 %v372, 118
      %v374 = vpop.permute.xlu0 %373
      %376 = vst.msk [vmem:[#allocation3 + $0x38] sm:$0xf0] %vm269, %v374
      %v377 = vld [vmem:[#allocation2] sm:$0xff]
      %s378 = smul.addr %s22, 4
      %s379 = scalar_lea.vmem %s1, %s378
      %v380 = vld [vmem:[%s379] sm:$0xf]
      %v381 = vld [vmem:[#allocation3] sm:$0xff]
      %v382 = vld [vmem:[#allocation3 + $0x8] sm:$0xff]
      %v383 = vld [vmem:[#allocation3 + $0x10] sm:$0xff]
      %v384 = vld [vmem:[#allocation3 + $0x18] sm:$0xff]
      %v385 = vld [vmem:[#allocation3 + $0x20] sm:$0xff]
      %v386 = vld [vmem:[#allocation3 + $0x28] sm:$0xff]
      %v387 = vld [vmem:[#allocation3 + $0x30] sm:$0xff]
      %v388 = vld [vmem:[#allocation3 + $0x38] sm:$0xff]
      %389 = vmatprep.subr.bf16.mxu0 0
      %390 = vmatpush1.bf16.msra.mxu0 %v381
      %391 = vmatprep.subr.bf16.mxu0 0
      %392 = vmatpush1.bf16.msra.mxu0 %v382
      %393 = vmatprep.subr.bf16.mxu0 0
      %394 = vmatpush1.bf16.msra.mxu0 %v383
      %395 = vmatprep.subr.bf16.mxu0 0
      %396 = vmatpush1.bf16.msra.mxu0 %v384
      %397 = vmatprep.subr.bf16.mxu0 0
      %398 = vmatpush1.bf16.msra.mxu0 %v385
      %399 = vmatprep.subr.bf16.mxu0 0
      %400 = vmatpush1.bf16.msra.mxu0 %v386
      %401 = vmatprep.subr.bf16.mxu0 0
      %402 = vmatpush1.bf16.msra.mxu0 %v387
      %403 = vmatprep.subr.bf16.mxu0 0
      %404 = vmatpush1.bf16.msra.mxu0 %v388
      %405 = vmatprep.subr.bf16.mxu0 0
      %406 = vmatpush1.bf16.msra.mxu0 0
      %407 = vmatprep.subr.bf16.mxu0 0
      %408 = vmatpush1.bf16.msra.mxu0 0
      %409 = vmatprep.subr.bf16.mxu0 0
      %410 = vmatpush1.bf16.msra.mxu0 0
      %411 = vmatprep.subr.bf16.mxu0 0
      %412 = vmatpush1.bf16.msra.mxu0 0
      %413 = vmatprep.subr.bf16.mxu0 0
      %414 = vmatpush1.bf16.msra.mxu0 0
      %415 = vmatprep.subr.bf16.mxu0 0
      %416 = vmatpush1.bf16.msra.mxu0 0
      %417 = vmatprep.subr.bf16.mxu0 0
      %418 = vmatpush1.bf16.msra.mxu0 0
      %419 = vmatprep.subr.bf16.mxu0 0
      %420 = vmatpush1.bf16.msra.mxu0 0
      %421 = vmatprep.mubr.bf16.mxu0 0
      %422 = vmatmul.mubr.bf16.gmra.mrb[0].mxu0 %v380
      %v423 = vpop.f32.mrb[0].mxu0
      %v424 = vadd.f32 0.0, %v423
      %v425 = vpop.f32.mrb[0].mxu0
      %v426 = vpop.f32.mrb[0].mxu0
      %v427 = vpop.f32.mrb[0].mxu0
      %428 = vdwg.mxu0
      %v429 = vadd.f32 %v377, %v424
      %vm430 = vcmask 588800
      %431 = vst.msk [vmem:[#allocation2] sm:$0xff] %vm430, %v429
      %p432 = scmp.eq.s32.totalorder %s22, 2
      // Predicated region
      $region41: #{patch_discriminator_forward.6} parent=35 // pred_check
        %p433 = pneg %p432
      $region42: #{patch_discriminator_forward.6} parent=35 // pred_check_branch
        %435 = sbr.rel (%p433) target = $region44
      $region43: #{patch_discriminator_forward.6} parent=35 // pred_region
        %v436 = vld [vmem:[#allocation2] sm:$0xff]
        %v437 = vld [vmem:[%s2] sm:$0xff]
        %439 = vset.pattern.permute.xlu0 0
        %440 = vperm.xlu0 %439, %v437
        %v441 = vpop.permute.xlu0 %440
        %v443 = vadd.f32 %v436, %v441
        %vm444 = vcmp.ge.f32.partialorder %v443, 0.0
        %v445 = vmul.f32 %v443, 0.2
        %v446 = vsel %vm444, %v443, %v445
        %v447 = vld [vmem:[%s3] sm:$0x1]
        %v449 = vlaneseq
        %v450 = vshrl.u32 %v449, 7
        %v451 = vsub.s32 0, %v450
        %v452 = vrot.slane %v447, %v451
        %v454 = vmul.f32 %v446, %v452
        %v455 = vpack.c.bf16 %v454, %v454
        %456 = vst.msk [vmem:[%s250] sm:$0xf] %vm261, %v455
      $region44: #{patch_discriminator_forward.6} parent=35 // pred_fallthru
        _
      %s457 = smul.u32 %s20, 4
      %s458 = sadd.s32 %s457, %s21
      %p459 = scmp.lt.s32.totalorder %s458, 7
      %s460 = scalar_select %p459, %s458, 7
      %s461 = smul.addr %s460, 4
      %s462 = scalar_lea.vmem %s4, %s461
      // Predicated region
      $region45: #{patch_discriminator_forward.6} parent=35 // pred_check
        %p463 = pneg %p153
      $region46: #{patch_discriminator_forward.6} parent=35 // pred_check_branch
        %465 = sbr.rel (%p463) target = $region48
      $region47: #{patch_discriminator_forward.6} parent=35 // pred_region
        %s466 = smul.u32 %s20, 4
        %s467 = sadd.s32 %s466, %s21
      $region48: #{patch_discriminator_forward.6} parent=35 // pred_fallthru
        _
    $region36: #{patch_discriminator_forward.6} parent=5 // pred_fallthru
      _
    %p468 = scmp.le.s32.totalorder 2, %s10
    // Predicated region
    $region49: #{patch_discriminator_forward.6} parent=5 // pred_check
      %p469 = pneg %p468
    $region50: #{patch_discriminator_forward.6} parent=5 // pred_check_branch
      %471 = sbr.rel (%p469) target = $region52
    $region51: #{patch_discriminator_forward.6} parent=5 // pred_region
      %s472 = ssub.s32 %s10, 2
      // Predicated region
      $region53: #{patch_discriminator_forward.6} parent=51 // pred_check
        %p473 = pneg %p159
      $region54: #{patch_discriminator_forward.6} parent=51 // pred_check_branch
        %475 = sbr.rel (%p473) target = $region56
      $region55: #{patch_discriminator_forward.6} parent=51 // pred_region
        %s476 = smul.u32 %s23, 4
        %s477 = sadd.s32 %s476, %s24
        %p478 = scmp.lt.s32.totalorder %s477, 7
        %s479 = scalar_select %p478, %s477, 7
        %s480 = smul.addr %s479, 4
        %s481 = scalar_lea.vmem %s4, %s480
      $region56: #{patch_discriminator_forward.6} parent=51 // pred_fallthru
        _
    $region52: #{patch_discriminator_forward.6} parent=5 // pred_fallthru
      _
  $region6: #{patch_discriminator_forward.6} parent=0 // loop_footer
    %s14 = sadd.s32 1, %s10
  $region7: #{patch_discriminator_forward.6} parent=0 // loop_footer_branch
    %9 = sbr.rel target = $region3
  $region8: #{patch_discriminator_forward.6} parent=0 // loop_exit
    _

// kernel: patch_discriminator_forward.7
$region0: #{patch_discriminator_forward.7}
  #allocation0 [shape = 'u32[]', space=smem, size = 0x4, offset = 0x4, fixed_abs, tag = 'smem constant byte address 0x4 - core index']
  #allocation1 [shape = 'u32[144,128]{1,0:T(1,128)}', space=vmem, size = 0x12000, scoped, tag = 'internal scratch']
  #allocation2 [shape = 'f32[16,20]{1,0:T(8,128)}', space=vmem, size = 0x2000, scoped, tag = 'scratch operand']
  #allocation3 [shape = 'bf16[128,20]{1,0:T(16,128)(2,1)}', space=vmem, size = 0x8000, scoped, tag = 'scratch operand']
  %s0 = inlined_call_operand.vmem [shape: bf16[12,4,8,26], index: 0, kind: input, shape index: {}]
  %s1 = inlined_call_operand.vmem [shape: bf16[3,16,128], index: 1, kind: input, shape index: {}]
  %s2 = inlined_call_operand.vmem [shape: f32[16,1], index: 2, kind: input, shape index: {}]
  %s3 = inlined_call_operand.vmem [shape: f32[1,20], index: 3, kind: input, shape index: {}]
  %s4 = inlined_call_operand.vmem [shape: bf16[4,16,20], index: 4, kind: output, shape index: {}]
  %s5 = sld [smem:[#allocation0]]
  $region57: #{patch_discriminator_forward.7} parent=0
    _
  %s7 = ssub.s32 1, %s5
  %s8 = scalar_select 0, %s7, %s5
  loop: start=0, step=1, limit=14
  $region2: #{patch_discriminator_forward.7} parent=0 // loop_pre_header
    _
  $region3: #{patch_discriminator_forward.7} parent=0 // loop_header
    %s10 = sphi 0, %s14
    %p11 = scmp.ge.s32.totalorder %s10, 14
    %s17 = sphi 0, %s36
    %s18 = sphi 0, %s32
    %s19 = sphi 0, %s28
    %s20 = sphi 0, %s17
    %s21 = sphi 0, %s18
    %s22 = sphi 0, %s19
    %s23 = sphi 0, %s20
    %s24 = sphi 0, %s21
    %s25 = sphi 0, %s22
    %s47 = sphi 0, %s49
    %s50 = sphi 0, %s47
    %s51 = sphi 0, %s50
    %s67 = sphi 0, %s51
    %s71 = sphi 0, %s71
    %s73 = sphi 0, %s71
    %s74 = sphi 0, %s73
    %s88 = sphi 0, %s74
    %s92 = sphi 0, %s92
    %s94 = sphi 0, %s92
    %s95 = sphi 0, %s94
    %s109 = sphi 0, %s95
    %s113 = sphi 0, %s113
    %s115 = sphi 0, %s113
    %s116 = sphi 0, %s115
    %s130 = sphi 0, %s116
    %s140 = sphi 0, %s142
    %s143 = sphi 0, %s140
    %s144 = sphi 0, %s143
    %s160 = sphi 0, %s144
  $region4: #{patch_discriminator_forward.7} parent=0 // loop_header_branch
    %13 = sbr.rel (%p11) target = $region8
  $region5: #{patch_discriminator_forward.7} parent=0 // loop_body
    %s15 = ssub.s32 %s10, 1
    %s16 = ssub.s32 %s10, 2
    %s26 = sadd.s32 1, %s19
    %p27 = scmp.ge.s32.totalorder %s26, 3
    %s28 = scalar_select %p27, 0, %s26
    %s29 = sadd.s32 1, %s18
    %s30 = scalar_select %p27, %s29, %s18
    %p31 = scmp.ge.s32.totalorder %s30, 2
    %s32 = scalar_select %p31, 0, %s30
    %s33 = sadd.s32 1, %s17
    %s34 = scalar_select %p31, %s33, %s17
    %p35 = scmp.ge.s32.totalorder %s34, 2
    %s36 = scalar_select %p35, 0, %s34
    %s37 = smul.u32 %s17, 6
    %s38 = smul.u32 %s18, 2
    %s39 = sadd.s32 %s37, %s38
    %s40 = sadd.s32 %s39, %s19
    %s41 = smul.u32 %s36, 6
    %s42 = smul.u32 %s32, 2
    %s43 = sadd.s32 %s41, %s42
    %s44 = sadd.s32 %s43, %s28
    %s45 = ssub.s32 %s40, %s44
    %p46 = scmp.eq.s32.totalorder %s45, 0
    %s48 = sadd.s32 %s47, 1
    %s49 = scalar_select %p46, %s47, %s48
    %p52 = pneg %p46
    %p53 = scmp.eq.s32.totalorder %s10, 11
    %p54 = por %p52, %p53
    %p55 = scmp.ne.s32.totalorder %s47, %s50
    %p56 = scmp.eq.s32.totalorder %s10, 0
    %p57 = por %p55, %p56
    %p58 = scmp.ne.s32.totalorder %s47, %s50
    %p59 = scmp.eq.s32.totalorder %s15, 11
    %p60 = por %p58, %p59
    %p61 = scmp.ne.s32.totalorder %s50, %s51
    %p62 = scmp.eq.s32.totalorder %s15, 0
    %p63 = por %p61, %p62
    %p64 = scmp.ne.s32.totalorder %s50, %s51
    %p65 = scmp.eq.s32.totalorder %s16, 11
    %p66 = por %p64, %p65
    %p68 = scmp.ne.s32.totalorder %s51, %s67
    %p69 = scmp.eq.s32.totalorder %s16, 0
    %p70 = por %p68, %p69
    %s72 = sadd.s32 %s71, 1
    %p75 = scmp.eq.s32.totalorder %s10, 11
    %p76 = scmp.ne.s32.totalorder %s71, %s73
    %p77 = scmp.eq.s32.totalorder %s10, 0
    %p78 = por %p76, %p77
    %p79 = scmp.ne.s32.totalorder %s71, %s73
    %p80 = scmp.eq.s32.totalorder %s15, 11
    %p81 = por %p79, %p80
    %p82 = scmp.ne.s32.totalorder %s73, %s74
    %p83 = scmp.eq.s32.totalorder %s15, 0
    %p84 = por %p82, %p83
    %p85 = scmp.ne.s32.totalorder %s73, %s74
    %p86 = scmp.eq.s32.totalorder %s16, 11
    %p87 = por %p85, %p86
    %p89 = scmp.ne.s32.totalorder %s74, %s88
    %p90 = scmp.eq.s32.totalorder %s16, 0
    %p91 = por %p89, %p90
    %s93 = sadd.s32 %s92, 1
    %p96 = scmp.eq.s32.totalorder %s10, 11
    %p97 = scmp.ne.s32.totalorder %s92, %s94
    %p98 = scmp.eq.s32.totalorder %s10, 0
    %p99 = por %p97, %p98
    %p100 = scmp.ne.s32.totalorder %s92, %s94
    %p101 = scmp.eq.s32.totalorder %s15, 11
    %p102 = por %p100, %p101
    %p103 = scmp.ne.s32.totalorder %s94, %s95
    %p104 = scmp.eq.s32.totalorder %s15, 0
    %p105 = por %p103, %p104
    %p106 = scmp.ne.s32.totalorder %s94, %s95
    %p107 = scmp.eq.s32.totalorder %s16, 11
    %p108 = por %p106, %p107
    %p110 = scmp.ne.s32.totalorder %s95, %s109
    %p111 = scmp.eq.s32.totalorder %s16, 0
    %p112 = por %p110, %p111
    %s114 = sadd.s32 %s113, 1
    %p117 = scmp.eq.s32.totalorder %s10, 11
    %p118 = scmp.ne.s32.totalorder %s113, %s115
    %p119 = scmp.eq.s32.totalorder %s10, 0
    %p120 = por %p118, %p119
    %p121 = scmp.ne.s32.totalorder %s113, %s115
    %p122 = scmp.eq.s32.totalorder %s15, 11
    %p123 = por %p121, %p122
    %p124 = scmp.ne.s32.totalorder %s115, %s116
    %p125 = scmp.eq.s32.totalorder %s15, 0
    %p126 = por %p124, %p125
    %p127 = scmp.ne.s32.totalorder %s115, %s116
    %p128 = scmp.eq.s32.totalorder %s16, 11
    %p129 = por %p127, %p128
    %p131 = scmp.ne.s32.totalorder %s116, %s130
    %p132 = scmp.eq.s32.totalorder %s16, 0
    %p133 = por %p131, %p132
    %s134 = smul.u32 %s17, 2
    %s135 = sadd.s32 %s134, %s18
    %s136 = smul.u32 %s36, 2
    %s137 = sadd.s32 %s136, %s32
    %s138 = ssub.s32 %s135, %s137
    %p139 = scmp.eq.s32.totalorder %s138, 0
    %s141 = sadd.s32 %s140, 1
    %s142 = scalar_select %p139, %s140, %s141
    %p145 = pneg %p139
    %p146 = scmp.eq.s32.totalorder %s10, 11
    %p147 = por %p145, %p146
    %p148 = scmp.ne.s32.totalorder %s140, %s143
    %p149 = scmp.eq.s32.totalorder %s10, 0
    %p150 = por %p148, %p149
    %p151 = scmp.ne.s32.totalorder %s140, %s143
    %p152 = scmp.eq.s32.totalorder %s15, 11
    %p153 = por %p151, %p152
    %p154 = scmp.ne.s32.totalorder %s143, %s144
    %p155 = scmp.eq.s32.totalorder %s15, 0
    %p156 = por %p154, %p155
    %p157 = scmp.ne.s32.totalorder %s143, %s144
    %p158 = scmp.eq.s32.totalorder %s16, 11
    %p159 = por %p157, %p158
    %p161 = scmp.ne.s32.totalorder %s144, %s160
    %p162 = scmp.eq.s32.totalorder %s16, 0
    %p163 = por %p161, %p162
    %p164 = scmp.le.s32.totalorder 1, %s10
    %p165 = scmp.lt.s32.totalorder %s10, 13
    %p166 = pnand %p164, %p165
    %p167 = pneg %p166
    // Predicated region
    $region9: #{patch_discriminator_forward.7} parent=5 // pred_check
      _
    $region10: #{patch_discriminator_forward.7} parent=5 // pred_check_branch
      %169 = sbr.rel (%p166) target = $region12
    $region11: #{patch_discriminator_forward.7} parent=5 // pred_region
      %s170 = ssub.s32 %s10, 1
      // Predicated region
      $region13: #{patch_discriminator_forward.7} parent=11 // pred_check
        %p171 = pneg %p84
      $region14: #{patch_discriminator_forward.7} parent=11 // pred_check_branch
        %173 = sbr.rel (%p171) target = $region16
      $region15: #{patch_discriminator_forward.7} parent=11 // pred_region
        _
      $region16: #{patch_discriminator_forward.7} parent=11 // pred_fallthru
        _
      // Predicated region
      $region17: #{patch_discriminator_forward.7} parent=11 // pred_check
        %p174 = pneg %p105
      $region18: #{patch_discriminator_forward.7} parent=11 // pred_check_branch
        %176 = sbr.rel (%p174) target = $region20
      $region19: #{patch_discriminator_forward.7} parent=11 // pred_region
        _
      $region20: #{patch_discriminator_forward.7} parent=11 // pred_fallthru
        _
      // Predicated region
      $region21: #{patch_discriminator_forward.7} parent=11 // pred_check
        %p177 = pneg %p126
      $region22: #{patch_discriminator_forward.7} parent=11 // pred_check_branch
        %179 = sbr.rel (%p177) target = $region24
      $region23: #{patch_discriminator_forward.7} parent=11 // pred_region
        _
      $region24: #{patch_discriminator_forward.7} parent=11 // pred_fallthru
        _
    $region12: #{patch_discriminator_forward.7} parent=5 // pred_fallthru
      _
    %p180 = scmp.lt.s32.totalorder %s10, 12
    // Predicated region
    $region25: #{patch_discriminator_forward.7} parent=5 // pred_check
      %p181 = pneg %p180
    $region26: #{patch_discriminator_forward.7} parent=5 // pred_check_branch
      %183 = sbr.rel (%p181) target = $region28
    $region27: #{patch_discriminator_forward.7} parent=5 // pred_region
      // Predicated region
      $region29: #{patch_discriminator_forward.7} parent=27 // pred_check
        %p184 = pneg %p57
      $region30: #{patch_discriminator_forward.7} parent=27 // pred_check_branch
        %186 = sbr.rel (%p184) target = $region32
      $region31: #{patch_discriminator_forward.7} parent=27 // pred_region
        %s187 = smul.u32 %s17, 6
        %s188 = smul.u32 %s18, 2
        %s189 = sadd.s32 %s187, %s188
        %s190 = sadd.s32 %s189, %s19
        %p191 = scmp.lt.s32.totalorder %s190, 11
        %s192 = scalar_select %p191, %s190, 11
        %s193 = smul.addr %s192, 4
        %s194 = smul.addr %s193, 4
        %s195 = scalar_lea.vmem %s0, %s194
        %s196 = smul.u32 %s17, 6
        %s197 = smul.u32 %s18, 2
        %s198 = sadd.s32 %s196, %s197
        %s199 = sadd.s32 %s198, %s19
      $region32: #{patch_discriminator_forward.7} parent=27 // pred_fallthru
        _
    $region28: #{patch_discriminator_forward.7} parent=5 // pred_fallthru
      _
    %p200 = scmp.le.s32.totalorder 1, %s10
    %p201 = scmp.lt.s32.totalorder %s10, 13
    %p202 = pnand %p200, %p201
    %p203 = pneg %p202
    // Predicated region
    $region33: #{patch_discriminator_forward.7} parent=5 // pred_check
      _
    $region34: #{patch_discriminator_forward.7} parent=5 // pred_check_branch
      %205 = sbr.rel (%p202) target = $region36
    $region35: #{patch_discriminator_forward.7} parent=5 // pred_region
      %s206 = ssub.s32 %s10, 1
      %s207 = smul.u32 %s20, 6
      %s208 = smul.u32 %s21, 2
      %s209 = sadd.s32 %s207, %s208
      %s210 = sadd.s32 %s209, %s22
      %p211 = scmp.lt.s32.totalorder %s210, 11
      %s212 = scalar_select %p211, %s210, 11
      %s213 = smul.addr %s212, 4
      %s214 = smul.addr %s213, 4
      %s215 = scalar_lea.vmem %s0, %s214
      %p216 = pneg %p63
      %p217 = pneg %p60
      %p218 = pneg %p84
      %p219 = pneg %p81
      %p220 = pneg %p105
      %p221 = pneg %p102
      %p222 = pneg %p126
      %p223 = pneg %p123
      %p224 = pneg %p156
      %p225 = pneg %p153
      %s226 = smul.u32 %s20, 2
      %s227 = sadd.s32 %s226, %s21
      %p228 = scmp.lt.s32.totalorder %s227, 3
      %s229 = scalar_select %p228, %s227, 3
      %s230 = smul.addr %s229, 2
      %s231 = smul.addr %s230, 4
      %s232 = scalar_lea.vmem %s4, %s231
      %s233 = smul.u32 %s20, 6
      %s234 = smul.u32 %s21, 2
      %s235 = sadd.s32 %s233, %s234
      %s236 = sadd.s32 %s235, %s22
      %p237 = scmp.lt.s32.totalorder %s236, 11
      %s238 = scalar_select %p237, %s236, 11
      %s239 = smul.addr %s238, 4
      %s240 = smul.addr %s239, 4
      %s241 = scalar_lea.vmem %s0, %s240
      %s242 = smul.u32 %s20, 6
      %s243 = smul.u32 %s21, 2
      %s244 = sadd.s32 %s242, %s243
      %s245 = sadd.s32 %s244, %s22
      %s246 = smul.u32 %s20, 2
      %s247 = sadd.s32 %s246, %s21
      %p248 = scmp.lt.s32.totalorder %s247, 3
      %s249 = scalar_select %p248, %s247, 3
      %s250 = smul.addr %s249, 2
      %s251 = smul.addr %s250, 4
      %s252 = scalar_lea.vmem %s4, %s251
      %s253 = smul.u32 %s20, 2
      %s254 = sadd.s32 %s253, %s21
      %p256 = scmp.eq.s32.totalorder %s22, 0
      // Predicated region
      $region37: #{patch_discriminator_forward.7} parent=35 // pred_check
        %p257 = pneg %p256
      $region38: #{patch_discriminator_forward.7} parent=35 // pred_check_branch
        %259 = sbr.rel (%p257) target = $region40
      $region39: #{patch_discriminator_forward.7} parent=35 // pred_region
        %vm260 = vcmask 162816
        %261 = vst.msk [vmem:[#allocation2] sm:$0xff] %vm260, 0.0
        %262 = vst.msk [vmem:[#allocation2 + $0x8] sm:$0xff] %vm260, 0.0
      $region40: #{patch_discriminator_forward.7} parent=35 // pred_fallthru
        _
      %v263 = vld [vmem:[%s241] sm:$0xf]
      %vm264 = vcmask 158720
      %265 = vst.msk [vmem:[#allocation3] sm:$0xf] %vm264, %v263
      %s266 = scalar_lea.vmem %s241, 4
      %v267 = vld [vmem:[%s266] sm:$0xf]
      %v269 = vunpack.c.l.b16 %v267
      %v270 = vpack.c.b16 %v269, %v269
      %vm272 = vcmask 162820
      %273 = vst.msk [vmem:[#allocation3] sm:$0xf0] %vm272, %v270
      %v274 = vld [vmem:[%s241] sm:$0xf]
      %v276 = vunpack.c.l.b16 %v274
      %v277 = vpack.c.b16 %v276, %v276
      %278 = vrot.lane.b32.xlu0 %v277, 127
      %v279 = vpop.permute.xlu0 %278
      %281 = vst.msk [vmem:[#allocation3 + $0x8] sm:$0xf] %vm264, %v279
      %v282 = vld [vmem:[%s266] sm:$0xf]
      %v284 = vunpack.c.l.b16 %v282
      %v285 = vpack.c.b16 %v284, %v284
      %286 = vrot.lane.b32.xlu0 %v285, 127
      %v287 = vpop.permute.xlu0 %286
      %289 = vst.msk [vmem:[#allocation3 + $0x8] sm:$0xf0] %vm272, %v287
      %s290 = scalar_lea.vmem %s241, 8
      %v291 = vld [vmem:[%s290] sm:$0xf]
      %292 = vst.msk [vmem:[#allocation3 + $0x10] sm:$0xf] %vm264, %v291
      %s293 = scalar_lea.vmem %s241, 12
      %v294 = vld [vmem:[%s293] sm:$0xf]
      %v296 = vunpack.c.l.b16 %v294
      %v297 = vpack.c.b16 %v296, %v296
      %299 = vst.msk [vmem:[#allocation3 + $0x10] sm:$0xf0] %vm272, %v297
      %v300 = vld [vmem:[%s290] sm:$0xf]
      %v302 = vunpack.c.l.b16 %v300
      %v303 = vpack.c.b16 %v302, %v302
      %304 = vrot.lane.b32.xlu0 %v303, 127
      %v305 = vpop.permute.xlu0 %304
      %307 = vst.msk [vmem:[#allocation3 + $0x18] sm:$0xf] %vm264, %v305
      %v308 = vld [vmem:[%s293] sm:$0xf]
      %v310 = vunpack.c.l.b16 %v308
      %v311 = vpack.c.b16 %v310, %v310
      %312 = vrot.lane.b32.xlu0 %v311, 127
      %v313 = vpop.permute.xlu0 %312
      %315 = vst.msk [vmem:[#allocation3 + $0x18] sm:$0xf0] %vm272, %v313
      %v316 = vld [vmem:[%s241] sm:$0xf]
      %v318 = vunpack.c.l.b16 %v316
      %v319 = vpack.c.b16 %v318, %v318
      %320 = vrot.lane.b32.xlu0 %v319, 123
      %v321 = vpop.permute.xlu0 %320
      %323 = vst.msk [vmem:[#allocation3 + $0x20] sm:$0xf] %vm264, %v321
      %v324 = vld [vmem:[%s266] sm:$0xf]
      %v326 = vunpack.c.l.b16 %v324
      %v327 = vpack.c.b16 %v326, %v326
      %328 = vrot.lane.b32.xlu0 %v327, 123
      %v329 = vpop.permute.xlu0 %328
      %331 = vst.msk [vmem:[#allocation3 + $0x20] sm:$0xf0] %vm272, %v329
      %v332 = vld [vmem:[%s241] sm:$0xf]
      %v334 = vunpack.c.l.b16 %v332
      %v335 = vpack.c.b16 %v334, %v334
      %336 = vrot.lane.b32.xlu0 %v335, 122
      %v337 = vpop.permute.xlu0 %336
      %339 = vst.msk [vmem:[#allocation3 + $0x28] sm:$0xf] %vm264, %v337
      %v340 = vld [vmem:[%s266] sm:$0xf]
      %v342 = vunpack.c.l.b16 %v340
      %v343 = vpack.c.b16 %v342, %v342
      %344 = vrot.lane.b32.xlu0 %v343, 122
      %v345 = vpop.permute.xlu0 %344
      %347 = vst.msk [vmem:[#allocation3 + $0x28] sm:$0xf0] %vm272, %v345
      %v348 = vld [vmem:[%s290] sm:$0xf]
      %v350 = vunpack.c.l.b16 %v348
      %v351 = vpack.c.b16 %v350, %v350
      %352 = vrot.lane.b32.xlu0 %v351, 123
      %v353 = vpop.permute.xlu0 %352
      %355 = vst.msk [vmem:[#allocation3 + $0x30] sm:$0xf] %vm264, %v353
      %v356 = vld [vmem:[%s293] sm:$0xf]
      %v358 = vunpack.c.l.b16 %v356
      %v359 = vpack.c.b16 %v358, %v358
      %360 = vrot.lane.b32.xlu0 %v359, 123
      %v361 = vpop.permute.xlu0 %360
      %363 = vst.msk [vmem:[#allocation3 + $0x30] sm:$0xf0] %vm272, %v361
      %v364 = vld [vmem:[%s290] sm:$0xf]
      %v366 = vunpack.c.l.b16 %v364
      %v367 = vpack.c.b16 %v366, %v366
      %368 = vrot.lane.b32.xlu0 %v367, 122
      %v369 = vpop.permute.xlu0 %368
      %371 = vst.msk [vmem:[#allocation3 + $0x38] sm:$0xf] %vm264, %v369
      %v372 = vld [vmem:[%s293] sm:$0xf]
      %v374 = vunpack.c.l.b16 %v372
      %v375 = vpack.c.b16 %v374, %v374
      %376 = vrot.lane.b32.xlu0 %v375, 122
      %v377 = vpop.permute.xlu0 %376
      %379 = vst.msk [vmem:[#allocation3 + $0x38] sm:$0xf0] %vm272, %v377
      %v380 = vld [vmem:[#allocation2] sm:$0xff]
      %v381 = vld [vmem:[#allocation2 + $0x8] sm:$0xff]
      %s382 = smul.u32 %s22, 2
      %s383 = smul.addr %s382, 4
      %s384 = scalar_lea.vmem %s1, %s383
      %v385 = vld [vmem:[%s384] sm:$0xf]
      %v386 = vld [vmem:[%s384 + $0x4] sm:$0xf]
      %v387 = vld [vmem:[#allocation3] sm:$0xff]
      %v388 = vld [vmem:[#allocation3 + $0x8] sm:$0xff]
      %v389 = vld [vmem:[#allocation3 + $0x10] sm:$0xff]
      %v390 = vld [vmem:[#allocation3 + $0x18] sm:$0xff]
      %v391 = vld [vmem:[#allocation3 + $0x20] sm:$0xff]
      %v392 = vld [vmem:[#allocation3 + $0x28] sm:$0xff]
      %v393 = vld [vmem:[#allocation3 + $0x30] sm:$0xff]
      %v394 = vld [vmem:[#allocation3 + $0x38] sm:$0xff]
      %v397 = vunpack.c.l.b16 %v385
      %v398 = vunpack.c.l.b16 %v386
      %v399 = vpack.c.b16 %v398, %v397
      %401 = vmatprep.subr.bf16.mxu0 0
      %402 = vmatpush1.bf16.msra.mxu0 %v387
      %403 = vmatprep.subr.bf16.mxu0 0
      %404 = vmatpush1.bf16.msra.mxu0 %v388
      %405 = vmatprep.subr.bf16.mxu0 0
      %406 = vmatpush1.bf16.msra.mxu0 %v389
      %407 = vmatprep.subr.bf16.mxu0 0
      %408 = vmatpush1.bf16.msra.mxu0 %v390
      %409 = vmatprep.subr.bf16.mxu0 0
      %410 = vmatpush1.bf16.msra.mxu0 %v391
      %411 = vmatprep.subr.bf16.mxu0 0
      %412 = vmatpush1.bf16.msra.mxu0 %v392
      %413 = vmatprep.subr.bf16.mxu0 0
      %414 = vmatpush1.bf16.msra.mxu0 %v393
      %415 = vmatprep.subr.bf16.mxu0 0
      %416 = vmatpush1.bf16.msra.mxu0 %v394
      %417 = vmatprep.subr.bf16.mxu0 0
      %418 = vmatpush1.bf16.msra.mxu0 0
      %419 = vmatprep.subr.bf16.mxu0 0
      %420 = vmatpush1.bf16.msra.mxu0 0
      %421 = vmatprep.subr.bf16.mxu0 0
      %422 = vmatpush1.bf16.msra.mxu0 0
      %423 = vmatprep.subr.bf16.mxu0 0
      %424 = vmatpush1.bf16.msra.mxu0 0
      %425 = vmatprep.subr.bf16.mxu0 0
      %426 = vmatpush1.bf16.msra.mxu0 0
      %427 = vmatprep.subr.bf16.mxu0 0
      %428 = vmatpush1.bf16.msra.mxu0 0
      %429 = vmatprep.subr.bf16.mxu0 0
      %430 = vmatpush1.bf16.msra.mxu0 0
      %431 = vmatprep.subr.bf16.mxu0 0
      %432 = vmatpush1.bf16.msra.mxu0 0
      %433 = vmatprep.mubr.bf16.mxu0 0
      %434 = vmatmul.mubr.bf16.gmra.mrb[0].mxu0 %v399
      %v435 = vpop.f32.mrb[0].mxu0
      %v436 = vadd.f32 0.0, %v435
      %v437 = vpop.f32.mrb[0].mxu0
      %v438 = vpop.f32.mrb[0].mxu0
      %v439 = vadd.f32 0.0, %v438
      %v440 = vpop.f32.mrb[0].mxu0
      %441 = vdwg.mxu0
      %v442 = vadd.f32 %v380, %v436
      %v443 = vadd.f32 %v381, %v439
      %vm444 = vcmask 162816
      %445 = vst.msk [vmem:[#allocation2] sm:$0xff] %vm444, %v442
      %446 = vst.msk [vmem:[#allocation2 + $0x8] sm:$0xff] %vm444, %v443
      %p447 = scmp.eq.s32.totalorder %s22, 2
      // Predicated region
      $region41: #{patch_discriminator_forward.7} parent=35 // pred_check
        %p448 = pneg %p447
      $region42: #{patch_discriminator_forward.7} parent=35 // pred_check_branch
        %450 = sbr.rel (%p448) target = $region44
      $region43: #{patch_discriminator_forward.7} parent=35 // pred_region
        %v451 = vld [vmem:[#allocation2] sm:$0xff]
        %v452 = vld [vmem:[#allocation2 + $0x8] sm:$0xff]
        %v453 = vld [vmem:[%s2] sm:$0xff]
        %v454 = vld [vmem:[%s2 + $0x8] sm:$0xff]
        %456 = vset.pattern.permute.xlu0 0
        %457 = vperm.xlu0 %456, %v453
        %v458 = vpop.permute.xlu0 %457
        %461 = vset.pattern.permute.xlu0 0
        %462 = vperm.xlu0 %461, %v454
        %v463 = vpop.permute.xlu0 %462
        %v465 = vadd.f32 %v451, %v458
        %v466 = vadd.f32 %v452, %v463
        %v467 = vld [vmem:[%s3] sm:$0x1]
        %v469 = vlaneseq
        %v470 = vshrl.u32 %v469, 7
        %v471 = vsub.s32 0, %v470
        %v472 = vrot.slane %v467, %v471
        %v474 = vmul.f32 %v465, %v472
        %v475 = vmul.f32 %v466, %v472
        %v476 = vpack.c.bf16 %v475, %v474
        %v478 = vunpack.c.l.b16 %v476
        %v479 = vunpack.c.h.b16 %v476
        %v480 = vpack.c.b16 %v478, %v478
        %v481 = vpack.c.b16 %v479, %v479
        %484 = vst.msk [vmem:[%s252] sm:$0xf] %vm264, %v480
        %485 = vst.msk [vmem:[%s252 + $0x4] sm:$0xf] %vm264, %v481
      $region44: #{patch_discriminator_forward.7} parent=35 // pred_fallthru
        _
      %s486 = smul.u32 %s20, 2
      %s487 = sadd.s32 %s486, %s21
      %p488 = scmp.lt.s32.totalorder %s487, 3
      %s489 = scalar_select %p488, %s487, 3
      %s490 = smul.addr %s489, 2
      %s491 = smul.addr %s490, 4
      %s492 = scalar_lea.vmem %s4, %s491
      // Predicated region
      $region45: #{patch_discriminator_forward.7} parent=35 // pred_check
        %p493 = pneg %p153
      $region46: #{patch_discriminator_forward.7} parent=35 // pred_check_branch
        %495 = sbr.rel (%p493) target = $region48
      $region47: #{patch_discriminator_forward.7} parent=35 // pred_region
        %s496 = smul.u32 %s20, 2
        %s497 = sadd.s32 %s496, %s21
      $region48: #{patch_discriminator_forward.7} parent=35 // pred_fallthru
        _
    $region36: #{patch_discriminator_forward.7} parent=5 // pred_fallthru
      _
    %p498 = scmp.le.s32.totalorder 2, %s10
    // Predicated region
    $region49: #{patch_discriminator_forward.7} parent=5 // pred_check
      %p499 = pneg %p498
    $region50: #{patch_discriminator_forward.7} parent=5 // pred_check_branch
      %501 = sbr.rel (%p499) target = $region52
    $region51: #{patch_discriminator_forward.7} parent=5 // pred_region
      %s502 = ssub.s32 %s10, 2
      // Predicated region
      $region53: #{patch_discriminator_forward.7} parent=51 // pred_check
        %p503 = pneg %p159
      $region54: #{patch_discriminator_forward.7} parent=51 // pred_check_branch
        %505 = sbr.rel (%p503) target = $region56
      $region55: #{patch_discriminator_forward.7} parent=51 // pred_region
        %s506 = smul.u32 %s23, 2
        %s507 = sadd.s32 %s506, %s24
        %p508 = scmp.lt.s32.totalorder %s507, 3
        %s509 = scalar_select %p508, %s507, 3
        %s510 = smul.addr %s509, 2
        %s511 = smul.addr %s510, 4
        %s512 = scalar_lea.vmem %s4, %s511
      $region56: #{patch_discriminator_forward.7} parent=51 // pred_fallthru
        _
    $region52: #{patch_discriminator_forward.7} parent=5 // pred_fallthru
      _
  $region6: #{patch_discriminator_forward.7} parent=0 // loop_footer
    %s14 = sadd.s32 1, %s10
  $region7: #{patch_discriminator_forward.7} parent=0 // loop_footer_branch
    %9 = sbr.rel target = $region3
  $region8: #{patch_discriminator_forward.7} parent=0 // loop_exit
    _

// kernel: patch_discriminator_forward.8
$region0: #{patch_discriminator_forward.8}
  #allocation0 [shape = 'u32[]', space=smem, size = 0x4, offset = 0x4, fixed_abs, tag = 'smem constant byte address 0x4 - core index']
  #allocation1 [shape = 'u32[144,128]{1,0:T(1,128)}', space=vmem, size = 0x12000, scoped, tag = 'internal scratch']
  %s0 = inlined_call_operand.vmem [shape: bf16[2,2,16,20], index: 0, kind: input, shape index: {}]
  %s1 = inlined_call_operand.vmem [shape: f32[1,16,1], index: 1, kind: input, shape index: {}]
  %s2 = inlined_call_operand.vmem [shape: f32[1,16,1], index: 2, kind: input, shape index: {}]
  %s3 = inlined_call_operand.vmem [shape: bf16[2,2,16,20], index: 3, kind: output, shape index: {}]
  %s4 = sld [smem:[#allocation0]]
  $region45: #{patch_discriminator_forward.8} parent=0
    _
  %s6 = ssub.s32 1, %s4
  %s7 = scalar_select 0, %s6, %s4
  loop: start=0, step=1, limit=4
  $region2: #{patch_discriminator_forward.8} parent=0 // loop_pre_header
    _
  $region3: #{patch_discriminator_forward.8} parent=0 // loop_header
    %s9 = sphi 0, %s13
    %p10 = scmp.ge.s32.totalorder %s9, 4
    %s19 = sphi 0, %s21
    %s22 = sphi 0, %s19
    %s23 = sphi 0, %s22
    %s39 = sphi 0, %s23
    %s43 = sphi 0, %s43
    %s45 = sphi 0, %s43
    %s46 = sphi 0, %s45
    %s60 = sphi 0, %s46
    %s64 = sphi 0, %s64
    %s66 = sphi 0, %s64
    %s67 = sphi 0, %s66
    %s81 = sphi 0, %s67
    %s87 = sphi 0, %s89
    %s90 = sphi 0, %s87
    %s91 = sphi 0, %s90
    %s107 = sphi 0, %s91
  $region4: #{patch_discriminator_forward.8} parent=0 // loop_header_branch
    %12 = sbr.rel (%p10) target = $region8
  $region5: #{patch_discriminator_forward.8} parent=0 // loop_body
    %s14 = ssub.s32 %s9, 1
    %s15 = ssub.s32 %s9, 2
    %s16 = sadd.s32 %s9, 1
    %s17 = ssub.s32 %s9, %s16
    %p18 = scmp.eq.s32.totalorder %s17, 0
    %s20 = sadd.s32 %s19, 1
    %s21 = scalar_select %p18, %s19, %s20
    %p24 = pneg %p18
    %p25 = scmp.eq.s32.totalorder %s9, 1
    %p26 = por %p24, %p25
    %p27 = scmp.ne.s32.totalorder %s19, %s22
    %p28 = scmp.eq.s32.totalorder %s9, 0
    %p29 = por %p27, %p28
    %p30 = scmp.ne.s32.totalorder %s19, %s22
    %p31 = scmp.eq.s32.totalorder %s14, 1
    %p32 = por %p30, %p31
    %p33 = scmp.ne.s32.totalorder %s22, %s23
    %p34 = scmp.eq.s32.totalorder %s14, 0
    %p35 = por %p33, %p34
    %p36 = scmp.ne.s32.totalorder %s22, %s23
    %p37 = scmp.eq.s32.totalorder %s15, 1
    %p38 = por %p36, %p37
    %p40 = scmp.ne.s32.totalorder %s23, %s39
    %p41 = scmp.eq.s32.totalorder %s15, 0
    %p42 = por %p40, %p41
    %s44 = sadd.s32 %s43, 1
    %p47 = scmp.eq.s32.totalorder %s9, 1
    %p48 = scmp.ne.s32.totalorder %s43, %s45
    %p49 = scmp.eq.s32.totalorder %s9, 0
    %p50 = por %p48, %p49
    %p51 = scmp.ne.s32.totalorder %s43, %s45
    %p52 = scmp.eq.s32.totalorder %s14, 1
    %p53 = por %p51, %p52
    %p54 = scmp.ne.s32.totalorder %s45, %s46
    %p55 = scmp.eq.s32.totalorder %s14, 0
    %p56 = por %p54, %p55
    %p57 = scmp.ne.s32.totalorder %s45, %s46
    %p58 = scmp.eq.s32.totalorder %s15, 1
    %p59 = por %p57, %p58
    %p61 = scmp.ne.s32.totalorder %s46, %s60
    %p62 = scmp.eq.s32.totalorder %s15, 0
    %p63 = por %p61, %p62
    %s65 = sadd.s32 %s64, 1
    %p68 = scmp.eq.s32.totalorder %s9, 1
    %p69 = scmp.ne.s32.totalorder %s64, %s66
    %p70 = scmp.eq.s32.totalorder %s9, 0
    %p71 = por %p69, %p70
    %p72 = scmp.ne.s32.totalorder %s64, %s66
    %p73 = scmp.eq.s32.totalorder %s14, 1
    %p74 = por %p72, %p73
    %p75 = scmp.ne.s32.totalorder %s66, %s67
    %p76 = scmp.eq.s32.totalorder %s14, 0
    %p77 = por %p75, %p76
    %p78 = scmp.ne.s32.totalorder %s66, %s67
    %p79 = scmp.eq.s32.totalorder %s15, 1
    %p80 = por %p78, %p79
    %p82 = scmp.ne.s32.totalorder %s67, %s81
    %p83 = scmp.eq.s32.totalorder %s15, 0
    %p84 = por %p82, %p83
    %s85 = ssub.s32 %s9, %s16
    %p86 = scmp.eq.s32.totalorder %s85, 0
    %s88 = sadd.s32 %s87, 1
    %s89 = scalar_select %p86, %s87, %s88
    %p92 = pneg %p86
    %p93 = scmp.eq.s32.totalorder %s9, 1
    %p94 = por %p92, %p93
    %p95 = scmp.ne.s32.totalorder %s87, %s90
    %p96 = scmp.eq.s32.totalorder %s9, 0
    %p97 = por %p95, %p96
    %p98 = scmp.ne.s32.totalorder %s87, %s90
    %p99 = scmp.eq.s32.totalorder %s14, 1
    %p100 = por %p98, %p99
    %p101 = scmp.ne.s32.totalorder %s90, %s91
    %p102 = scmp.eq.s32.totalorder %s14, 0
    %p103 = por %p101, %p102
    %p104 = scmp.ne.s32.totalorder %s90, %s91
    %p105 = scmp.eq.s32.totalorder %s15, 1
    %p106 = por %p104, %p105
    %p108 = scmp.ne.s32.totalorder %s91, %s107
    %p109 = scmp.eq.s32.totalorder %s15, 0
    %p110 = por %p108, %p109
    %p111 = scmp.le.s32.totalorder 1, %s9
    %p112 = scmp.lt.s32.totalorder %s9, 3
    %p113 = pnand %p111, %p112
    %p114 = pneg %p113
    // Predicated region
    $region9: #{patch_discriminator_forward.8} parent=5 // pred_check
      _
    $region10: #{patch_discriminator_forward.8} parent=5 // pred_check_branch
      %116 = sbr.rel (%p113) target = $region12
    $region11: #{patch_discriminator_forward.8} parent=5 // pred_region
      %s117 = ssub.s32 %s9, 1
      // Predicated region
      $region13: #{patch_discriminator_forward.8} parent=11 // pred_check
        %p118 = pneg %p56
      $region14: #{patch_discriminator_forward.8} parent=11 // pred_check_branch
        %120 = sbr.rel (%p118) target = $region16
      $region15: #{patch_discriminator_forward.8} parent=11 // pred_region
        _
      $region16: #{patch_discriminator_forward.8} parent=11 // pred_fallthru
        _
      // Predicated region
      $region17: #{patch_discriminator_forward.8} parent=11 // pred_check
        %p121 = pneg %p77
      $region18: #{patch_discriminator_forward.8} parent=11 // pred_check_branch
        %123 = sbr.rel (%p121) target = $region20
      $region19: #{patch_discriminator_forward.8} parent=11 // pred_region
        _
      $region20: #{patch_discriminator_forward.8} parent=11 // pred_fallthru
        _
    $region12: #{patch_discriminator_forward.8} parent=5 // pred_fallthru
      _
    %p124 = scmp.lt.s32.totalorder %s9, 2
    // Predicated region
    $region21: #{patch_discriminator_forward.8} parent=5 // pred_check
      %p125 = pneg %p124
    $region22: #{patch_discriminator_forward.8} parent=5 // pred_check_branch
      %127 = sbr.rel (%p125) target = $region24
    $region23: #{patch_discriminator_forward.8} parent=5 // pred_region
      // Predicated region
      $region25: #{patch_discriminator_forward.8} parent=23 // pred_check
        %p128 = pneg %p29
      $region26: #{patch_discriminator_forward.8} parent=23 // pred_check_branch
        %130 = sbr.rel (%p128) target = $region28
      $region27: #{patch_discriminator_forward.8} parent=23 // pred_region
        %p131 = scmp.lt.s32.totalorder %s9, 1
        %s132 = scalar_select %p131, %s9, 1
        %s133 = smul.addr %s132, 4
        %s134 = smul.addr %s133, 4
        %s135 = scalar_lea.vmem %s0, %s134
      $region28: #{patch_discriminator_forward.8} parent=23 // pred_fallthru
        _
    $region24: #{patch_discriminator_forward.8} parent=5 // pred_fallthru
      _
    %p136 = scmp.le.s32.totalorder 1, %s9
    %p137 = scmp.lt.s32.totalorder %s9, 3
    %p138 = pnand %p136, %p137
    %p139 = pneg %p138
    // Predicated region
    $region29: #{patch_discriminator_forward.8} parent=5 // pred_check
      _
    $region30: #{patch_discriminator_forward.8} parent=5 // pred_check_branch
      %141 = sbr.rel (%p138) target = $region32
    $region31: #{patch_discriminator_forward.8} parent=5 // pred_region
      %s142 = ssub.s32 %s9, 1
      %p143 = scmp.lt.s32.totalorder %s14, 1
      %s144 = scalar_select %p143, %s14, 1
      %s145 = smul.addr %s144, 4
      %s146 = smul.addr %s145, 4
      %s147 = scalar_lea.vmem %s0, %s146
      %p148 = pneg %p35
      %p149 = pneg %p32
      %p150 = pneg %p56
      %p151 = pneg %p53
      %p152 = pneg %p77
      %p153 = pneg %p74
      %p154 = pneg %p103
      %p155 = pneg %p100
      %p156 = scmp.lt.s32.totalorder %s14, 1
      %s157 = scalar_select %p156, %s14, 1
      %s158 = smul.addr %s157, 4
      %s159 = smul.addr %s158, 4
      %s160 = scalar_lea.vmem %s3, %s159
      %p161 = scmp.lt.s32.totalorder %s14, 1
      %s162 = scalar_select %p161, %s14, 1
      %s163 = smul.addr %s162, 4
      %s164 = smul.addr %s163, 4
      %s165 = scalar_lea.vmem %s0, %s164
      %p166 = scmp.lt.s32.totalorder %s14, 1
      %s167 = scalar_select %p166, %s14, 1
      %s168 = smul.addr %s167, 4
      %s169 = smul.addr %s168, 4
      %s170 = scalar_lea.vmem %s3, %s169
      %v171 = vld [vmem:[%s165] sm:$0xf]
      %v172 = vld [vmem:[%s165 + $0x4] sm:$0xf]
      %v173 = vld [vmem:[%s165 + $0x8] sm:$0xf]
      %v174 = vld [vmem:[%s165 + $0xc] sm:$0xf]
      %v175 = vunpack.c.l.bf16 %v171
      %v176 = vunpack.c.l.bf16 %v172
      %v177 = vunpack.c.l.bf16 %v173
      %v178 = vunpack.c.l.bf16 %v174
      %vm179 = vcmask 162816
      %v180 = vsel %vm179, %v175, 0.0
      %181 = vadd.xlane.f32.xlu0 %v180
      %v182 = vpop.xlane.xlu0 %181
      %v183 = vsel %vm179, %v176, 0.0
      %184 = vadd.xlane.f32.xlu0 %v183
      %v185 = vpop.xlane.xlu0 %184
      %v186 = vsel %vm179, %v177, 0.0
      %187 = vadd.xlane.f32.xlu0 %v186
      %v188 = vpop.xlane.xlu0 %187
      %v189 = vsel %vm179, %v178, 0.0
      %190 = vadd.xlane.f32.xlu0 %v189
      %v191 = vpop.xlane.xlu0 %190
      %v192 = vmul.f32 %v175, %v175
      %v193 = vmul.f32 %v176, %v176
      %v194 = vmul.f32 %v177, %v177
      %v195 = vmul.f32 %v178, %v178
      %v196 = vsel %vm179, %v192, 0.0
      %197 = vadd.xlane.f32.xlu0 %v196
      %v198 = vpop.xlane.xlu0 %197
      %v199 = vsel %vm179, %v193, 0.0
      %200 = vadd.xlane.f32.xlu0 %v199
      %v201 = vpop.xlane.xlu0 %200
      %v202 = vsel %vm179, %v194, 0.0
      %203 = vadd.xlane.f32.xlu0 %v202
      %v204 = vpop.xlane.xlu0 %203
      %v205 = vsel %vm179, %v195, 0.0
      %206 = vadd.xlane.f32.xlu0 %v205
      %v207 = vpop.xlane.xlu0 %206
      %v208 = vadd.f32 %v182, %v188
      %v209 = vadd.f32 %v185, %v191
      %v210 = vadd.f32 %v198, %v204
      %v211 = vadd.f32 %v201, %v207
      %v212 = vmul.f32 %v208, 0.03125
      %v213 = vmul.f32 %v209, 0.03125
      %v214 = vmul.f32 %v210, 0.03125
      %v215 = vmul.f32 %v211, 0.03125
      %v216 = vmul.f32 %v212, %v212
      %v217 = vmul.f32 %v213, %v213
      %v218 = vsub.f32 %v214, %v216
      %v219 = vsub.f32 %v215, %v217
      %v220 = vadd.f32 %v218, 1e-05
      %v221 = vadd.f32 %v219, 1e-05
      %v222 = vrsqrt.pop %v220
      %v223 = vrsqrt.pop %v221
      %v224 = vld [vmem:[%s1] sm:$0xff]
      %v225 = vld [vmem:[%s1 + $0x8] sm:$0xff]
      %v226 = vmul.f32 %v222, %v224
      %v227 = vmul.f32 %v223, %v225
      %v228 = vld [vmem:[%s2] sm:$0xff]
      %v229 = vld [vmem:[%s2 + $0x8] sm:$0xff]
      %v230 = vmul.f32 %v212, %v226
      %v231 = vmul.f32 %v213, %v227
      %v232 = vsub.f32 %v228, %v230
      %v233 = vsub.f32 %v229, %v231
      %235 = vset.pattern.permute.xlu0 0
      %236 = vperm.xlu0 %235, %v226
      %v237 = vpop.permute.xlu0 %236
      %240 = vset.pattern.permute.xlu0 0
      %241 = vperm.xlu0 %240, %v227
      %v242 = vpop.permute.xlu0 %241
      %v244 = vmul.f32 %v175, %v237
      %v245 = vmul.f32 %v176, %v242
      %v246 = vmul.f32 %v177, %v237
      %v247 = vmul.f32 %v178, %v242
      %249 = vset.pattern.permute.xlu0 0
      %250 = vperm.xlu0 %249, %v232
      %v251 = vpop.permute.xlu0 %250
      %254 = vset.pattern.permute.xlu0 0
      %255 = vperm.xlu0 %254, %v233
      %v256 = vpop.permute.xlu0 %255
      %v258 = vadd.f32 %v244, %v251
      %v259 = vadd.f32 %v245, %v256
      %v260 = vadd.f32 %v246, %v251
      %v261 = vadd.f32 %v247, %v256
      %vm262 = vcmp.ge.f32.partialorder %v258, 0.0
      %vm263 = vcmp.ge.f32.partialorder %v259, 0.0
      %vm264 = vcmp.ge.f32.partialorder %v260, 0.0
      %vm265 = vcmp.ge.f32.partialorder %v261, 0.0
      %v266 = vmul.f32 %v258, 0.2
      %v267 = vmul.f32 %v259, 0.2
      %v268 = vmul.f32 %v260, 0.2
      %v269 = vmul.f32 %v261, 0.2
      %v270 = vsel %vm262, %v258, %v266
      %v271 = vsel %vm263, %v259, %v267
      %v272 = vsel %vm264, %v260, %v268
      %v273 = vsel %vm265, %v261, %v269
      %v274 = vpack.c.bf16 %v271, %v270
      %v275 = vpack.c.bf16 %v273, %v272
      %v278 = vunpack.c.l.b16 %v274
      %v279 = vunpack.c.h.b16 %v274
      %v280 = vunpack.c.l.b16 %v275
      %v281 = vunpack.c.h.b16 %v275
      %v282 = vpack.c.b16 %v278, %v278
      %v283 = vpack.c.b16 %v279, %v279
      %v284 = vpack.c.b16 %v280, %v280
      %v285 = vpack.c.b16 %v281, %v281
      %vm290 = vcmask 158720
      %291 = vst.msk [vmem:[%s170] sm:$0xf] %vm290, %v282
      %292 = vst.msk [vmem:[%s170 + $0x4] sm:$0xf] %vm290, %v283
      %293 = vst.msk [vmem:[%s170 + $0x8] sm:$0xf] %vm290, %v284
      %294 = vst.msk [vmem:[%s170 + $0xc] sm:$0xf] %vm290, %v285
      %p295 = scmp.lt.s32.totalorder %s14, 1
      %s296 = scalar_select %p295, %s14, 1
      %s297 = smul.addr %s296, 4
      %s298 = smul.addr %s297, 4
      %s299 = scalar_lea.vmem %s3, %s298
      // Predicated region
      $region33: #{patch_discriminator_forward.8} parent=31 // pred_check
        %p300 = pneg %p100
      $region34: #{patch_discriminator_forward.8} parent=31 // pred_check_branch
        %302 = sbr.rel (%p300) target = $region36
      $region35: #{patch_discriminator_forward.8} parent=31 // pred_region
        _
      $region36: #{patch_discriminator_forward.8} parent=31 // pred_fallthru
        _
    $region32: #{patch_discriminator_forward.8} parent=5 // pred_fallthru
      _
    %p303 = scmp.le.s32.totalorder 2, %s9
    // Predicated region
    $region37: #{patch_discriminator_forward.8} parent=5 // pred_check
      %p304 = pneg %p303
    $region38: #{patch_discriminator_forward.8} parent=5 // pred_check_branch
      %306 = sbr.rel (%p304) target = $region40
    $region39: #{patch_discriminator_forward.8} parent=5 // pred_region
      %s307 = ssub.s32 %s9, 2
      // Predicated region
      $region41: #{patch_discriminator_forward.8} parent=39 // pred_check
        %p308 = pneg %p106
      $region42: #{patch_discriminator_forward.8} parent=39 // pred_check_branch
        %310 = sbr.rel (%p308) target = $region44
      $region43: #{patch_discriminator_forward.8} parent=39 // pred_region
        %p311 = scmp.lt.s32.totalorder %s15, 1
        %s312 = scalar_select %p311, %s15, 1
        %s313 = smul.addr %s312, 4
        %s314 = smul.addr %s313, 4
        %s315 = scalar_lea.vmem %s3, %s314
      $region44: #{patch_discriminator_forward.8} parent=39 // pred_fallthru
        _
    $region40: #{patch_discriminator_forward.8} parent=5 // pred_fallthru
      _
  $region6: #{patch_discriminator_forward.8} parent=0 // loop_footer
    %s13 = sadd.s32 1, %s9
  $region7: #{patch_discriminator_forward.8} parent=0 // loop_footer_branch
    %8 = sbr.rel target = $region3
  $region8: #{patch_discriminator_forward.8} parent=0 // loop_exit
    _

// kernel: patch_discriminator_forward.10
$region0: #{patch_discriminator_forward.10}
  #allocation0 [shape = 'u32[]', space=smem, size = 0x4, offset = 0x4, fixed_abs, tag = 'smem constant byte address 0x4 - core index']
  #allocation1 [shape = 'u32[144,128]{1,0:T(1,128)}', space=vmem, size = 0x12000, scoped, tag = 'internal scratch']
  %s0 = inlined_call_operand.vmem [shape: bf16[2,2,32,18], index: 0, kind: input, shape index: {}]
  %s1 = inlined_call_operand.vmem [shape: f32[1,32,1], index: 1, kind: input, shape index: {}]
  %s2 = inlined_call_operand.vmem [shape: f32[1,32,1], index: 2, kind: input, shape index: {}]
  %s3 = inlined_call_operand.vmem [shape: bf16[2,2,32,18], index: 3, kind: output, shape index: {}]
  %s4 = sld [smem:[#allocation0]]
  $region45: #{patch_discriminator_forward.10} parent=0
    _
  %s6 = ssub.s32 1, %s4
  %s7 = scalar_select 0, %s6, %s4
  loop: start=0, step=1, limit=4
  $region2: #{patch_discriminator_forward.10} parent=0 // loop_pre_header
    _
  $region3: #{patch_discriminator_forward.10} parent=0 // loop_header
    %s9 = sphi 0, %s13
    %p10 = scmp.ge.s32.totalorder %s9, 4
    %s19 = sphi 0, %s21
    %s22 = sphi 0, %s19
    %s23 = sphi 0, %s22
    %s39 = sphi 0, %s23
    %s43 = sphi 0, %s43
    %s45 = sphi 0, %s43
    %s46 = sphi 0, %s45
    %s60 = sphi 0, %s46
    %s64 = sphi 0, %s64
    %s66 = sphi 0, %s64
    %s67 = sphi 0, %s66
    %s81 = sphi 0, %s67
    %s87 = sphi 0, %s89
    %s90 = sphi 0, %s87
    %s91 = sphi 0, %s90
    %s107 = sphi 0, %s91
  $region4: #{patch_discriminator_forward.10} parent=0 // loop_header_branch
    %12 = sbr.rel (%p10) target = $region8
  $region5: #{patch_discriminator_forward.10} parent=0 // loop_body
    %s14 = ssub.s32 %s9, 1
    %s15 = ssub.s32 %s9, 2
    %s16 = sadd.s32 %s9, 1
    %s17 = ssub.s32 %s9, %s16
    %p18 = scmp.eq.s32.totalorder %s17, 0
    %s20 = sadd.s32 %s19, 1
    %s21 = scalar_select %p18, %s19, %s20
    %p24 = pneg %p18
    %p25 = scmp.eq.s32.totalorder %s9, 1
    %p26 = por %p24, %p25
    %p27 = scmp.ne.s32.totalorder %s19, %s22
    %p28 = scmp.eq.s32.totalorder %s9, 0
    %p29 = por %p27, %p28
    %p30 = scmp.ne.s32.totalorder %s19, %s22
    %p31 = scmp.eq.s32.totalorder %s14, 1
    %p32 = por %p30, %p31
    %p33 = scmp.ne.s32.totalorder %s22, %s23
    %p34 = scmp.eq.s32.totalorder %s14, 0
    %p35 = por %p33, %p34
    %p36 = scmp.ne.s32.totalorder %s22, %s23
    %p37 = scmp.eq.s32.totalorder %s15, 1
    %p38 = por %p36, %p37
    %p40 = scmp.ne.s32.totalorder %s23, %s39
    %p41 = scmp.eq.s32.totalorder %s15, 0
    %p42 = por %p40, %p41
    %s44 = sadd.s32 %s43, 1
    %p47 = scmp.eq.s32.totalorder %s9, 1
    %p48 = scmp.ne.s32.totalorder %s43, %s45
    %p49 = scmp.eq.s32.totalorder %s9, 0
    %p50 = por %p48, %p49
    %p51 = scmp.ne.s32.totalorder %s43, %s45
    %p52 = scmp.eq.s32.totalorder %s14, 1
    %p53 = por %p51, %p52
    %p54 = scmp.ne.s32.totalorder %s45, %s46
    %p55 = scmp.eq.s32.totalorder %s14, 0
    %p56 = por %p54, %p55
    %p57 = scmp.ne.s32.totalorder %s45, %s46
    %p58 = scmp.eq.s32.totalorder %s15, 1
    %p59 = por %p57, %p58
    %p61 = scmp.ne.s32.totalorder %s46, %s60
    %p62 = scmp.eq.s32.totalorder %s15, 0
    %p63 = por %p61, %p62
    %s65 = sadd.s32 %s64, 1
    %p68 = scmp.eq.s32.totalorder %s9, 1
    %p69 = scmp.ne.s32.totalorder %s64, %s66
    %p70 = scmp.eq.s32.totalorder %s9, 0
    %p71 = por %p69, %p70
    %p72 = scmp.ne.s32.totalorder %s64, %s66
    %p73 = scmp.eq.s32.totalorder %s14, 1
    %p74 = por %p72, %p73
    %p75 = scmp.ne.s32.totalorder %s66, %s67
    %p76 = scmp.eq.s32.totalorder %s14, 0
    %p77 = por %p75, %p76
    %p78 = scmp.ne.s32.totalorder %s66, %s67
    %p79 = scmp.eq.s32.totalorder %s15, 1
    %p80 = por %p78, %p79
    %p82 = scmp.ne.s32.totalorder %s67, %s81
    %p83 = scmp.eq.s32.totalorder %s15, 0
    %p84 = por %p82, %p83
    %s85 = ssub.s32 %s9, %s16
    %p86 = scmp.eq.s32.totalorder %s85, 0
    %s88 = sadd.s32 %s87, 1
    %s89 = scalar_select %p86, %s87, %s88
    %p92 = pneg %p86
    %p93 = scmp.eq.s32.totalorder %s9, 1
    %p94 = por %p92, %p93
    %p95 = scmp.ne.s32.totalorder %s87, %s90
    %p96 = scmp.eq.s32.totalorder %s9, 0
    %p97 = por %p95, %p96
    %p98 = scmp.ne.s32.totalorder %s87, %s90
    %p99 = scmp.eq.s32.totalorder %s14, 1
    %p100 = por %p98, %p99
    %p101 = scmp.ne.s32.totalorder %s90, %s91
    %p102 = scmp.eq.s32.totalorder %s14, 0
    %p103 = por %p101, %p102
    %p104 = scmp.ne.s32.totalorder %s90, %s91
    %p105 = scmp.eq.s32.totalorder %s15, 1
    %p106 = por %p104, %p105
    %p108 = scmp.ne.s32.totalorder %s91, %s107
    %p109 = scmp.eq.s32.totalorder %s15, 0
    %p110 = por %p108, %p109
    %p111 = scmp.le.s32.totalorder 1, %s9
    %p112 = scmp.lt.s32.totalorder %s9, 3
    %p113 = pnand %p111, %p112
    %p114 = pneg %p113
    // Predicated region
    $region9: #{patch_discriminator_forward.10} parent=5 // pred_check
      _
    $region10: #{patch_discriminator_forward.10} parent=5 // pred_check_branch
      %116 = sbr.rel (%p113) target = $region12
    $region11: #{patch_discriminator_forward.10} parent=5 // pred_region
      %s117 = ssub.s32 %s9, 1
      // Predicated region
      $region13: #{patch_discriminator_forward.10} parent=11 // pred_check
        %p118 = pneg %p56
      $region14: #{patch_discriminator_forward.10} parent=11 // pred_check_branch
        %120 = sbr.rel (%p118) target = $region16
      $region15: #{patch_discriminator_forward.10} parent=11 // pred_region
        _
      $region16: #{patch_discriminator_forward.10} parent=11 // pred_fallthru
        _
      // Predicated region
      $region17: #{patch_discriminator_forward.10} parent=11 // pred_check
        %p121 = pneg %p77
      $region18: #{patch_discriminator_forward.10} parent=11 // pred_check_branch
        %123 = sbr.rel (%p121) target = $region20
      $region19: #{patch_discriminator_forward.10} parent=11 // pred_region
        _
      $region20: #{patch_discriminator_forward.10} parent=11 // pred_fallthru
        _
    $region12: #{patch_discriminator_forward.10} parent=5 // pred_fallthru
      _
    %p124 = scmp.lt.s32.totalorder %s9, 2
    // Predicated region
    $region21: #{patch_discriminator_forward.10} parent=5 // pred_check
      %p125 = pneg %p124
    $region22: #{patch_discriminator_forward.10} parent=5 // pred_check_branch
      %127 = sbr.rel (%p125) target = $region24
    $region23: #{patch_discriminator_forward.10} parent=5 // pred_region
      // Predicated region
      $region25: #{patch_discriminator_forward.10} parent=23 // pred_check
        %p128 = pneg %p29
      $region26: #{patch_discriminator_forward.10} parent=23 // pred_check_branch
        %130 = sbr.rel (%p128) target = $region28
      $region27: #{patch_discriminator_forward.10} parent=23 // pred_region
        %p131 = scmp.lt.s32.totalorder %s9, 1
        %s132 = scalar_select %p131, %s9, 1
        %s133 = smul.addr %s132, 8
        %s134 = smul.addr %s133, 4
        %s135 = scalar_lea.vmem %s0, %s134
      $region28: #{patch_discriminator_forward.10} parent=23 // pred_fallthru
        _
    $region24: #{patch_discriminator_forward.10} parent=5 // pred_fallthru
      _
    %p136 = scmp.le.s32.totalorder 1, %s9
    %p137 = scmp.lt.s32.totalorder %s9, 3
    %p138 = pnand %p136, %p137
    %p139 = pneg %p138
    // Predicated region
    $region29: #{patch_discriminator_forward.10} parent=5 // pred_check
      _
    $region30: #{patch_discriminator_forward.10} parent=5 // pred_check_branch
      %141 = sbr.rel (%p138) target = $region32
    $region31: #{patch_discriminator_forward.10} parent=5 // pred_region
      %s142 = ssub.s32 %s9, 1
      %p143 = scmp.lt.s32.totalorder %s14, 1
      %s144 = scalar_select %p143, %s14, 1
      %s145 = smul.addr %s144, 8
      %s146 = smul.addr %s145, 4
      %s147 = scalar_lea.vmem %s0, %s146
      %p148 = pneg %p35
      %p149 = pneg %p32
      %p150 = pneg %p56
      %p151 = pneg %p53
      %p152 = pneg %p77
      %p153 = pneg %p74
      %p154 = pneg %p103
      %p155 = pneg %p100
      %p156 = scmp.lt.s32.totalorder %s14, 1
      %s157 = scalar_select %p156, %s14, 1
      %s158 = smul.addr %s157, 8
      %s159 = smul.addr %s158, 4
      %s160 = scalar_lea.vmem %s3, %s159
      %p161 = scmp.lt.s32.totalorder %s14, 1
      %s162 = scalar_select %p161, %s14, 1
      %s163 = smul.addr %s162, 8
      %s164 = smul.addr %s163, 4
      %s165 = scalar_lea.vmem %s0, %s164
      %p166 = scmp.lt.s32.totalorder %s14, 1
      %s167 = scalar_select %p166, %s14, 1
      %s168 = smul.addr %s167, 8
      %s169 = smul.addr %s168, 4
      %s170 = scalar_lea.vmem %s3, %s169
      %v171 = vld [vmem:[%s165] sm:$0xf]
      %v172 = vld [vmem:[%s165 + $0x4] sm:$0xf]
      %v173 = vld [vmem:[%s165 + $0x8] sm:$0xf]
      %v174 = vld [vmem:[%s165 + $0xc] sm:$0xf]
      %v175 = vld [vmem:[%s165 + $0x10] sm:$0xf]
      %v176 = vld [vmem:[%s165 + $0x14] sm:$0xf]
      %v177 = vld [vmem:[%s165 + $0x18] sm:$0xf]
      %v178 = vld [vmem:[%s165 + $0x1c] sm:$0xf]
      %v179 = vunpack.c.l.bf16 %v171
      %v180 = vunpack.c.l.bf16 %v172
      %v181 = vunpack.c.l.bf16 %v173
      %v182 = vunpack.c.l.bf16 %v174
      %v183 = vunpack.c.l.bf16 %v175
      %v184 = vunpack.c.l.bf16 %v176
      %v185 = vunpack.c.l.bf16 %v177
      %v186 = vunpack.c.l.bf16 %v178
      %vm187 = vcmask 146432
      %v188 = vsel %vm187, %v179, 0.0
      %189 = vadd.xlane.f32.xlu0 %v188
      %v190 = vpop.xlane.xlu0 %189
      %v191 = vsel %vm187, %v180, 0.0
      %192 = vadd.xlane.f32.xlu0 %v191
      %v193 = vpop.xlane.xlu0 %192
      %v194 = vsel %vm187, %v181, 0.0
      %195 = vadd.xlane.f32.xlu0 %v194
      %v196 = vpop.xlane.xlu0 %195
      %v197 = vsel %vm187, %v182, 0.0
      %198 = vadd.xlane.f32.xlu0 %v197
      %v199 = vpop.xlane.xlu0 %198
      %v200 = vsel %vm187, %v183, 0.0
      %201 = vadd.xlane.f32.xlu0 %v200
      %v202 = vpop.xlane.xlu0 %201
      %v203 = vsel %vm187, %v184, 0.0
      %204 = vadd.xlane.f32.xlu0 %v203
      %v205 = vpop.xlane.xlu0 %204
      %v206 = vsel %vm187, %v185, 0.0
      %207 = vadd.xlane.f32.xlu0 %v206
      %v208 = vpop.xlane.xlu0 %207
      %v209 = vsel %vm187, %v186, 0.0
      %210 = vadd.xlane.f32.xlu0 %v209
      %v211 = vpop.xlane.xlu0 %210
      %v212 = vmul.f32 %v179, %v179
      %v213 = vmul.f32 %v180, %v180
      %v214 = vmul.f32 %v181, %v181
      %v215 = vmul.f32 %v182, %v182
      %v216 = vmul.f32 %v183, %v183
      %v217 = vmul.f32 %v184, %v184
      %v218 = vmul.f32 %v185, %v185
      %v219 = vmul.f32 %v186, %v186
      %v220 = vsel %vm187, %v212, 0.0
      %221 = vadd.xlane.f32.xlu0 %v220
      %v222 = vpop.xlane.xlu0 %221
      %v223 = vsel %vm187, %v213, 0.0
      %224 = vadd.xlane.f32.xlu0 %v223
      %v225 = vpop.xlane.xlu0 %224
      %v226 = vsel %vm187, %v214, 0.0
      %227 = vadd.xlane.f32.xlu0 %v226
      %v228 = vpop.xlane.xlu0 %227
      %v229 = vsel %vm187, %v215, 0.0
      %230 = vadd.xlane.f32.xlu0 %v229
      %v231 = vpop.xlane.xlu0 %230
      %v232 = vsel %vm187, %v216, 0.0
      %233 = vadd.xlane.f32.xlu0 %v232
      %v234 = vpop.xlane.xlu0 %233
      %v235 = vsel %vm187, %v217, 0.0
      %236 = vadd.xlane.f32.xlu0 %v235
      %v237 = vpop.xlane.xlu0 %236
      %v238 = vsel %vm187, %v218, 0.0
      %239 = vadd.xlane.f32.xlu0 %v238
      %v240 = vpop.xlane.xlu0 %239
      %v241 = vsel %vm187, %v219, 0.0
      %242 = vadd.xlane.f32.xlu0 %v241
      %v243 = vpop.xlane.xlu0 %242
      %v244 = vadd.f32 %v190, %v202
      %v245 = vadd.f32 %v193, %v205
      %v246 = vadd.f32 %v196, %v208
      %v247 = vadd.f32 %v199, %v211
      %v248 = vadd.f32 %v222, %v234
      %v249 = vadd.f32 %v225, %v237
      %v250 = vadd.f32 %v228, %v240
      %v251 = vadd.f32 %v231, %v243
      %v252 = vmul.f32 %v244, 0.055555556
      %v253 = vmul.f32 %v245, 0.055555556
      %v254 = vmul.f32 %v246, 0.055555556
      %v255 = vmul.f32 %v247, 0.055555556
      %v256 = vmul.f32 %v248, 0.055555556
      %v257 = vmul.f32 %v249, 0.055555556
      %v258 = vmul.f32 %v250, 0.055555556
      %v259 = vmul.f32 %v251, 0.055555556
      %v260 = vmul.f32 %v252, %v252
      %v261 = vmul.f32 %v253, %v253
      %v262 = vmul.f32 %v254, %v254
      %v263 = vmul.f32 %v255, %v255
      %v264 = vsub.f32 %v256, %v260
      %v265 = vsub.f32 %v257, %v261
      %v266 = vsub.f32 %v258, %v262
      %v267 = vsub.f32 %v259, %v263
      %v268 = vadd.f32 %v264, 1e-05
      %v269 = vadd.f32 %v265, 1e-05
      %v270 = vadd.f32 %v266, 1e-05
      %v271 = vadd.f32 %v267, 1e-05
      %v272 = vrsqrt.pop %v268
      %v273 = vrsqrt.pop %v269
      %v274 = vrsqrt.pop %v270
      %v275 = vrsqrt.pop %v271
      %v276 = vld [vmem:[%s1] sm:$0xff]
      %v277 = vld [vmem:[%s1 + $0x8] sm:$0xff]
      %v278 = vld [vmem:[%s1 + $0x10] sm:$0xff]
      %v279 = vld [vmem:[%s1 + $0x18] sm:$0xff]
      %v280 = vmul.f32 %v272, %v276
      %v281 = vmul.f32 %v273, %v277
      %v282 = vmul.f32 %v274, %v278
      %v283 = vmul.f32 %v275, %v279
      %v284 = vld [vmem:[%s2] sm:$0xff]
      %v285 = vld [vmem:[%s2 + $0x8] sm:$0xff]
      %v286 = vld [vmem:[%s2 + $0x10] sm:$0xff]
      %v287 = vld [vmem:[%s2 + $0x18] sm:$0xff]
      %v288 = vmul.f32 %v252, %v280
      %v289 = vmul.f32 %v253, %v281
      %v290 = vmul.f32 %v254, %v282
      %v291 = vmul.f32 %v255, %v283
      %v292 = vsub.f32 %v284, %v288
      %v293 = vsub.f32 %v285, %v289
      %v294 = vsub.f32 %v286, %v290
      %v295 = vsub.f32 %v287, %v291
      %297 = vset.pattern.permute.xlu0 0
      %298 = vperm.xlu0 %297, %v280
      %v299 = vpop.permute.xlu0 %298
      %302 = vset.pattern.permute.xlu0 0
      %303 = vperm.xlu0 %302, %v281
      %v304 = vpop.permute.xlu0 %303
      %307 = vset.pattern.permute.xlu0 0
      %308 = vperm.xlu0 %307, %v282
      %v309 = vpop.permute.xlu0 %308
      %312 = vset.pattern.permute.xlu0 0
      %313 = vperm.xlu0 %312, %v283
      %v314 = vpop.permute.xlu0 %313
      %v316 = vmul.f32 %v179, %v299
      %v317 = vmul.f32 %v180, %v304
      %v318 = vmul.f32 %v181, %v309
      %v319 = vmul.f32 %v182, %v314
      %v320 = vmul.f32 %v183, %v299
      %v321 = vmul.f32 %v184, %v304
      %v322 = vmul.f32 %v185, %v309
      %v323 = vmul.f32 %v186, %v314
      %325 = vset.pattern.permute.xlu0 0
      %326 = vperm.xlu0 %325, %v292
      %v327 = vpop.permute.xlu0 %326
      %330 = vset.pattern.permute.xlu0 0
      %331 = vperm.xlu0 %330, %v293
      %v332 = vpop.permute.xlu0 %331
      %335 = vset.pattern.permute.xlu0 0
      %336 = vperm.xlu0 %335, %v294
      %v337 = vpop.permute.xlu0 %336
      %340 = vset.pattern.permute.xlu0 0
      %341 = vperm.xlu0 %340, %v295
      %v342 = vpop.permute.xlu0 %341
      %v344 = vadd.f32 %v316, %v327
      %v345 = vadd.f32 %v317, %v332
      %v346 = vadd.f32 %v318, %v337
      %v347 = vadd.f32 %v319, %v342
      %v348 = vadd.f32 %v320, %v327
      %v349 = vadd.f32 %v321, %v332
      %v350 = vadd.f32 %v322, %v337
      %v351 = vadd.f32 %v323, %v342
      %vm352 = vcmp.ge.f32.partialorder %v344, 0.0
      %vm353 = vcmp.ge.f32.partialorder %v345, 0.0
      %vm354 = vcmp.ge.f32.partialorder %v346, 0.0
      %vm355 = vcmp.ge.f32.partialorder %v347, 0.0
      %vm356 = vcmp.ge.f32.partialorder %v348, 0.0
      %vm357 = vcmp.ge.f32.partialorder %v349, 0.0
      %vm358 = vcmp.ge.f32.partialorder %v350, 0.0
      %vm359 = vcmp.ge.f32.partialorder %v351, 0.0
      %v360 = vmul.f32 %v344, 0.2
      %v361 = vmul.f32 %v345, 0.2
      %v362 = vmul.f32 %v346, 0.2
      %v363 = vmul.f32 %v347, 0.2
      %v364 = vmul.f32 %v348, 0.2
      %v365 = vmul.f32 %v349, 0.2
      %v366 = vmul.f32 %v350, 0.2
      %v367 = vmul.f32 %v351, 0.2
      %v368 = vsel %vm352, %v344, %v360
      %v369 = vsel %vm353, %v345, %v361
      %v370 = vsel %vm354, %v346, %v362
      %v371 = vsel %vm355, %v347, %v363
      %v372 = vsel %vm356, %v348, %v364
      %v373 = vsel %vm357, %v349, %v365
      %v374 = vsel %vm358, %v350, %v366
      %v375 = vsel %vm359, %v351, %v367
      %v376 = vpack.c.bf16 %v369, %v368
      %v377 = vpack.c.bf16 %v371, %v370
      %v378 = vpack.c.bf16 %v373, %v372
      %v379 = vpack.c.bf16 %v375, %v374
      %v384 = vunpack.c.l.b16 %v376
      %v385 = vunpack.c.h.b16 %v376
      %v386 = vunpack.c.l.b16 %v377
      %v387 = vunpack.c.h.b16 %v377
      %v388 = vunpack.c.l.b16 %v378
      %v389 = vunpack.c.h.b16 %v378
      %v390 = vunpack.c.l.b16 %v379
      %v391 = vunpack.c.h.b16 %v379
      %v392 = vpack.c.b16 %v384, %v384
      %v393 = vpack.c.b16 %v385, %v385
      %v394 = vpack.c.b16 %v386, %v386
      %v395 = vpack.c.b16 %v387, %v387
      %v396 = vpack.c.b16 %v388, %v388
      %v397 = vpack.c.b16 %v389, %v389
      %v398 = vpack.c.b16 %v390, %v390
      %v399 = vpack.c.b16 %v391, %v391
      %vm408 = vcmask 142336
      %409 = vst.msk [vmem:[%s170] sm:$0xf] %vm408, %v392
      %410 = vst.msk [vmem:[%s170 + $0x4] sm:$0xf] %vm408, %v393
      %411 = vst.msk [vmem:[%s170 + $0x8] sm:$0xf] %vm408, %v394
      %412 = vst.msk [vmem:[%s170 + $0xc] sm:$0xf] %vm408, %v395
      %413 = vst.msk [vmem:[%s170 + $0x10] sm:$0xf] %vm408, %v396
      %414 = vst.msk [vmem:[%s170 + $0x14] sm:$0xf] %vm408, %v397
      %415 = vst.msk [vmem:[%s170 + $0x18] sm:$0xf] %vm408, %v398
      %416 = vst.msk [vmem:[%s170 + $0x1c] sm:$0xf] %vm408, %v399
      %p417 = scmp.lt.s32.totalorder %s14, 1
      %s418 = scalar_select %p417, %s14, 1
      %s419 = smul.addr %s418, 8
      %s420 = smul.addr %s419, 4
      %s421 = scalar_lea.vmem %s3, %s420
      // Predicated region
      $region33: #{patch_discriminator_forward.10} parent=31 // pred_check
        %p422 = pneg %p100
      $region34: #{patch_discriminator_forward.10} parent=31 // pred_check_branch
        %424 = sbr.rel (%p422) target = $region36
      $region35: #{patch_discriminator_forward.10} parent=31 // pred_region
        _
      $region36: #{patch_discriminator_forward.10} parent=31 // pred_fallthru
        _
    $region32: #{patch_discriminator_forward.10} parent=5 // pred_fallthru
      _
    %p425 = scmp.le.s32.totalorder 2, %s9
    // Predicated region
    $region37: #{patch_discriminator_forward.10} parent=5 // pred_check
      %p426 = pneg %p425
    $region38: #{patch_discriminator_forward.10} parent=5 // pred_check_branch
      %428 = sbr.rel (%p426) target = $region40
    $region39: #{patch_discriminator_forward.10} parent=5 // pred_region
      %s429 = ssub.s32 %s9, 2
      // Predicated region
      $region41: #{patch_discriminator_forward.10} parent=39 // pred_check
        %p430 = pneg %p106
      $region42: #{patch_discriminator_forward.10} parent=39 // pred_check_branch
        %432 = sbr.rel (%p430) target = $region44
      $region43: #{patch_discriminator_forward.10} parent=39 // pred_region
        %p433 = scmp.lt.s32.totalorder %s15, 1
        %s434 = scalar_select %p433, %s15, 1
        %s435 = smul.addr %s434, 8
        %s436 = smul.addr %s435, 4
        %s437 = scalar_lea.vmem %s3, %s436
      $region44: #{patch_discriminator_forward.10} parent=39 // pred_fallthru
        _
    $region40: #{patch_discriminator_forward.10} parent=5 // pred_fallthru
      _
  $region6: #{patch_discriminator_forward.10} parent=0 // loop_footer
    %s13 = sadd.s32 1, %s9
  $region7: #{patch_discriminator_forward.10} parent=0 // loop_footer_branch
    %8 = sbr.rel target = $region3
  $region8: #{patch_discriminator_forward.10} parent=0 // loop_exit
    _

// kernel: patch_discriminator_forward.9
$region0: #{patch_discriminator_forward.9}
  #allocation0 [shape = 'u32[]', space=smem, size = 0x4, offset = 0x4, fixed_abs, tag = 'smem constant byte address 0x4 - core index']
  #allocation1 [shape = 'u32[144,128]{1,0:T(1,128)}', space=vmem, size = 0x12000, scoped, tag = 'internal scratch']
  #allocation2 [shape = 'f32[32,18]{1,0:T(8,128)}', space=vmem, size = 0x4000, scoped, tag = 'scratch operand']
  #allocation3 [shape = 'bf16[256,18]{1,0:T(16,128)(2,1)}', space=vmem, size = 0x10000, scoped, tag = 'scratch operand']
  %s0 = inlined_call_operand.vmem [shape: bf16[8,1,16,39], index: 0, kind: input, shape index: {}]
  %s1 = inlined_call_operand.vmem [shape: bf16[3,32,256], index: 1, kind: input, shape index: {}]
  %s2 = inlined_call_operand.vmem [shape: f32[32,1], index: 2, kind: input, shape index: {}]
  %s3 = inlined_call_operand.vmem [shape: f32[1,18], index: 3, kind: input, shape index: {}]
  %s4 = inlined_call_operand.vmem [shape: bf16[4,32,18], index: 4, kind: output, shape index: {}]
  %s5 = sld [smem:[#allocation0]]
  $region57: #{patch_discriminator_forward.9} parent=0
    _
  %s7 = ssub.s32 1, %s5
  %s8 = scalar_select 0, %s7, %s5
  loop: start=0, step=1, limit=14
  $region2: #{patch_discriminator_forward.9} parent=0 // loop_pre_header
    _
  $region3: #{patch_discriminator_forward.9} parent=0 // loop_header
    %s10 = sphi 0, %s14
    %p11 = scmp.ge.s32.totalorder %s10, 14
    %s17 = sphi 0, %s36
    %s18 = sphi 0, %s32
    %s19 = sphi 0, %s28
    %s20 = sphi 0, %s17
    %s21 = sphi 0, %s18
    %s22 = sphi 0, %s19
    %s23 = sphi 0, %s20
    %s24 = sphi 0, %s21
    %s25 = sphi 0, %s22
    %s45 = sphi 0, %s47
    %s48 = sphi 0, %s45
    %s49 = sphi 0, %s48
    %s65 = sphi 0, %s49
    %s69 = sphi 0, %s69
    %s71 = sphi 0, %s69
    %s72 = sphi 0, %s71
    %s86 = sphi 0, %s72
    %s90 = sphi 0, %s90
    %s92 = sphi 0, %s90
    %s93 = sphi 0, %s92
    %s107 = sphi 0, %s93
    %s111 = sphi 0, %s111
    %s113 = sphi 0, %s111
    %s114 = sphi 0, %s113
    %s128 = sphi 0, %s114
    %s138 = sphi 0, %s140
    %s141 = sphi 0, %s138
    %s142 = sphi 0, %s141
    %s158 = sphi 0, %s142
  $region4: #{patch_discriminator_forward.9} parent=0 // loop_header_branch
    %13 = sbr.rel (%p11) target = $region8
  $region5: #{patch_discriminator_forward.9} parent=0 // loop_body
    %s15 = ssub.s32 %s10, 1
    %s16 = ssub.s32 %s10, 2
    %s26 = sadd.s32 1, %s19
    %p27 = scmp.ge.s32.totalorder %s26, 3
    %s28 = scalar_select %p27, 0, %s26
    %s29 = sadd.s32 1, %s18
    %s30 = scalar_select %p27, %s29, %s18
    %p31 = scmp.ge.s32.totalorder %s30, 2
    %s32 = scalar_select %p31, 0, %s30
    %s33 = sadd.s32 1, %s17
    %s34 = scalar_select %p31, %s33, %s17
    %p35 = scmp.ge.s32.totalorder %s34, 2
    %s36 = scalar_select %p35, 0, %s34
    %s37 = smul.u32 %s17, 4
    %s38 = sadd.s32 %s37, %s18
    %s39 = sadd.s32 %s38, %s19
    %s40 = smul.u32 %s36, 4
    %s41 = sadd.s32 %s40, %s32
    %s42 = sadd.s32 %s41, %s28
    %s43 = ssub.s32 %s39, %s42
    %p44 = scmp.eq.s32.totalorder %s43, 0
    %s46 = sadd.s32 %s45, 1
    %s47 = scalar_select %p44, %s45, %s46
    %p50 = pneg %p44
    %p51 = scmp.eq.s32.totalorder %s10, 11
    %p52 = por %p50, %p51
    %p53 = scmp.ne.s32.totalorder %s45, %s48
    %p54 = scmp.eq.s32.totalorder %s10, 0
    %p55 = por %p53, %p54
    %p56 = scmp.ne.s32.totalorder %s45, %s48
    %p57 = scmp.eq.s32.totalorder %s15, 11
    %p58 = por %p56, %p57
    %p59 = scmp.ne.s32.totalorder %s48, %s49
    %p60 = scmp.eq.s32.totalorder %s15, 0
    %p61 = por %p59, %p60
    %p62 = scmp.ne.s32.totalorder %s48, %s49
    %p63 = scmp.eq.s32.totalorder %s16, 11
    %p64 = por %p62, %p63
    %p66 = scmp.ne.s32.totalorder %s49, %s65
    %p67 = scmp.eq.s32.totalorder %s16, 0
    %p68 = por %p66, %p67
    %s70 = sadd.s32 %s69, 1
    %p73 = scmp.eq.s32.totalorder %s10, 11
    %p74 = scmp.ne.s32.totalorder %s69, %s71
    %p75 = scmp.eq.s32.totalorder %s10, 0
    %p76 = por %p74, %p75
    %p77 = scmp.ne.s32.totalorder %s69, %s71
    %p78 = scmp.eq.s32.totalorder %s15, 11
    %p79 = por %p77, %p78
    %p80 = scmp.ne.s32.totalorder %s71, %s72
    %p81 = scmp.eq.s32.totalorder %s15, 0
    %p82 = por %p80, %p81
    %p83 = scmp.ne.s32.totalorder %s71, %s72
    %p84 = scmp.eq.s32.totalorder %s16, 11
    %p85 = por %p83, %p84
    %p87 = scmp.ne.s32.totalorder %s72, %s86
    %p88 = scmp.eq.s32.totalorder %s16, 0
    %p89 = por %p87, %p88
    %s91 = sadd.s32 %s90, 1
    %p94 = scmp.eq.s32.totalorder %s10, 11
    %p95 = scmp.ne.s32.totalorder %s90, %s92
    %p96 = scmp.eq.s32.totalorder %s10, 0
    %p97 = por %p95, %p96
    %p98 = scmp.ne.s32.totalorder %s90, %s92
    %p99 = scmp.eq.s32.totalorder %s15, 11
    %p100 = por %p98, %p99
    %p101 = scmp.ne.s32.totalorder %s92, %s93
    %p102 = scmp.eq.s32.totalorder %s15, 0
    %p103 = por %p101, %p102
    %p104 = scmp.ne.s32.totalorder %s92, %s93
    %p105 = scmp.eq.s32.totalorder %s16, 11
    %p106 = por %p104, %p105
    %p108 = scmp.ne.s32.totalorder %s93, %s107
    %p109 = scmp.eq.s32.totalorder %s16, 0
    %p110 = por %p108, %p109
    %s112 = sadd.s32 %s111, 1
    %p115 = scmp.eq.s32.totalorder %s10, 11
    %p116 = scmp.ne.s32.totalorder %s111, %s113
    %p117 = scmp.eq.s32.totalorder %s10, 0
    %p118 = por %p116, %p117
    %p119 = scmp.ne.s32.totalorder %s111, %s113
    %p120 = scmp.eq.s32.totalorder %s15, 11
    %p121 = por %p119, %p120
    %p122 = scmp.ne.s32.totalorder %s113, %s114
    %p123 = scmp.eq.s32.totalorder %s15, 0
    %p124 = por %p122, %p123
    %p125 = scmp.ne.s32.totalorder %s113, %s114
    %p126 = scmp.eq.s32.totalorder %s16, 11
    %p127 = por %p125, %p126
    %p129 = scmp.ne.s32.totalorder %s114, %s128
    %p130 = scmp.eq.s32.totalorder %s16, 0
    %p131 = por %p129, %p130
    %s132 = smul.u32 %s17, 2
    %s133 = sadd.s32 %s132, %s18
    %s134 = smul.u32 %s36, 2
    %s135 = sadd.s32 %s134, %s32
    %s136 = ssub.s32 %s133, %s135
    %p137 = scmp.eq.s32.totalorder %s136, 0
    %s139 = sadd.s32 %s138, 1
    %s140 = scalar_select %p137, %s138, %s139
    %p143 = pneg %p137
    %p144 = scmp.eq.s32.totalorder %s10, 11
    %p145 = por %p143, %p144
    %p146 = scmp.ne.s32.totalorder %s138, %s141
    %p147 = scmp.eq.s32.totalorder %s10, 0
    %p148 = por %p146, %p147
    %p149 = scmp.ne.s32.totalorder %s138, %s141
    %p150 = scmp.eq.s32.totalorder %s15, 11
    %p151 = por %p149, %p150
    %p152 = scmp.ne.s32.totalorder %s141, %s142
    %p153 = scmp.eq.s32.totalorder %s15, 0
    %p154 = por %p152, %p153
    %p155 = scmp.ne.s32.totalorder %s141, %s142
    %p156 = scmp.eq.s32.totalorder %s16, 11
    %p157 = por %p155, %p156
    %p159 = scmp.ne.s32.totalorder %s142, %s158
    %p160 = scmp.eq.s32.totalorder %s16, 0
    %p161 = por %p159, %p160
    %p162 = scmp.le.s32.totalorder 1, %s10
    %p163 = scmp.lt.s32.totalorder %s10, 13
    %p164 = pnand %p162, %p163
    %p165 = pneg %p164
    // Predicated region
    $region9: #{patch_discriminator_forward.9} parent=5 // pred_check
      _
    $region10: #{patch_discriminator_forward.9} parent=5 // pred_check_branch
      %167 = sbr.rel (%p164) target = $region12
    $region11: #{patch_discriminator_forward.9} parent=5 // pred_region
      %s168 = ssub.s32 %s10, 1
      // Predicated region
      $region13: #{patch_discriminator_forward.9} parent=11 // pred_check
        %p169 = pneg %p82
      $region14: #{patch_discriminator_forward.9} parent=11 // pred_check_branch
        %171 = sbr.rel (%p169) target = $region16
      $region15: #{patch_discriminator_forward.9} parent=11 // pred_region
        _
      $region16: #{patch_discriminator_forward.9} parent=11 // pred_fallthru
        _
      // Predicated region
      $region17: #{patch_discriminator_forward.9} parent=11 // pred_check
        %p172 = pneg %p103
      $region18: #{patch_discriminator_forward.9} parent=11 // pred_check_branch
        %174 = sbr.rel (%p172) target = $region20
      $region19: #{patch_discriminator_forward.9} parent=11 // pred_region
        _
      $region20: #{patch_discriminator_forward.9} parent=11 // pred_fallthru
        _
      // Predicated region
      $region21: #{patch_discriminator_forward.9} parent=11 // pred_check
        %p175 = pneg %p124
      $region22: #{patch_discriminator_forward.9} parent=11 // pred_check_branch
        %177 = sbr.rel (%p175) target = $region24
      $region23: #{patch_discriminator_forward.9} parent=11 // pred_region
        _
      $region24: #{patch_discriminator_forward.9} parent=11 // pred_fallthru
        _
    $region12: #{patch_discriminator_forward.9} parent=5 // pred_fallthru
      _
    %p178 = scmp.lt.s32.totalorder %s10, 12
    // Predicated region
    $region25: #{patch_discriminator_forward.9} parent=5 // pred_check
      %p179 = pneg %p178
    $region26: #{patch_discriminator_forward.9} parent=5 // pred_check_branch
      %181 = sbr.rel (%p179) target = $region28
    $region27: #{patch_discriminator_forward.9} parent=5 // pred_region
      // Predicated region
      $region29: #{patch_discriminator_forward.9} parent=27 // pred_check
        %p182 = pneg %p55
      $region30: #{patch_discriminator_forward.9} parent=27 // pred_check_branch
        %184 = sbr.rel (%p182) target = $region32
      $region31: #{patch_discriminator_forward.9} parent=27 // pred_region
        %s185 = smul.u32 %s17, 4
        %s186 = sadd.s32 %s185, %s18
        %s187 = sadd.s32 %s186, %s19
        %p188 = scmp.lt.s32.totalorder %s187, 7
        %s189 = scalar_select %p188, %s187, 7
        %s190 = smul.addr %s189, 2
        %s191 = smul.addr %s190, 4
        %s192 = scalar_lea.vmem %s0, %s191
        %s193 = smul.u32 %s17, 4
        %s194 = sadd.s32 %s193, %s18
        %s195 = sadd.s32 %s194, %s19
      $region32: #{patch_discriminator_forward.9} parent=27 // pred_fallthru
        _
    $region28: #{patch_discriminator_forward.9} parent=5 // pred_fallthru
      _
    %p196 = scmp.le.s32.totalorder 1, %s10
    %p197 = scmp.lt.s32.totalorder %s10, 13
    %p198 = pnand %p196, %p197
    %p199 = pneg %p198
    // Predicated region
    $region33: #{patch_discriminator_forward.9} parent=5 // pred_check
      _
    $region34: #{patch_discriminator_forward.9} parent=5 // pred_check_branch
      %201 = sbr.rel (%p198) target = $region36
    $region35: #{patch_discriminator_forward.9} parent=5 // pred_region
      %s202 = ssub.s32 %s10, 1
      %s203 = smul.u32 %s20, 4
      %s204 = sadd.s32 %s203, %s21
      %s205 = sadd.s32 %s204, %s22
      %p206 = scmp.lt.s32.totalorder %s205, 7
      %s207 = scalar_select %p206, %s205, 7
      %s208 = smul.addr %s207, 2
      %s209 = smul.addr %s208, 4
      %s210 = scalar_lea.vmem %s0, %s209
      %p211 = pneg %p61
      %p212 = pneg %p58
      %p213 = pneg %p82
      %p214 = pneg %p79
      %p215 = pneg %p103
      %p216 = pneg %p100
      %p217 = pneg %p124
      %p218 = pneg %p121
      %p219 = pneg %p154
      %p220 = pneg %p151
      %s221 = smul.u32 %s20, 2
      %s222 = sadd.s32 %s221, %s21
      %p223 = scmp.lt.s32.totalorder %s222, 3
      %s224 = scalar_select %p223, %s222, 3
      %s225 = smul.addr %s224, 4
      %s226 = smul.addr %s225, 4
      %s227 = scalar_lea.vmem %s4, %s226
      %s228 = smul.u32 %s20, 4
      %s229 = sadd.s32 %s228, %s21
      %s230 = sadd.s32 %s229, %s22
      %p231 = scmp.lt.s32.totalorder %s230, 7
      %s232 = scalar_select %p231, %s230, 7
      %s233 = smul.addr %s232, 2
      %s234 = smul.addr %s233, 4
      %s235 = scalar_lea.vmem %s0, %s234
      %s236 = smul.u32 %s20, 4
      %s237 = sadd.s32 %s236, %s21
      %s238 = sadd.s32 %s237, %s22
      %s239 = smul.u32 %s20, 2
      %s240 = sadd.s32 %s239, %s21
      %p241 = scmp.lt.s32.totalorder %s240, 3
      %s242 = scalar_select %p241, %s240, 3
      %s243 = smul.addr %s242, 4
      %s244 = smul.addr %s243, 4
      %s245 = scalar_lea.vmem %s4, %s244
      %s246 = smul.u32 %s20, 2
      %s247 = sadd.s32 %s246, %s21
      %p249 = scmp.eq.s32.totalorder %s22, 0
      // Predicated region
      $region37: #{patch_discriminator_forward.9} parent=35 // pred_check
        %p250 = pneg %p249
      $region38: #{patch_discriminator_forward.9} parent=35 // pred_check_branch
        %252 = sbr.rel (%p250) target = $region40
      $region39: #{patch_discriminator_forward.9} parent=35 // pred_region
        %vm253 = vcmask 146432
        %254 = vst.msk [vmem:[#allocation2] sm:$0xff] %vm253, 0.0
        %255 = vst.msk [vmem:[#allocation2 + $0x8] sm:$0xff] %vm253, 0.0
        %256 = vst.msk [vmem:[#allocation2 + $0x10] sm:$0xff] %vm253, 0.0
        %257 = vst.msk [vmem:[#allocation2 + $0x18] sm:$0xff] %vm253, 0.0
      $region40: #{patch_discriminator_forward.9} parent=35 // pred_fallthru
        _
      %v258 = vld [vmem:[%s235] sm:$0xf]
      %v259 = vld [vmem:[%s235 + $0x4] sm:$0xf]
      %v262 = vunpack.c.l.b16 %v258
      %v263 = vunpack.c.l.b16 %v259
      %v264 = vpack.c.b16 %v263, %v262
      %vm266 = vcmask 146432
      %267 = vst.msk [vmem:[#allocation3] sm:$0xff] %vm266, %v264
      %v268 = vld [vmem:[%s235] sm:$0xf]
      %v269 = vld [vmem:[%s235 + $0x4] sm:$0xf]
      %v272 = vunpack.c.l.b16 %v268
      %v273 = vunpack.c.l.b16 %v269
      %v274 = vpack.c.b16 %v273, %v272
      %275 = vrot.lane.b32.xlu0 %v274, 127
      %v276 = vpop.permute.xlu0 %275
      %278 = vst.msk [vmem:[#allocation3 + $0x8] sm:$0xff] %vm266, %v276
      %v279 = vld [vmem:[%s235] sm:$0xf]
      %v280 = vld [vmem:[%s235 + $0x4] sm:$0xf]
      %v283 = vunpack.c.l.b16 %v279
      %v284 = vunpack.c.l.b16 %v280
      %v285 = vpack.c.b16 %v284, %v283
      %286 = vrot.lane.b32.xlu0 %v285, 126
      %v287 = vpop.permute.xlu0 %286
      %289 = vst.msk [vmem:[#allocation3 + $0x10] sm:$0xff] %vm266, %v287
      %v290 = vld [vmem:[%s235] sm:$0xf]
      %v291 = vld [vmem:[%s235 + $0x4] sm:$0xf]
      %v294 = vunpack.c.l.b16 %v290
      %v295 = vunpack.c.l.b16 %v291
      %v296 = vpack.c.b16 %v295, %v294
      %297 = vrot.lane.b32.xlu0 %v296, 125
      %v298 = vpop.permute.xlu0 %297
      %300 = vst.msk [vmem:[#allocation3 + $0x18] sm:$0xff] %vm266, %v298
      %v301 = vld [vmem:[%s235] sm:$0xf]
      %v302 = vld [vmem:[%s235 + $0x4] sm:$0xf]
      %v305 = vunpack.c.l.b16 %v301
      %v306 = vunpack.c.l.b16 %v302
      %v307 = vpack.c.b16 %v306, %v305
      %308 = vrot.lane.b32.xlu0 %v307, 122
      %v309 = vpop.permute.xlu0 %308
      %311 = vst.msk [vmem:[#allocation3 + $0x20] sm:$0xff] %vm266, %v309
      %v312 = vld [vmem:[%s235] sm:$0xf]
      %v313 = vld [vmem:[%s235 + $0x4] sm:$0xf]
      %v316 = vunpack.c.l.b16 %v312
      %v317 = vunpack.c.l.b16 %v313
      %v318 = vpack.c.b16 %v317, %v316
      %319 = vrot.lane.b32.xlu0 %v318, 121
      %v320 = vpop.permute.xlu0 %319
      %322 = vst.msk [vmem:[#allocation3 + $0x28] sm:$0xff] %vm266, %v320
      %v323 = vld [vmem:[%s235] sm:$0xf]
      %v324 = vld [vmem:[%s235 + $0x4] sm:$0xf]
      %v327 = vunpack.c.l.b16 %v323
      %v328 = vunpack.c.l.b16 %v324
      %v329 = vpack.c.b16 %v328, %v327
      %330 = vrot.lane.b32.xlu0 %v329, 120
      %v331 = vpop.permute.xlu0 %330
      %333 = vst.msk [vmem:[#allocation3 + $0x30] sm:$0xff] %vm266, %v331
      %v334 = vld [vmem:[%s235] sm:$0xf]
      %v335 = vld [vmem:[%s235 + $0x4] sm:$0xf]
      %v338 = vunpack.c.l.b16 %v334
      %v339 = vunpack.c.l.b16 %v335
      %v340 = vpack.c.b16 %v339, %v338
      %341 = vrot.lane.b32.xlu0 %v340, 119
      %v342 = vpop.permute.xlu0 %341
      %344 = vst.msk [vmem:[#allocation3 + $0x38] sm:$0xff] %vm266, %v342
      %v345 = vld [vmem:[%s235] sm:$0xf]
      %v346 = vld [vmem:[%s235 + $0x4] sm:$0xf]
      %v349 = vunpack.c.l.b16 %v345
      %v350 = vunpack.c.l.b16 %v346
      %v351 = vpack.c.b16 %v350, %v349
      %352 = vrot.lane.b32.xlu0 %v351, 116
      %v353 = vpop.permute.xlu0 %352
      %355 = vst.msk [vmem:[#allocation3 + $0x40] sm:$0xff] %vm266, %v353
      %v356 = vld [vmem:[%s235] sm:$0xf]
      %v357 = vld [vmem:[%s235 + $0x4] sm:$0xf]
      %v360 = vunpack.c.l.b16 %v356
      %v361 = vunpack.c.l.b16 %v357
      %v362 = vpack.c.b16 %v361, %v360
      %363 = vrot.lane.b32.xlu0 %v362, 115
      %v364 = vpop.permute.xlu0 %363
      %366 = vst.msk [vmem:[#allocation3 + $0x48] sm:$0xff] %vm266, %v364
      %v367 = vld [vmem:[%s235] sm:$0xf]
      %v368 = vld [vmem:[%s235 + $0x4] sm:$0xf]
      %v371 = vunpack.c.l.b16 %v367
      %v372 = vunpack.c.l.b16 %v368
      %v373 = vpack.c.b16 %v372, %v371
      %374 = vrot.lane.b32.xlu0 %v373, 114
      %v375 = vpop.permute.xlu0 %374
      %377 = vst.msk [vmem:[#allocation3 + $0x50] sm:$0xff] %vm266, %v375
      %v378 = vld [vmem:[%s235] sm:$0xf]
      %v379 = vld [vmem:[%s235 + $0x4] sm:$0xf]
      %v382 = vunpack.c.l.b16 %v378
      %v383 = vunpack.c.l.b16 %v379
      %v384 = vpack.c.b16 %v383, %v382
      %385 = vrot.lane.b32.xlu0 %v384, 113
      %v386 = vpop.permute.xlu0 %385
      %388 = vst.msk [vmem:[#allocation3 + $0x58] sm:$0xff] %vm266, %v386
      %v389 = vld [vmem:[%s235] sm:$0xf]
      %v390 = vld [vmem:[%s235 + $0x4] sm:$0xf]
      %v393 = vunpack.c.l.b16 %v389
      %v394 = vunpack.c.l.b16 %v390
      %v395 = vpack.c.b16 %v394, %v393
      %396 = vrot.lane.b32.xlu0 %v395, 110
      %v397 = vpop.permute.xlu0 %396
      %399 = vst.msk [vmem:[#allocation3 + $0x60] sm:$0xff] %vm266, %v397
      %v400 = vld [vmem:[%s235] sm:$0xf]
      %v401 = vld [vmem:[%s235 + $0x4] sm:$0xf]
      %v404 = vunpack.c.l.b16 %v400
      %v405 = vunpack.c.l.b16 %v401
      %v406 = vpack.c.b16 %v405, %v404
      %407 = vrot.lane.b32.xlu0 %v406, 109
      %v408 = vpop.permute.xlu0 %407
      %410 = vst.msk [vmem:[#allocation3 + $0x68] sm:$0xff] %vm266, %v408
      %v411 = vld [vmem:[%s235] sm:$0xf]
      %v412 = vld [vmem:[%s235 + $0x4] sm:$0xf]
      %v415 = vunpack.c.l.b16 %v411
      %v416 = vunpack.c.l.b16 %v412
      %v417 = vpack.c.b16 %v416, %v415
      %418 = vrot.lane.b32.xlu0 %v417, 108
      %v419 = vpop.permute.xlu0 %418
      %421 = vst.msk [vmem:[#allocation3 + $0x70] sm:$0xff] %vm266, %v419
      %v422 = vld [vmem:[%s235] sm:$0xf]
      %v423 = vld [vmem:[%s235 + $0x4] sm:$0xf]
      %v426 = vunpack.c.l.b16 %v422
      %v427 = vunpack.c.l.b16 %v423
      %v428 = vpack.c.b16 %v427, %v426
      %429 = vrot.lane.b32.xlu0 %v428, 107
      %v430 = vpop.permute.xlu0 %429
      %432 = vst.msk [vmem:[#allocation3 + $0x78] sm:$0xff] %vm266, %v430
      %v433 = vld [vmem:[#allocation2] sm:$0xff]
      %v434 = vld [vmem:[#allocation2 + $0x8] sm:$0xff]
      %v435 = vld [vmem:[#allocation2 + $0x10] sm:$0xff]
      %v436 = vld [vmem:[#allocation2 + $0x18] sm:$0xff]
      %s437 = smul.u32 %s22, 8
      %s438 = smul.addr %s437, 4
      %s439 = scalar_lea.vmem %s1, %s438
      %v440 = vld [vmem:[%s439] sm:$0xff]
      %v441 = vld [vmem:[%s439 + $0x8] sm:$0xff]
      %v442 = vld [vmem:[%s439 + $0x10] sm:$0xff]
      %v443 = vld [vmem:[%s439 + $0x18] sm:$0xff]
      %v444 = vld [vmem:[#allocation3] sm:$0xff]
      %v445 = vld [vmem:[#allocation3 + $0x8] sm:$0xff]
      %v446 = vld [vmem:[#allocation3 + $0x10] sm:$0xff]
      %v447 = vld [vmem:[#allocation3 + $0x18] sm:$0xff]
      %v448 = vld [vmem:[#allocation3 + $0x20] sm:$0xff]
      %v449 = vld [vmem:[#allocation3 + $0x28] sm:$0xff]
      %v450 = vld [vmem:[#allocation3 + $0x30] sm:$0xff]
      %v451 = vld [vmem:[#allocation3 + $0x38] sm:$0xff]
      %v452 = vld [vmem:[#allocation3 + $0x40] sm:$0xff]
      %v453 = vld [vmem:[#allocation3 + $0x48] sm:$0xff]
      %v454 = vld [vmem:[#allocation3 + $0x50] sm:$0xff]
      %v455 = vld [vmem:[#allocation3 + $0x58] sm:$0xff]
      %v456 = vld [vmem:[#allocation3 + $0x60] sm:$0xff]
      %v457 = vld [vmem:[#allocation3 + $0x68] sm:$0xff]
      %v458 = vld [vmem:[#allocation3 + $0x70] sm:$0xff]
      %v459 = vld [vmem:[#allocation3 + $0x78] sm:$0xff]
      %v464 = vunpack.c.l.b16 %v440
      %v465 = vunpack.c.h.b16 %v440
      %v466 = vunpack.c.l.b16 %v441
      %v467 = vunpack.c.h.b16 %v441
      %v468 = vunpack.c.l.b16 %v442
      %v469 = vunpack.c.h.b16 %v442
      %v470 = vunpack.c.l.b16 %v443
      %v471 = vunpack.c.h.b16 %v443
      %v472 = vpack.c.b16 %v466, %v464
      %v473 = vpack.c.b16 %v467, %v465
      %v474 = vpack.c.b16 %v470, %v468
      %v475 = vpack.c.b16 %v471, %v469
      %480 = vmatprep.subr.bf16.mxu0 0
      %481 = vmatpush1.bf16.msra.mxu0 %v444
      %482 = vmatprep.subr.bf16.mxu0 0
      %483 = vmatpush1.bf16.msra.mxu0 %v445
      %484 = vmatprep.subr.bf16.mxu0 0
      %485 = vmatpush1.bf16.msra.mxu0 %v446
      %486 = vmatprep.subr.bf16.mxu0 0
      %487 = vmatpush1.bf16.msra.mxu0 %v447
      %488 = vmatprep.subr.bf16.mxu0 0
      %489 = vmatpush1.bf16.msra.mxu0 %v448
      %490 = vmatprep.subr.bf16.mxu0 0
      %491 = vmatpush1.bf16.msra.mxu0 %v449
      %492 = vmatprep.subr.bf16.mxu0 0
      %493 = vmatpush1.bf16.msra.mxu0 %v450
      %494 = vmatprep.subr.bf16.mxu0 0
      %495 = vmatpush1.bf16.msra.mxu0 %v451
      %496 = vmatprep.subr.bf16.mxu0 0
      %497 = vmatpush1.bf16.msra.mxu0 %v452
      %498 = vmatprep.subr.bf16.mxu0 0
      %499 = vmatpush1.bf16.msra.mxu0 %v453
      %500 = vmatprep.subr.bf16.mxu0 0
      %501 = vmatpush1.bf16.msra.mxu0 %v454
      %502 = vmatprep.subr.bf16.mxu0 0
      %503 = vmatpush1.bf16.msra.mxu0 %v455
      %504 = vmatprep.subr.bf16.mxu0 0
      %505 = vmatpush1.bf16.msra.mxu0 %v456
      %506 = vmatprep.subr.bf16.mxu0 0
      %507 = vmatpush1.bf16.msra.mxu0 %v457
      %508 = vmatprep.subr.bf16.mxu0 0
      %509 = vmatpush1.bf16.msra.mxu0 %v458
      %510 = vmatprep.subr.bf16.mxu0 0
      %511 = vmatpush1.bf16.msra.mxu0 %v459
      %512 = vmatprep.mubr.bf16.mxu0 %v473
      %513 = vmatmul.mubr.bf16.gmra.mrb[0].mxu0 %v472
      %v514 = vpop.f32.mrb[0].mxu0
      %v515 = vadd.f32 0.0, %v514
      %v516 = vpop.f32.mrb[0].mxu0
      %v517 = vpop.f32.mrb[0].mxu0
      %v518 = vadd.f32 0.0, %v517
      %v519 = vpop.f32.mrb[0].mxu0
      %520 = vmatprep.mubr.bf16.mxu0 %v475
      %521 = vmatmul.mubr.bf16.gmra.mrb[0].mxu0 %v474
      %v522 = vpop.f32.mrb[0].mxu0
      %v523 = vadd.f32 0.0, %v522
      %v524 = vpop.f32.mrb[0].mxu0
      %v525 = vpop.f32.mrb[0].mxu0
      %v526 = vadd.f32 0.0, %v525
      %v527 = vpop.f32.mrb[0].mxu0
      %528 = vdwg.mxu0
      %v529 = vadd.f32 %v433, %v515
      %v530 = vadd.f32 %v434, %v518
      %v531 = vadd.f32 %v435, %v523
      %v532 = vadd.f32 %v436, %v526
      %533 = vst.msk [vmem:[#allocation2] sm:$0xff] %vm266, %v529
      %534 = vst.msk [vmem:[#allocation2 + $0x8] sm:$0xff] %vm266, %v530
      %535 = vst.msk [vmem:[#allocation2 + $0x10] sm:$0xff] %vm266, %v531
      %536 = vst.msk [vmem:[#allocation2 + $0x18] sm:$0xff] %vm266, %v532
      %p537 = scmp.eq.s32.totalorder %s22, 2
      // Predicated region
      $region41: #{patch_discriminator_forward.9} parent=35 // pred_check
        %p538 = pneg %p537
      $region42: #{patch_discriminator_forward.9} parent=35 // pred_check_branch
        %540 = sbr.rel (%p538) target = $region44
      $region43: #{patch_discriminator_forward.9} parent=35 // pred_region
        %v541 = vld [vmem:[#allocation2] sm:$0xff]
        %v542 = vld [vmem:[#allocation2 + $0x8] sm:$0xff]
        %v543 = vld [vmem:[#allocation2 + $0x10] sm:$0xff]
        %v544 = vld [vmem:[#allocation2 + $0x18] sm:$0xff]
        %v545 = vld [vmem:[%s2] sm:$0xff]
        %v546 = vld [vmem:[%s2 + $0x8] sm:$0xff]
        %v547 = vld [vmem:[%s2 + $0x10] sm:$0xff]
        %v548 = vld [vmem:[%s2 + $0x18] sm:$0xff]
        %550 = vset.pattern.permute.xlu0 0
        %551 = vperm.xlu0 %550, %v545
        %v552 = vpop.permute.xlu0 %551
        %555 = vset.pattern.permute.xlu0 0
        %556 = vperm.xlu0 %555, %v546
        %v557 = vpop.permute.xlu0 %556
        %560 = vset.pattern.permute.xlu0 0
        %561 = vperm.xlu0 %560, %v547
        %v562 = vpop.permute.xlu0 %561
        %565 = vset.pattern.permute.xlu0 0
        %566 = vperm.xlu0 %565, %v548
        %v567 = vpop.permute.xlu0 %566
        %v569 = vadd.f32 %v541, %v552
        %v570 = vadd.f32 %v542, %v557
        %v571 = vadd.f32 %v543, %v562
        %v572 = vadd.f32 %v544, %v567
        %v573 = vld [vmem:[%s3] sm:$0x1]
        %v575 = vlaneseq
        %v576 = vshrl.u32 %v575, 7
        %v577 = vsub.s32 0, %v576
        %v578 = vrot.slane %v573, %v577
        %v580 = vmul.f32 %v569, %v578
        %v581 = vmul.f32 %v570, %v578
        %v582 = vmul.f32 %v571, %v578
        %v583 = vmul.f32 %v572, %v578
        %v584 = vpack.c.bf16 %v581, %v580
        %v585 = vpack.c.bf16 %v583, %v582
        %v588 = vunpack.c.l.b16 %v584
        %v589 = vunpack.c.h.b16 %v584
        %v590 = vunpack.c.l.b16 %v585
        %v591 = vunpack.c.h.b16 %v585
        %v592 = vpack.c.b16 %v588, %v588
        %v593 = vpack.c.b16 %v589, %v589
        %v594 = vpack.c.b16 %v590, %v590
        %v595 = vpack.c.b16 %v591, %v591
        %vm600 = vcmask 142336
        %601 = vst.msk [vmem:[%s245] sm:$0xf] %vm600, %v592
        %602 = vst.msk [vmem:[%s245 + $0x4] sm:$0xf] %vm600, %v593
        %603 = vst.msk [vmem:[%s245 + $0x8] sm:$0xf] %vm600, %v594
        %604 = vst.msk [vmem:[%s245 + $0xc] sm:$0xf] %vm600, %v595
      $region44: #{patch_discriminator_forward.9} parent=35 // pred_fallthru
        _
      %s605 = smul.u32 %s20, 2
      %s606 = sadd.s32 %s605, %s21
      %p607 = scmp.lt.s32.totalorder %s606, 3
      %s608 = scalar_select %p607, %s606, 3
      %s609 = smul.addr %s608, 4
      %s610 = smul.addr %s609, 4
      %s611 = scalar_lea.vmem %s4, %s610
      // Predicated region
      $region45: #{patch_discriminator_forward.9} parent=35 // pred_check
        %p612 = pneg %p151
      $region46: #{patch_discriminator_forward.9} parent=35 // pred_check_branch
        %614 = sbr.rel (%p612) target = $region48
      $region47: #{patch_discriminator_forward.9} parent=35 // pred_region
        %s615 = smul.u32 %s20, 2
        %s616 = sadd.s32 %s615, %s21
      $region48: #{patch_discriminator_forward.9} parent=35 // pred_fallthru
        _
    $region36: #{patch_discriminator_forward.9} parent=5 // pred_fallthru
      _
    %p617 = scmp.le.s32.totalorder 2, %s10
    // Predicated region
    $region49: #{patch_discriminator_forward.9} parent=5 // pred_check
      %p618 = pneg %p617
    $region50: #{patch_discriminator_forward.9} parent=5 // pred_check_branch
      %620 = sbr.rel (%p618) target = $region52
    $region51: #{patch_discriminator_forward.9} parent=5 // pred_region
      %s621 = ssub.s32 %s10, 2
      // Predicated region
      $region53: #{patch_discriminator_forward.9} parent=51 // pred_check
        %p622 = pneg %p157
      $region54: #{patch_discriminator_forward.9} parent=51 // pred_check_branch
        %624 = sbr.rel (%p622) target = $region56
      $region55: #{patch_discriminator_forward.9} parent=51 // pred_region
        %s625 = smul.u32 %s23, 2
        %s626 = sadd.s32 %s625, %s24
        %p627 = scmp.lt.s32.totalorder %s626, 3
        %s628 = scalar_select %p627, %s626, 3
        %s629 = smul.addr %s628, 4
        %s630 = smul.addr %s629, 4
        %s631 = scalar_lea.vmem %s4, %s630
      $region56: #{patch_discriminator_forward.9} parent=51 // pred_fallthru
        _
    $region52: #{patch_discriminator_forward.9} parent=5 // pred_fallthru
      _
  $region6: #{patch_discriminator_forward.9} parent=0 // loop_footer
    %s14 = sadd.s32 1, %s10
  $region7: #{patch_discriminator_forward.9} parent=0 // loop_footer_branch
    %9 = sbr.rel target = $region3
  $region8: #{patch_discriminator_forward.9} parent=0 // loop_exit
    _

// kernel: patch_discriminator_forward.11
$region0: #{patch_discriminator_forward.11}
  #allocation0 [shape = 'u32[]', space=smem, size = 0x4, offset = 0x4, fixed_abs, tag = 'smem constant byte address 0x4 - core index']
  #allocation1 [shape = 'u32[144,128]{1,0:T(1,128)}', space=vmem, size = 0x12000, scoped, tag = 'internal scratch']
  #allocation2 [shape = 'f32[1,10]{1,0:T(1,128)}', space=vmem, size = 0x200, scoped, tag = 'scratch operand']
  #allocation3 [shape = 'f32[1,1]{1,0:T(1,128)S(1)}', space=vmem, size = 0x200, scoped, tag = 'scoped memory for patch_discriminator_forward.11']
  %s0 = inlined_call_operand.vmem [shape: bf16[8,1,32,28], index: 0, kind: input, shape index: {}]
  %s1 = inlined_call_operand.vmem [shape: bf16[3,16,32,1], index: 1, kind: input, shape index: {}]
  %s2 = inlined_call_operand.<no memory space> [shape: f32[1,1], index: 2, kind: input, shape index: {}]
  %s3 = inlined_call_operand.vmem [shape: f32[1,10], index: 3, kind: input, shape index: {}]
  %s4 = inlined_call_operand.vmem [shape: f32[4,1,10], index: 4, kind: output, shape index: {}]
  %s5 = sld [smem:[#allocation0]]
  $region57: #{patch_discriminator_forward.11} parent=0
    _
  %s7 = ssub.s32 1, %s5
  %s8 = scalar_select 0, %s7, %s5
  %v9 = vstv %s2
  %10 = vst [vmem:[#allocation3] sm:$0x1] %v9
  loop: start=0, step=1, limit=14
  $region2: #{patch_discriminator_forward.11} parent=0 // loop_pre_header
    _
  $region3: #{patch_discriminator_forward.11} parent=0 // loop_header
    %s12 = sphi 0, %s16
    %p13 = scmp.ge.s32.totalorder %s12, 14
    %s19 = sphi 0, %s38
    %s20 = sphi 0, %s34
    %s21 = sphi 0, %s30
    %s22 = sphi 0, %s19
    %s23 = sphi 0, %s20
    %s24 = sphi 0, %s21
    %s25 = sphi 0, %s22
    %s26 = sphi 0, %s23
    %s27 = sphi 0, %s24
    %s47 = sphi 0, %s49
    %s50 = sphi 0, %s47
    %s51 = sphi 0, %s50
    %s67 = sphi 0, %s51
    %s71 = sphi 0, %s71
    %s73 = sphi 0, %s71
    %s74 = sphi 0, %s73
    %s88 = sphi 0, %s74
    %s92 = sphi 0, %s92
    %s94 = sphi 0, %s92
    %s95 = sphi 0, %s94
    %s109 = sphi 0, %s95
    %s113 = sphi 0, %s113
    %s115 = sphi 0, %s113
    %s116 = sphi 0, %s115
    %s130 = sphi 0, %s116
    %s140 = sphi 0, %s142
    %s143 = sphi 0, %s140
    %s144 = sphi 0, %s143
    %s160 = sphi 0, %s144
  $region4: #{patch_discriminator_forward.11} parent=0 // loop_header_branch
    %15 = sbr.rel (%p13) target = $region8
  $region5: #{patch_discriminator_forward.11} parent=0 // loop_body
    %s17 = ssub.s32 %s12, 1
    %s18 = ssub.s32 %s12, 2
    %s28 = sadd.s32 1, %s21
    %p29 = scmp.ge.s32.totalorder %s28, 3
    %s30 = scalar_select %p29, 0, %s28
    %s31 = sadd.s32 1, %s20
    %s32 = scalar_select %p29, %s31, %s20
    %p33 = scmp.ge.s32.totalorder %s32, 2
    %s34 = scalar_select %p33, 0, %s32
    %s35 = sadd.s32 1, %s19
    %s36 = scalar_select %p33, %s35, %s19
    %p37 = scmp.ge.s32.totalorder %s36, 2
    %s38 = scalar_select %p37, 0, %s36
    %s39 = smul.u32 %s19, 4
    %s40 = sadd.s32 %s39, %s20
    %s41 = sadd.s32 %s40, %s21
    %s42 = smul.u32 %s38, 4
    %s43 = sadd.s32 %s42, %s34
    %s44 = sadd.s32 %s43, %s30
    %s45 = ssub.s32 %s41, %s44
    %p46 = scmp.eq.s32.totalorder %s45, 0
    %s48 = sadd.s32 %s47, 1
    %s49 = scalar_select %p46, %s47, %s48
    %p52 = pneg %p46
    %p53 = scmp.eq.s32.totalorder %s12, 11
    %p54 = por %p52, %p53
    %p55 = scmp.ne.s32.totalorder %s47, %s50
    %p56 = scmp.eq.s32.totalorder %s12, 0
    %p57 = por %p55, %p56
    %p58 = scmp.ne.s32.totalorder %s47, %s50
    %p59 = scmp.eq.s32.totalorder %s17, 11
    %p60 = por %p58, %p59
    %p61 = scmp.ne.s32.totalorder %s50, %s51
    %p62 = scmp.eq.s32.totalorder %s17, 0
    %p63 = por %p61, %p62
    %p64 = scmp.ne.s32.totalorder %s50, %s51
    %p65 = scmp.eq.s32.totalorder %s18, 11
    %p66 = por %p64, %p65
    %p68 = scmp.ne.s32.totalorder %s51, %s67
    %p69 = scmp.eq.s32.totalorder %s18, 0
    %p70 = por %p68, %p69
    %s72 = sadd.s32 %s71, 1
    %p75 = scmp.eq.s32.totalorder %s12, 11
    %p76 = scmp.ne.s32.totalorder %s71, %s73
    %p77 = scmp.eq.s32.totalorder %s12, 0
    %p78 = por %p76, %p77
    %p79 = scmp.ne.s32.totalorder %s71, %s73
    %p80 = scmp.eq.s32.totalorder %s17, 11
    %p81 = por %p79, %p80
    %p82 = scmp.ne.s32.totalorder %s73, %s74
    %p83 = scmp.eq.s32.totalorder %s17, 0
    %p84 = por %p82, %p83
    %p85 = scmp.ne.s32.totalorder %s73, %s74
    %p86 = scmp.eq.s32.totalorder %s18, 11
    %p87 = por %p85, %p86
    %p89 = scmp.ne.s32.totalorder %s74, %s88
    %p90 = scmp.eq.s32.totalorder %s18, 0
    %p91 = por %p89, %p90
    %s93 = sadd.s32 %s92, 1
    %p96 = scmp.eq.s32.totalorder %s12, 11
    %p97 = scmp.ne.s32.totalorder %s92, %s94
    %p98 = scmp.eq.s32.totalorder %s12, 0
    %p99 = por %p97, %p98
    %p100 = scmp.ne.s32.totalorder %s92, %s94
    %p101 = scmp.eq.s32.totalorder %s17, 11
    %p102 = por %p100, %p101
    %p103 = scmp.ne.s32.totalorder %s94, %s95
    %p104 = scmp.eq.s32.totalorder %s17, 0
    %p105 = por %p103, %p104
    %p106 = scmp.ne.s32.totalorder %s94, %s95
    %p107 = scmp.eq.s32.totalorder %s18, 11
    %p108 = por %p106, %p107
    %p110 = scmp.ne.s32.totalorder %s95, %s109
    %p111 = scmp.eq.s32.totalorder %s18, 0
    %p112 = por %p110, %p111
    %s114 = sadd.s32 %s113, 1
    %p117 = scmp.eq.s32.totalorder %s12, 11
    %p118 = scmp.ne.s32.totalorder %s113, %s115
    %p119 = scmp.eq.s32.totalorder %s12, 0
    %p120 = por %p118, %p119
    %p121 = scmp.ne.s32.totalorder %s113, %s115
    %p122 = scmp.eq.s32.totalorder %s17, 11
    %p123 = por %p121, %p122
    %p124 = scmp.ne.s32.totalorder %s115, %s116
    %p125 = scmp.eq.s32.totalorder %s17, 0
    %p126 = por %p124, %p125
    %p127 = scmp.ne.s32.totalorder %s115, %s116
    %p128 = scmp.eq.s32.totalorder %s18, 11
    %p129 = por %p127, %p128
    %p131 = scmp.ne.s32.totalorder %s116, %s130
    %p132 = scmp.eq.s32.totalorder %s18, 0
    %p133 = por %p131, %p132
    %s134 = smul.u32 %s19, 2
    %s135 = sadd.s32 %s134, %s20
    %s136 = smul.u32 %s38, 2
    %s137 = sadd.s32 %s136, %s34
    %s138 = ssub.s32 %s135, %s137
    %p139 = scmp.eq.s32.totalorder %s138, 0
    %s141 = sadd.s32 %s140, 1
    %s142 = scalar_select %p139, %s140, %s141
    %p145 = pneg %p139
    %p146 = scmp.eq.s32.totalorder %s12, 11
    %p147 = por %p145, %p146
    %p148 = scmp.ne.s32.totalorder %s140, %s143
    %p149 = scmp.eq.s32.totalorder %s12, 0
    %p150 = por %p148, %p149
    %p151 = scmp.ne.s32.totalorder %s140, %s143
    %p152 = scmp.eq.s32.totalorder %s17, 11
    %p153 = por %p151, %p152
    %p154 = scmp.ne.s32.totalorder %s143, %s144
    %p155 = scmp.eq.s32.totalorder %s17, 0
    %p156 = por %p154, %p155
    %p157 = scmp.ne.s32.totalorder %s143, %s144
    %p158 = scmp.eq.s32.totalorder %s18, 11
    %p159 = por %p157, %p158
    %p161 = scmp.ne.s32.totalorder %s144, %s160
    %p162 = scmp.eq.s32.totalorder %s18, 0
    %p163 = por %p161, %p162
    %p164 = scmp.le.s32.totalorder 1, %s12
    %p165 = scmp.lt.s32.totalorder %s12, 13
    %p166 = pnand %p164, %p165
    %p167 = pneg %p166
    // Predicated region
    $region9: #{patch_discriminator_forward.11} parent=5 // pred_check
      _
    $region10: #{patch_discriminator_forward.11} parent=5 // pred_check_branch
      %169 = sbr.rel (%p166) target = $region12
    $region11: #{patch_discriminator_forward.11} parent=5 // pred_region
      %s170 = ssub.s32 %s12, 1
      // Predicated region
      $region13: #{patch_discriminator_forward.11} parent=11 // pred_check
        %p171 = pneg %p84
      $region14: #{patch_discriminator_forward.11} parent=11 // pred_check_branch
        %173 = sbr.rel (%p171) target = $region16
      $region15: #{patch_discriminator_forward.11} parent=11 // pred_region
        _
      $region16: #{patch_discriminator_forward.11} parent=11 // pred_fallthru
        _
      // Predicated region
      $region17: #{patch_discriminator_forward.11} parent=11 // pred_check
        %p174 = pneg %p105
      $region18: #{patch_discriminator_forward.11} parent=11 // pred_check_branch
        %176 = sbr.rel (%p174) target = $region20
      $region19: #{patch_discriminator_forward.11} parent=11 // pred_region
        _
      $region20: #{patch_discriminator_forward.11} parent=11 // pred_fallthru
        _
      // Predicated region
      $region21: #{patch_discriminator_forward.11} parent=11 // pred_check
        %p177 = pneg %p126
      $region22: #{patch_discriminator_forward.11} parent=11 // pred_check_branch
        %179 = sbr.rel (%p177) target = $region24
      $region23: #{patch_discriminator_forward.11} parent=11 // pred_region
        _
      $region24: #{patch_discriminator_forward.11} parent=11 // pred_fallthru
        _
    $region12: #{patch_discriminator_forward.11} parent=5 // pred_fallthru
      _
    %p180 = scmp.lt.s32.totalorder %s12, 12
    // Predicated region
    $region25: #{patch_discriminator_forward.11} parent=5 // pred_check
      %p181 = pneg %p180
    $region26: #{patch_discriminator_forward.11} parent=5 // pred_check_branch
      %183 = sbr.rel (%p181) target = $region28
    $region27: #{patch_discriminator_forward.11} parent=5 // pred_region
      // Predicated region
      $region29: #{patch_discriminator_forward.11} parent=27 // pred_check
        %p184 = pneg %p57
      $region30: #{patch_discriminator_forward.11} parent=27 // pred_check_branch
        %186 = sbr.rel (%p184) target = $region32
      $region31: #{patch_discriminator_forward.11} parent=27 // pred_region
        %s187 = smul.u32 %s19, 4
        %s188 = sadd.s32 %s187, %s20
        %s189 = sadd.s32 %s188, %s21
        %p190 = scmp.lt.s32.totalorder %s189, 7
        %s191 = scalar_select %p190, %s189, 7
        %s192 = smul.addr %s191, 4
        %s193 = smul.addr %s192, 4
        %s194 = scalar_lea.vmem %s0, %s193
        %s195 = smul.u32 %s19, 4
        %s196 = sadd.s32 %s195, %s20
        %s197 = sadd.s32 %s196, %s21
      $region32: #{patch_discriminator_forward.11} parent=27 // pred_fallthru
        _
    $region28: #{patch_discriminator_forward.11} parent=5 // pred_fallthru
      _
    %p198 = scmp.le.s32.totalorder 1, %s12
    %p199 = scmp.lt.s32.totalorder %s12, 13
    %p200 = pnand %p198, %p199
    %p201 = pneg %p200
    // Predicated region
    $region33: #{patch_discriminator_forward.11} parent=5 // pred_check
      _
    $region34: #{patch_discriminator_forward.11} parent=5 // pred_check_branch
      %203 = sbr.rel (%p200) target = $region36
    $region35: #{patch_discriminator_forward.11} parent=5 // pred_region
      %s204 = ssub.s32 %s12, 1
      %s205 = smul.u32 %s22, 4
      %s206 = sadd.s32 %s205, %s23
      %s207 = sadd.s32 %s206, %s24
      %p208 = scmp.lt.s32.totalorder %s207, 7
      %s209 = scalar_select %p208, %s207, 7
      %s210 = smul.addr %s209, 4
      %s211 = smul.addr %s210, 4
      %s212 = scalar_lea.vmem %s0, %s211
      %p213 = pneg %p63
      %p214 = pneg %p60
      %p215 = pneg %p84
      %p216 = pneg %p81
      %p217 = pneg %p105
      %p218 = pneg %p102
      %p219 = pneg %p126
      %p220 = pneg %p123
      %p221 = pneg %p156
      %p222 = pneg %p153
      %s223 = smul.u32 %s22, 2
      %s224 = sadd.s32 %s223, %s23
      %p225 = scmp.lt.s32.totalorder %s224, 3
      %s226 = scalar_select %p225, %s224, 3
      %s227 = scalar_lea.vmem %s4, %s226
      %s228 = smul.u32 %s22, 4
      %s229 = sadd.s32 %s228, %s23
      %s230 = sadd.s32 %s229, %s24
      %p231 = scmp.lt.s32.totalorder %s230, 7
      %s232 = scalar_select %p231, %s230, 7
      %s233 = smul.addr %s232, 4
      %s234 = smul.addr %s233, 4
      %s235 = scalar_lea.vmem %s0, %s234
      %s236 = smul.u32 %s22, 4
      %s237 = sadd.s32 %s236, %s23
      %s238 = sadd.s32 %s237, %s24
      %s239 = smul.u32 %s22, 2
      %s240 = sadd.s32 %s239, %s23
      %p241 = scmp.lt.s32.totalorder %s240, 3
      %s242 = scalar_select %p241, %s240, 3
      %s243 = scalar_lea.vmem %s4, %s242
      %s244 = smul.u32 %s22, 2
      %s245 = sadd.s32 %s244, %s23
      %p246 = scmp.eq.s32.totalorder %s24, 0
      // Predicated region
      $region37: #{patch_discriminator_forward.11} parent=35 // pred_check
        %p247 = pneg %p246
      $region38: #{patch_discriminator_forward.11} parent=35 // pred_check_branch
        %249 = sbr.rel (%p247) target = $region40
      $region39: #{patch_discriminator_forward.11} parent=35 // pred_region
        %vm250 = vcmask 73728
        %251 = vst.msk [vmem:[#allocation2] sm:$0x1] %vm250, 0.0
      $region40: #{patch_discriminator_forward.11} parent=35 // pred_fallthru
        _
      %s252 = smul.u32 %s24, 64
      %s253 = smul.addr %s252, 4
      %s254 = scalar_lea.vmem %s1, %s253
      %v255 = vld [vmem:[%s254] sm:$0xf]
      %v256 = vld [vmem:[%s254 + $0x4] sm:$0xf]
      %v257 = vld [vmem:[%s254 + $0x8] sm:$0xf]
      %v258 = vld [vmem:[%s254 + $0xc] sm:$0xf]
      %v259 = vld [vmem:[%s254 + $0x10] sm:$0xf]
      %v260 = vld [vmem:[%s254 + $0x14] sm:$0xf]
      %v261 = vld [vmem:[%s254 + $0x18] sm:$0xf]
      %v262 = vld [vmem:[%s254 + $0x1c] sm:$0xf]
      %v263 = vld [vmem:[%s254 + $0x20] sm:$0xf]
      %v264 = vld [vmem:[%s254 + $0x24] sm:$0xf]
      %v265 = vld [vmem:[%s254 + $0x28] sm:$0xf]
      %v266 = vld [vmem:[%s254 + $0x2c] sm:$0xf]
      %v267 = vld [vmem:[%s254 + $0x30] sm:$0xf]
      %v268 = vld [vmem:[%s254 + $0x34] sm:$0xf]
      %v269 = vld [vmem:[%s254 + $0x38] sm:$0xf]
      %v270 = vld [vmem:[%s254 + $0x3c] sm:$0xf]
      %v271 = vld [vmem:[%s254 + $0x40] sm:$0xf]
      %v272 = vld [vmem:[%s254 + $0x44] sm:$0xf]
      %v273 = vld [vmem:[%s254 + $0x48] sm:$0xf]
      %v274 = vld [vmem:[%s254 + $0x4c] sm:$0xf]
      %v275 = vld [vmem:[%s254 + $0x50] sm:$0xf]
      %v276 = vld [vmem:[%s254 + $0x54] sm:$0xf]
      %v277 = vld [vmem:[%s254 + $0x58] sm:$0xf]
      %v278 = vld [vmem:[%s254 + $0x5c] sm:$0xf]
      %v279 = vld [vmem:[%s254 + $0x60] sm:$0xf]
      %v280 = vld [vmem:[%s254 + $0x64] sm:$0xf]
      %v281 = vld [vmem:[%s254 + $0x68] sm:$0xf]
      %v282 = vld [vmem:[%s254 + $0x6c] sm:$0xf]
      %v283 = vld [vmem:[%s254 + $0x70] sm:$0xf]
      %v284 = vld [vmem:[%s254 + $0x74] sm:$0xf]
      %v285 = vld [vmem:[%s254 + $0x78] sm:$0xf]
      %v286 = vld [vmem:[%s254 + $0x7c] sm:$0xf]
      %v287 = vld [vmem:[%s254 + $0x80] sm:$0xf]
      %v288 = vld [vmem:[%s254 + $0x84] sm:$0xf]
      %v289 = vld [vmem:[%s254 + $0x88] sm:$0xf]
      %v290 = vld [vmem:[%s254 + $0x8c] sm:$0xf]
      %v291 = vld [vmem:[%s254 + $0x90] sm:$0xf]
      %v292 = vld [vmem:[%s254 + $0x94] sm:$0xf]
      %v293 = vld [vmem:[%s254 + $0x98] sm:$0xf]
      %v294 = vld [vmem:[%s254 + $0x9c] sm:$0xf]
      %v295 = vld [vmem:[%s254 + $0xa0] sm:$0xf]
      %v296 = vld [vmem:[%s254 + $0xa4] sm:$0xf]
      %v297 = vld [vmem:[%s254 + $0xa8] sm:$0xf]
      %v298 = vld [vmem:[%s254 + $0xac] sm:$0xf]
      %v299 = vld [vmem:[%s254 + $0xb0] sm:$0xf]
      %v300 = vld [vmem:[%s254 + $0xb4] sm:$0xf]
      %v301 = vld [vmem:[%s254 + $0xb8] sm:$0xf]
      %v302 = vld [vmem:[%s254 + $0xbc] sm:$0xf]
      %v303 = vld [vmem:[%s254 + $0xc0] sm:$0xf]
      %v304 = vld [vmem:[%s254 + $0xc4] sm:$0xf]
      %v305 = vld [vmem:[%s254 + $0xc8] sm:$0xf]
      %v306 = vld [vmem:[%s254 + $0xcc] sm:$0xf]
      %v307 = vld [vmem:[%s254 + $0xd0] sm:$0xf]
      %v308 = vld [vmem:[%s254 + $0xd4] sm:$0xf]
      %v309 = vld [vmem:[%s254 + $0xd8] sm:$0xf]
      %v310 = vld [vmem:[%s254 + $0xdc] sm:$0xf]
      %v311 = vld [vmem:[%s254 + $0xe0] sm:$0xf]
      %v312 = vld [vmem:[%s254 + $0xe4] sm:$0xf]
      %v313 = vld [vmem:[%s254 + $0xe8] sm:$0xf]
      %v314 = vld [vmem:[%s254 + $0xec] sm:$0xf]
      %v315 = vld [vmem:[%s254 + $0xf0] sm:$0xf]
      %v316 = vld [vmem:[%s254 + $0xf4] sm:$0xf]
      %v317 = vld [vmem:[%s254 + $0xf8] sm:$0xf]
      %v318 = vld [vmem:[%s254 + $0xfc] sm:$0xf]
      %v319 = vunpack.c.l.bf16 %v255
      %v320 = vunpack.c.l.bf16 %v256
      %v321 = vunpack.c.l.bf16 %v257
      %v322 = vunpack.c.l.bf16 %v258
      %v323 = vunpack.c.l.bf16 %v259
      %v324 = vunpack.c.l.bf16 %v260
      %v325 = vunpack.c.l.bf16 %v261
      %v326 = vunpack.c.l.bf16 %v262
      %v327 = vunpack.c.l.bf16 %v263
      %v328 = vunpack.c.l.bf16 %v264
      %v329 = vunpack.c.l.bf16 %v265
      %v330 = vunpack.c.l.bf16 %v266
      %v331 = vunpack.c.l.bf16 %v267
      %v332 = vunpack.c.l.bf16 %v268
      %v333 = vunpack.c.l.bf16 %v269
      %v334 = vunpack.c.l.bf16 %v270
      %v335 = vunpack.c.l.bf16 %v271
      %v336 = vunpack.c.l.bf16 %v272
      %v337 = vunpack.c.l.bf16 %v273
      %v338 = vunpack.c.l.bf16 %v274
      %v339 = vunpack.c.l.bf16 %v275
      %v340 = vunpack.c.l.bf16 %v276
      %v341 = vunpack.c.l.bf16 %v277
      %v342 = vunpack.c.l.bf16 %v278
      %v343 = vunpack.c.l.bf16 %v279
      %v344 = vunpack.c.l.bf16 %v280
      %v345 = vunpack.c.l.bf16 %v281
      %v346 = vunpack.c.l.bf16 %v282
      %v347 = vunpack.c.l.bf16 %v283
      %v348 = vunpack.c.l.bf16 %v284
      %v349 = vunpack.c.l.bf16 %v285
      %v350 = vunpack.c.l.bf16 %v286
      %v351 = vunpack.c.l.bf16 %v287
      %v352 = vunpack.c.l.bf16 %v288
      %v353 = vunpack.c.l.bf16 %v289
      %v354 = vunpack.c.l.bf16 %v290
      %v355 = vunpack.c.l.bf16 %v291
      %v356 = vunpack.c.l.bf16 %v292
      %v357 = vunpack.c.l.bf16 %v293
      %v358 = vunpack.c.l.bf16 %v294
      %v359 = vunpack.c.l.bf16 %v295
      %v360 = vunpack.c.l.bf16 %v296
      %v361 = vunpack.c.l.bf16 %v297
      %v362 = vunpack.c.l.bf16 %v298
      %v363 = vunpack.c.l.bf16 %v299
      %v364 = vunpack.c.l.bf16 %v300
      %v365 = vunpack.c.l.bf16 %v301
      %v366 = vunpack.c.l.bf16 %v302
      %v367 = vunpack.c.l.bf16 %v303
      %v368 = vunpack.c.l.bf16 %v304
      %v369 = vunpack.c.l.bf16 %v305
      %v370 = vunpack.c.l.bf16 %v306
      %v371 = vunpack.c.l.bf16 %v307
      %v372 = vunpack.c.l.bf16 %v308
      %v373 = vunpack.c.l.bf16 %v309
      %v374 = vunpack.c.l.bf16 %v310
      %v375 = vunpack.c.l.bf16 %v311
      %v376 = vunpack.c.l.bf16 %v312
      %v377 = vunpack.c.l.bf16 %v313
      %v378 = vunpack.c.l.bf16 %v314
      %v379 = vunpack.c.l.bf16 %v315
      %v380 = vunpack.c.l.bf16 %v316
      %v381 = vunpack.c.l.bf16 %v317
      %v382 = vunpack.c.l.bf16 %v318
      %v383 = vld [vmem:[%s235] sm:$0xf]
      %v384 = vld [vmem:[%s235 + $0x4] sm:$0xf]
      %v385 = vld [vmem:[%s235 + $0x8] sm:$0xf]
      %v386 = vld [vmem:[%s235 + $0xc] sm:$0xf]
      %v387 = vunpack.c.l.bf16 %v383
      %v388 = vunpack.c.l.bf16 %v384
      %v389 = vunpack.c.l.bf16 %v385
      %v390 = vunpack.c.l.bf16 %v386
      %392 = vset.pattern.permute.xlu0 0
      %393 = vperm.xlu0 %392, %v319
      %v394 = vpop.permute.xlu0 %393
      %397 = vset.pattern.permute.xlu0 0
      %398 = vperm.xlu0 %397, %v320
      %v399 = vpop.permute.xlu0 %398
      %402 = vset.pattern.permute.xlu0 0
      %403 = vperm.xlu0 %402, %v321
      %v404 = vpop.permute.xlu0 %403
      %407 = vset.pattern.permute.xlu0 0
      %408 = vperm.xlu0 %407, %v322
      %v409 = vpop.permute.xlu0 %408
      %v411 = vmul.f32 %v387, %v394
      %v412 = vmul.f32 %v388, %v399
      %v413 = vmul.f32 %v389, %v404
      %v414 = vmul.f32 %v390, %v409
      %vm415 = vcmask 80896
      %v416 = vsel %vm415, %v411, 0.0
      %v417 = vsel %vm415, %v412, 0.0
      %v418 = vadd.f32 %v416, %v417
      %v419 = vsel %vm415, %v413, 0.0
      %v420 = vadd.f32 %v418, %v419
      %v421 = vsel %vm415, %v414, 0.0
      %v422 = vadd.f32 %v420, %v421
      %v423 = vrot.slane %v422, 4
      %v424 = vadd.f32 %v422, %v423
      %v425 = vrot.slane %v424, 2
      %v426 = vadd.f32 %v424, %v425
      %v427 = vrot.slane %v426, 1
      %v428 = vadd.f32 %v426, %v427
      %v429 = vadd.f32 %v428, 0.0
      %431 = vset.pattern.permute.xlu0 0
      %432 = vperm.xlu0 %431, %v323
      %v433 = vpop.permute.xlu0 %432
      %436 = vset.pattern.permute.xlu0 0
      %437 = vperm.xlu0 %436, %v324
      %v438 = vpop.permute.xlu0 %437
      %441 = vset.pattern.permute.xlu0 0
      %442 = vperm.xlu0 %441, %v325
      %v443 = vpop.permute.xlu0 %442
      %446 = vset.pattern.permute.xlu0 0
      %447 = vperm.xlu0 %446, %v326
      %v448 = vpop.permute.xlu0 %447
      %v450 = vmul.f32 %v387, %v433
      %v451 = vmul.f32 %v388, %v438
      %v452 = vmul.f32 %v389, %v443
      %v453 = vmul.f32 %v390, %v448
      %vm454 = vcmask 89096
      %v455 = vsel %vm454, %v450, 0.0
      %v456 = vsel %vm454, %v451, 0.0
      %v457 = vadd.f32 %v455, %v456
      %v458 = vsel %vm454, %v452, 0.0
      %v459 = vadd.f32 %v457, %v458
      %v460 = vsel %vm454, %v453, 0.0
      %v461 = vadd.f32 %v459, %v460
      %v462 = vrot.slane %v461, 4
      %v463 = vadd.f32 %v461, %v462
      %v464 = vrot.slane %v463, 2
      %v465 = vadd.f32 %v463, %v464
      %v466 = vrot.slane %v465, 1
      %v467 = vadd.f32 %v465, %v466
      %469 = vrot.lane.b32.xlu0 %v467, 127
      %v470 = vpop.permute.xlu0 %469
      %v472 = vadd.f32 %v429, %v470
      %474 = vset.pattern.permute.xlu0 0
      %475 = vperm.xlu0 %474, %v327
      %v476 = vpop.permute.xlu0 %475
      %479 = vset.pattern.permute.xlu0 0
      %480 = vperm.xlu0 %479, %v328
      %v481 = vpop.permute.xlu0 %480
      %484 = vset.pattern.permute.xlu0 0
      %485 = vperm.xlu0 %484, %v329
      %v486 = vpop.permute.xlu0 %485
      %489 = vset.pattern.permute.xlu0 0
      %490 = vperm.xlu0 %489, %v330
      %v491 = vpop.permute.xlu0 %490
      %v493 = vmul.f32 %v387, %v476
      %v494 = vmul.f32 %v388, %v481
      %v495 = vmul.f32 %v389, %v486
      %v496 = vmul.f32 %v390, %v491
      %vm497 = vcmask 97296
      %v498 = vsel %vm497, %v493, 0.0
      %v499 = vsel %vm497, %v494, 0.0
      %v500 = vadd.f32 %v498, %v499
      %v501 = vsel %vm497, %v495, 0.0
      %v502 = vadd.f32 %v500, %v501
      %v503 = vsel %vm497, %v496, 0.0
      %v504 = vadd.f32 %v502, %v503
      %v505 = vrot.slane %v504, 4
      %v506 = vadd.f32 %v504, %v505
      %v507 = vrot.slane %v506, 2
      %v508 = vadd.f32 %v506, %v507
      %v509 = vrot.slane %v508, 1
      %v510 = vadd.f32 %v508, %v509
      %512 = vrot.lane.b32.xlu0 %v510, 126
      %v513 = vpop.permute.xlu0 %512
      %v515 = vadd.f32 %v472, %v513
      %517 = vset.pattern.permute.xlu0 0
      %518 = vperm.xlu0 %517, %v331
      %v519 = vpop.permute.xlu0 %518
      %522 = vset.pattern.permute.xlu0 0
      %523 = vperm.xlu0 %522, %v332
      %v524 = vpop.permute.xlu0 %523
      %527 = vset.pattern.permute.xlu0 0
      %528 = vperm.xlu0 %527, %v333
      %v529 = vpop.permute.xlu0 %528
      %532 = vset.pattern.permute.xlu0 0
      %533 = vperm.xlu0 %532, %v334
      %v534 = vpop.permute.xlu0 %533
      %v536 = vmul.f32 %v387, %v519
      %v537 = vmul.f32 %v388, %v524
      %v538 = vmul.f32 %v389, %v529
      %v539 = vmul.f32 %v390, %v534
      %vm540 = vcmask 105496
      %v541 = vsel %vm540, %v536, 0.0
      %v542 = vsel %vm540, %v537, 0.0
      %v543 = vadd.f32 %v541, %v542
      %v544 = vsel %vm540, %v538, 0.0
      %v545 = vadd.f32 %v543, %v544
      %v546 = vsel %vm540, %v539, 0.0
      %v547 = vadd.f32 %v545, %v546
      %v548 = vrot.slane %v547, 4
      %v549 = vadd.f32 %v547, %v548
      %v550 = vrot.slane %v549, 2
      %v551 = vadd.f32 %v549, %v550
      %v552 = vrot.slane %v551, 1
      %v553 = vadd.f32 %v551, %v552
      %555 = vrot.lane.b32.xlu0 %v553, 125
      %v556 = vpop.permute.xlu0 %555
      %v558 = vadd.f32 %v515, %v556
      %560 = vset.pattern.permute.xlu0 0
      %561 = vperm.xlu0 %560, %v335
      %v562 = vpop.permute.xlu0 %561
      %565 = vset.pattern.permute.xlu0 0
      %566 = vperm.xlu0 %565, %v336
      %v567 = vpop.permute.xlu0 %566
      %570 = vset.pattern.permute.xlu0 0
      %571 = vperm.xlu0 %570, %v337
      %v572 = vpop.permute.xlu0 %571
      %575 = vset.pattern.permute.xlu0 0
      %576 = vperm.xlu0 %575, %v338
      %v577 = vpop.permute.xlu0 %576
      %v579 = vmul.f32 %v387, %v562
      %v580 = vmul.f32 %v388, %v567
      %v581 = vmul.f32 %v389, %v572
      %v582 = vmul.f32 %v390, %v577
      %vm583 = vcmask 121896
      %v584 = vsel %vm583, %v579, 0.0
      %v585 = vsel %vm583, %v580, 0.0
      %v586 = vadd.f32 %v584, %v585
      %v587 = vsel %vm583, %v581, 0.0
      %v588 = vadd.f32 %v586, %v587
      %v589 = vsel %vm583, %v582, 0.0
      %v590 = vadd.f32 %v588, %v589
      %v591 = vrot.slane %v590, 4
      %v592 = vadd.f32 %v590, %v591
      %v593 = vrot.slane %v592, 2
      %v594 = vadd.f32 %v592, %v593
      %v595 = vrot.slane %v594, 1
      %v596 = vadd.f32 %v594, %v595
      %598 = vrot.lane.b32.xlu0 %v596, 123
      %v599 = vpop.permute.xlu0 %598
      %v601 = vadd.f32 %v558, %v599
      %603 = vset.pattern.permute.xlu0 0
      %604 = vperm.xlu0 %603, %v339
      %v605 = vpop.permute.xlu0 %604
      %608 = vset.pattern.permute.xlu0 0
      %609 = vperm.xlu0 %608, %v340
      %v610 = vpop.permute.xlu0 %609
      %613 = vset.pattern.permute.xlu0 0
      %614 = vperm.xlu0 %613, %v341
      %v615 = vpop.permute.xlu0 %614
      %618 = vset.pattern.permute.xlu0 0
      %619 = vperm.xlu0 %618, %v342
      %v620 = vpop.permute.xlu0 %619
      %v622 = vmul.f32 %v387, %v605
      %v623 = vmul.f32 %v388, %v610
      %v624 = vmul.f32 %v389, %v615
      %v625 = vmul.f32 %v390, %v620
      %vm626 = vcmask 130096
      %v627 = vsel %vm626, %v622, 0.0
      %v628 = vsel %vm626, %v623, 0.0
      %v629 = vadd.f32 %v627, %v628
      %v630 = vsel %vm626, %v624, 0.0
      %v631 = vadd.f32 %v629, %v630
      %v632 = vsel %vm626, %v625, 0.0
      %v633 = vadd.f32 %v631, %v632
      %v634 = vrot.slane %v633, 4
      %v635 = vadd.f32 %v633, %v634
      %v636 = vrot.slane %v635, 2
      %v637 = vadd.f32 %v635, %v636
      %v638 = vrot.slane %v637, 1
      %v639 = vadd.f32 %v637, %v638
      %641 = vrot.lane.b32.xlu0 %v639, 122
      %v642 = vpop.permute.xlu0 %641
      %v644 = vadd.f32 %v601, %v642
      %646 = vset.pattern.permute.xlu0 0
      %647 = vperm.xlu0 %646, %v343
      %v648 = vpop.permute.xlu0 %647
      %651 = vset.pattern.permute.xlu0 0
      %652 = vperm.xlu0 %651, %v344
      %v653 = vpop.permute.xlu0 %652
      %656 = vset.pattern.permute.xlu0 0
      %657 = vperm.xlu0 %656, %v345
      %v658 = vpop.permute.xlu0 %657
      %661 = vset.pattern.permute.xlu0 0
      %662 = vperm.xlu0 %661, %v346
      %v663 = vpop.permute.xlu0 %662
      %v665 = vmul.f32 %v387, %v648
      %v666 = vmul.f32 %v388, %v653
      %v667 = vmul.f32 %v389, %v658
      %v668 = vmul.f32 %v390, %v663
      %vm669 = vcmask 138296
      %v670 = vsel %vm669, %v665, 0.0
      %v671 = vsel %vm669, %v666, 0.0
      %v672 = vadd.f32 %v670, %v671
      %v673 = vsel %vm669, %v667, 0.0
      %v674 = vadd.f32 %v672, %v673
      %v675 = vsel %vm669, %v668, 0.0
      %v676 = vadd.f32 %v674, %v675
      %v677 = vrot.slane %v676, 4
      %v678 = vadd.f32 %v676, %v677
      %v679 = vrot.slane %v678, 2
      %v680 = vadd.f32 %v678, %v679
      %v681 = vrot.slane %v680, 1
      %v682 = vadd.f32 %v680, %v681
      %684 = vrot.lane.b32.xlu0 %v682, 121
      %v685 = vpop.permute.xlu0 %684
      %v687 = vadd.f32 %v644, %v685
      %689 = vset.pattern.permute.xlu0 0
      %690 = vperm.xlu0 %689, %v347
      %v691 = vpop.permute.xlu0 %690
      %694 = vset.pattern.permute.xlu0 0
      %695 = vperm.xlu0 %694, %v348
      %v696 = vpop.permute.xlu0 %695
      %699 = vset.pattern.permute.xlu0 0
      %700 = vperm.xlu0 %699, %v349
      %v701 = vpop.permute.xlu0 %700
      %704 = vset.pattern.permute.xlu0 0
      %705 = vperm.xlu0 %704, %v350
      %v706 = vpop.permute.xlu0 %705
      %v708 = vmul.f32 %v387, %v691
      %v709 = vmul.f32 %v388, %v696
      %v710 = vmul.f32 %v389, %v701
      %v711 = vmul.f32 %v390, %v706
      %vm712 = vcmask 146496
      %v713 = vsel %vm712, %v708, 0.0
      %v714 = vsel %vm712, %v709, 0.0
      %v715 = vadd.f32 %v713, %v714
      %v716 = vsel %vm712, %v710, 0.0
      %v717 = vadd.f32 %v715, %v716
      %v718 = vsel %vm712, %v711, 0.0
      %v719 = vadd.f32 %v717, %v718
      %v720 = vrot.slane %v719, 4
      %v721 = vadd.f32 %v719, %v720
      %v722 = vrot.slane %v721, 2
      %v723 = vadd.f32 %v721, %v722
      %v724 = vrot.slane %v723, 1
      %v725 = vadd.f32 %v723, %v724
      %727 = vrot.lane.b32.xlu0 %v725, 120
      %v728 = vpop.permute.xlu0 %727
      %v730 = vadd.f32 %v687, %v728
      %732 = vset.pattern.permute.xlu0 0
      %733 = vperm.xlu0 %732, %v351
      %v734 = vpop.permute.xlu0 %733
      %737 = vset.pattern.permute.xlu0 0
      %738 = vperm.xlu0 %737, %v352
      %v739 = vpop.permute.xlu0 %738
      %742 = vset.pattern.permute.xlu0 0
      %743 = vperm.xlu0 %742, %v353
      %v744 = vpop.permute.xlu0 %743
      %747 = vset.pattern.permute.xlu0 0
      %748 = vperm.xlu0 %747, %v354
      %v749 = vpop.permute.xlu0 %748
      %v751 = vmul.f32 %v387, %v734
      %v752 = vmul.f32 %v388, %v739
      %v753 = vmul.f32 %v389, %v744
      %v754 = vmul.f32 %v390, %v749
      %vm755 = vcmask 162896
      %v756 = vsel %vm755, %v751, 0.0
      %v757 = vsel %vm755, %v752, 0.0
      %v758 = vadd.f32 %v756, %v757
      %v759 = vsel %vm755, %v753, 0.0
      %v760 = vadd.f32 %v758, %v759
      %v761 = vsel %vm755, %v754, 0.0
      %v762 = vadd.f32 %v760, %v761
      %v763 = vrot.slane %v762, 4
      %v764 = vadd.f32 %v762, %v763
      %v765 = vrot.slane %v764, 2
      %v766 = vadd.f32 %v764, %v765
      %v767 = vrot.slane %v766, 1
      %v768 = vadd.f32 %v766, %v767
      %770 = vrot.lane.b32.xlu0 %v768, 118
      %v771 = vpop.permute.xlu0 %770
      %v773 = vadd.f32 %v730, %v771
      %775 = vset.pattern.permute.xlu0 0
      %776 = vperm.xlu0 %775, %v355
      %v777 = vpop.permute.xlu0 %776
      %780 = vset.pattern.permute.xlu0 0
      %781 = vperm.xlu0 %780, %v356
      %v782 = vpop.permute.xlu0 %781
      %785 = vset.pattern.permute.xlu0 0
      %786 = vperm.xlu0 %785, %v357
      %v787 = vpop.permute.xlu0 %786
      %790 = vset.pattern.permute.xlu0 0
      %791 = vperm.xlu0 %790, %v358
      %v792 = vpop.permute.xlu0 %791
      %v794 = vmul.f32 %v387, %v777
      %v795 = vmul.f32 %v388, %v782
      %v796 = vmul.f32 %v389, %v787
      %v797 = vmul.f32 %v390, %v792
      %vm798 = vcmask 171096
      %v799 = vsel %vm798, %v794, 0.0
      %v800 = vsel %vm798, %v795, 0.0
      %v801 = vadd.f32 %v799, %v800
      %v802 = vsel %vm798, %v796, 0.0
      %v803 = vadd.f32 %v801, %v802
      %v804 = vsel %vm798, %v797, 0.0
      %v805 = vadd.f32 %v803, %v804
      %v806 = vrot.slane %v805, 4
      %v807 = vadd.f32 %v805, %v806
      %v808 = vrot.slane %v807, 2
      %v809 = vadd.f32 %v807, %v808
      %v810 = vrot.slane %v809, 1
      %v811 = vadd.f32 %v809, %v810
      %813 = vrot.lane.b32.xlu0 %v811, 117
      %v814 = vpop.permute.xlu0 %813
      %v816 = vadd.f32 %v773, %v814
      %818 = vset.pattern.permute.xlu0 0
      %819 = vperm.xlu0 %818, %v359
      %v820 = vpop.permute.xlu0 %819
      %823 = vset.pattern.permute.xlu0 0
      %824 = vperm.xlu0 %823, %v360
      %v825 = vpop.permute.xlu0 %824
      %828 = vset.pattern.permute.xlu0 0
      %829 = vperm.xlu0 %828, %v361
      %v830 = vpop.permute.xlu0 %829
      %833 = vset.pattern.permute.xlu0 0
      %834 = vperm.xlu0 %833, %v362
      %v835 = vpop.permute.xlu0 %834
      %v837 = vmul.f32 %v387, %v820
      %v838 = vmul.f32 %v388, %v825
      %v839 = vmul.f32 %v389, %v830
      %v840 = vmul.f32 %v390, %v835
      %vm841 = vcmask 179296
      %v842 = vsel %vm841, %v837, 0.0
      %v843 = vsel %vm841, %v838, 0.0
      %v844 = vadd.f32 %v842, %v843
      %v845 = vsel %vm841, %v839, 0.0
      %v846 = vadd.f32 %v844, %v845
      %v847 = vsel %vm841, %v840, 0.0
      %v848 = vadd.f32 %v846, %v847
      %v849 = vrot.slane %v848, 4
      %v850 = vadd.f32 %v848, %v849
      %v851 = vrot.slane %v850, 2
      %v852 = vadd.f32 %v850, %v851
      %v853 = vrot.slane %v852, 1
      %v854 = vadd.f32 %v852, %v853
      %856 = vrot.lane.b32.xlu0 %v854, 116
      %v857 = vpop.permute.xlu0 %856
      %v859 = vadd.f32 %v816, %v857
      %861 = vset.pattern.permute.xlu0 0
      %862 = vperm.xlu0 %861, %v363
      %v863 = vpop.permute.xlu0 %862
      %866 = vset.pattern.permute.xlu0 0
      %867 = vperm.xlu0 %866, %v364
      %v868 = vpop.permute.xlu0 %867
      %871 = vset.pattern.permute.xlu0 0
      %872 = vperm.xlu0 %871, %v365
      %v873 = vpop.permute.xlu0 %872
      %876 = vset.pattern.permute.xlu0 0
      %877 = vperm.xlu0 %876, %v366
      %v878 = vpop.permute.xlu0 %877
      %v880 = vmul.f32 %v387, %v863
      %v881 = vmul.f32 %v388, %v868
      %v882 = vmul.f32 %v389, %v873
      %v883 = vmul.f32 %v390, %v878
      %vm884 = vcmask 187496
      %v885 = vsel %vm884, %v880, 0.0
      %v886 = vsel %vm884, %v881, 0.0
      %v887 = vadd.f32 %v885, %v886
      %v888 = vsel %vm884, %v882, 0.0
      %v889 = vadd.f32 %v887, %v888
      %v890 = vsel %vm884, %v883, 0.0
      %v891 = vadd.f32 %v889, %v890
      %v892 = vrot.slane %v891, 4
      %v893 = vadd.f32 %v891, %v892
      %v894 = vrot.slane %v893, 2
      %v895 = vadd.f32 %v893, %v894
      %v896 = vrot.slane %v895, 1
      %v897 = vadd.f32 %v895, %v896
      %899 = vrot.lane.b32.xlu0 %v897, 115
      %v900 = vpop.permute.xlu0 %899
      %v902 = vadd.f32 %v859, %v900
      %904 = vset.pattern.permute.xlu0 0
      %905 = vperm.xlu0 %904, %v367
      %v906 = vpop.permute.xlu0 %905
      %909 = vset.pattern.permute.xlu0 0
      %910 = vperm.xlu0 %909, %v368
      %v911 = vpop.permute.xlu0 %910
      %914 = vset.pattern.permute.xlu0 0
      %915 = vperm.xlu0 %914, %v369
      %v916 = vpop.permute.xlu0 %915
      %919 = vset.pattern.permute.xlu0 0
      %920 = vperm.xlu0 %919, %v370
      %v921 = vpop.permute.xlu0 %920
      %v923 = vmul.f32 %v387, %v906
      %v924 = vmul.f32 %v388, %v911
      %v925 = vmul.f32 %v389, %v916
      %v926 = vmul.f32 %v390, %v921
      %vm927 = vcmask 203896
      %v928 = vsel %vm927, %v923, 0.0
      %v929 = vsel %vm927, %v924, 0.0
      %v930 = vadd.f32 %v928, %v929
      %v931 = vsel %vm927, %v925, 0.0
      %v932 = vadd.f32 %v930, %v931
      %v933 = vsel %vm927, %v926, 0.0
      %v934 = vadd.f32 %v932, %v933
      %v935 = vrot.slane %v934, 4
      %v936 = vadd.f32 %v934, %v935
      %v937 = vrot.slane %v936, 2
      %v938 = vadd.f32 %v936, %v937
      %v939 = vrot.slane %v938, 1
      %v940 = vadd.f32 %v938, %v939
      %942 = vrot.lane.b32.xlu0 %v940, 113
      %v943 = vpop.permute.xlu0 %942
      %v945 = vadd.f32 %v902, %v943
      %947 = vset.pattern.permute.xlu0 0
      %948 = vperm.xlu0 %947, %v371
      %v949 = vpop.permute.xlu0 %948
      %952 = vset.pattern.permute.xlu0 0
      %953 = vperm.xlu0 %952, %v372
      %v954 = vpop.permute.xlu0 %953
      %957 = vset.pattern.permute.xlu0 0
      %958 = vperm.xlu0 %957, %v373
      %v959 = vpop.permute.xlu0 %958
      %962 = vset.pattern.permute.xlu0 0
      %963 = vperm.xlu0 %962, %v374
      %v964 = vpop.permute.xlu0 %963
      %v966 = vmul.f32 %v387, %v949
      %v967 = vmul.f32 %v388, %v954
      %v968 = vmul.f32 %v389, %v959
      %v969 = vmul.f32 %v390, %v964
      %vm970 = vcmask 212096
      %v971 = vsel %vm970, %v966, 0.0
      %v972 = vsel %vm970, %v967, 0.0
      %v973 = vadd.f32 %v971, %v972
      %v974 = vsel %vm970, %v968, 0.0
      %v975 = vadd.f32 %v973, %v974
      %v976 = vsel %vm970, %v969, 0.0
      %v977 = vadd.f32 %v975, %v976
      %v978 = vrot.slane %v977, 4
      %v979 = vadd.f32 %v977, %v978
      %v980 = vrot.slane %v979, 2
      %v981 = vadd.f32 %v979, %v980
      %v982 = vrot.slane %v981, 1
      %v983 = vadd.f32 %v981, %v982
      %985 = vrot.lane.b32.xlu0 %v983, 112
      %v986 = vpop.permute.xlu0 %985
      %v988 = vadd.f32 %v945, %v986
      %990 = vset.pattern.permute.xlu0 0
      %991 = vperm.xlu0 %990, %v375
      %v992 = vpop.permute.xlu0 %991
      %995 = vset.pattern.permute.xlu0 0
      %996 = vperm.xlu0 %995, %v376
      %v997 = vpop.permute.xlu0 %996
      %1000 = vset.pattern.permute.xlu0 0
      %1001 = vperm.xlu0 %1000, %v377
      %v1002 = vpop.permute.xlu0 %1001
      %1005 = vset.pattern.permute.xlu0 0
      %1006 = vperm.xlu0 %1005, %v378
      %v1007 = vpop.permute.xlu0 %1006
      %v1009 = vmul.f32 %v387, %v992
      %v1010 = vmul.f32 %v388, %v997
      %v1011 = vmul.f32 %v389, %v1002
      %v1012 = vmul.f32 %v390, %v1007
      %vm1013 = vcmask 220296
      %v1014 = vsel %vm1013, %v1009, 0.0
      %v1015 = vsel %vm1013, %v1010, 0.0
      %v1016 = vadd.f32 %v1014, %v1015
      %v1017 = vsel %vm1013, %v1011, 0.0
      %v1018 = vadd.f32 %v1016, %v1017
      %v1019 = vsel %vm1013, %v1012, 0.0
      %v1020 = vadd.f32 %v1018, %v1019
      %v1021 = vrot.slane %v1020, 4
      %v1022 = vadd.f32 %v1020, %v1021
      %v1023 = vrot.slane %v1022, 2
      %v1024 = vadd.f32 %v1022, %v1023
      %v1025 = vrot.slane %v1024, 1
      %v1026 = vadd.f32 %v1024, %v1025
      %1028 = vrot.lane.b32.xlu0 %v1026, 111
      %v1029 = vpop.permute.xlu0 %1028
      %v1031 = vadd.f32 %v988, %v1029
      %1033 = vset.pattern.permute.xlu0 0
      %1034 = vperm.xlu0 %1033, %v379
      %v1035 = vpop.permute.xlu0 %1034
      %1038 = vset.pattern.permute.xlu0 0
      %1039 = vperm.xlu0 %1038, %v380
      %v1040 = vpop.permute.xlu0 %1039
      %1043 = vset.pattern.permute.xlu0 0
      %1044 = vperm.xlu0 %1043, %v381
      %v1045 = vpop.permute.xlu0 %1044
      %1048 = vset.pattern.permute.xlu0 0
      %1049 = vperm.xlu0 %1048, %v382
      %v1050 = vpop.permute.xlu0 %1049
      %v1052 = vmul.f32 %v387, %v1035
      %v1053 = vmul.f32 %v388, %v1040
      %v1054 = vmul.f32 %v389, %v1045
      %v1055 = vmul.f32 %v390, %v1050
      %vm1056 = vcmask 228496
      %v1057 = vsel %vm1056, %v1052, 0.0
      %v1058 = vsel %vm1056, %v1053, 0.0
      %v1059 = vadd.f32 %v1057, %v1058
      %v1060 = vsel %vm1056, %v1054, 0.0
      %v1061 = vadd.f32 %v1059, %v1060
      %v1062 = vsel %vm1056, %v1055, 0.0
      %v1063 = vadd.f32 %v1061, %v1062
      %v1064 = vrot.slane %v1063, 4
      %v1065 = vadd.f32 %v1063, %v1064
      %v1066 = vrot.slane %v1065, 2
      %v1067 = vadd.f32 %v1065, %v1066
      %v1068 = vrot.slane %v1067, 1
      %v1069 = vadd.f32 %v1067, %v1068
      %1071 = vrot.lane.b32.xlu0 %v1069, 110
      %v1072 = vpop.permute.xlu0 %1071
      %v1074 = vadd.f32 %v1031, %v1072
      %v1075 = vld [vmem:[#allocation2] sm:$0x1]
      %v1076 = vadd.f32 %v1075, %v1074
      %vm1077 = vcmask 73728
      %1078 = vst.msk [vmem:[#allocation2] sm:$0x1] %vm1077, %v1076
      %p1079 = scmp.eq.s32.totalorder %s24, 2
      // Predicated region
      $region41: #{patch_discriminator_forward.11} parent=35 // pred_check
        %p1080 = pneg %p1079
      $region42: #{patch_discriminator_forward.11} parent=35 // pred_check_branch
        %1082 = sbr.rel (%p1080) target = $region44
      $region43: #{patch_discriminator_forward.11} parent=35 // pred_region
        %v1083 = vld [vmem:[#allocation2] sm:$0x1]
        %v1084 = vld [vmem:[#allocation3] sm:$0x1]
        %1086 = vset.pattern.permute.xlu0 0
        %1087 = vperm.xlu0 %1086, %v1084
        %v1088 = vpop.permute.xlu0 %1087
        %v1090 = vlaneseq
        %v1091 = vshrl.u32 %v1090, 7
        %v1092 = vsub.s32 0, %v1091
        %v1093 = vrot.slane %v1088, %v1092
        %v1094 = vadd.f32 %v1083, %v1093
        %v1095 = vld [vmem:[%s3] sm:$0x1]
        %v1096 = vmul.f32 %v1094, %v1095
        %1097 = vst.msk [vmem:[%s243] sm:$0x1] %vm1077, %v1096
      $region44: #{patch_discriminator_forward.11} parent=35 // pred_fallthru
        _
      %s1098 = smul.u32 %s22, 2
      %s1099 = sadd.s32 %s1098, %s23
      %p1100 = scmp.lt.s32.totalorder %s1099, 3
      %s1101 = scalar_select %p1100, %s1099, 3
      %s1102 = scalar_lea.vmem %s4, %s1101
      // Predicated region
      $region45: #{patch_discriminator_forward.11} parent=35 // pred_check
        %p1103 = pneg %p153
      $region46: #{patch_discriminator_forward.11} parent=35 // pred_check_branch
        %1105 = sbr.rel (%p1103) target = $region48
      $region47: #{patch_discriminator_forward.11} parent=35 // pred_region
        %s1106 = smul.u32 %s22, 2
        %s1107 = sadd.s32 %s1106, %s23
      $region48: #{patch_discriminator_forward.11} parent=35 // pred_fallthru
        _
    $region36: #{patch_discriminator_forward.11} parent=5 // pred_fallthru
      _
    %p1108 = scmp.le.s32.totalorder 2, %s12
    // Predicated region
    $region49: #{patch_discriminator_forward.11} parent=5 // pred_check
      %p1109 = pneg %p1108
    $region50: #{patch_discriminator_forward.11} parent=5 // pred_check_branch
      %1111 = sbr.rel (%p1109) target = $region52
    $region51: #{patch_discriminator_forward.11} parent=5 // pred_region
      %s1112 = ssub.s32 %s12, 2
      // Predicated region
      $region53: #{patch_discriminator_forward.11} parent=51 // pred_check
        %p1113 = pneg %p159
      $region54: #{patch_discriminator_forward.11} parent=51 // pred_check_branch
        %1115 = sbr.rel (%p1113) target = $region56
      $region55: #{patch_discriminator_forward.11} parent=51 // pred_region
        %s1116 = smul.u32 %s25, 2
        %s1117 = sadd.s32 %s1116, %s26
        %p1118 = scmp.lt.s32.totalorder %s1117, 3
        %s1119 = scalar_select %p1118, %s1117, 3
        %s1120 = scalar_lea.vmem %s4, %s1119
      $region56: #{patch_discriminator_forward.11} parent=51 // pred_fallthru
        _
    $region52: #{patch_discriminator_forward.11} parent=5 // pred_fallthru
      _
  $region6: #{patch_discriminator_forward.11} parent=0 // loop_footer
    %s16 = sadd.s32 1, %s12
  $region7: #{patch_discriminator_forward.11} parent=0 // loop_footer_branch
    %11 = sbr.rel target = $region3
  $region8: #{patch_discriminator_forward.11} parent=0 // loop_exit
    _

</llo_original>
